<compile_context>
chip_gen: v7x
topology: tpu7x:2x2x1
jax: 0.10.0
libtpu: 0.0.40
codegen_flags: <defaults>
</compile_context>

<pallas_src>
import functools

import jax
import jax.numpy as jnp
from jax.experimental import pallas as pl
from jax.experimental.pallas import tpu as pltpu


def _conv3x3_banded_kernel(x_ref, w_ref, b_ref, o_ref, acc_ref, *, H, W, Cin, Cout):
    """Processes TN (batch*time) items per grid step.

    x_ref:   (TN, H, W*Cin)       lane-flattened NHWC input rows (unpadded)
    w_ref:   (3, W*Cin, W*Cout)   banded weights, one per vertical tap kh (VMEM-resident)
    b_ref:   (1, W*Cout)          lane-flattened bias
    o_ref:   (TN, H, W*Cout)      lane-dense output block
    acc_ref: (TN, H, W*Cout)      f32 accumulator scratch
    """
    TN = x_ref.shape[0]
    WCout = W * Cout

    x = x_ref[...]                                    # (TN, H, W*Cin)
    bias = b_ref[...].astype(jnp.float32)             # (1, W*Cout)

    dot = functools.partial(
        jax.lax.dot_general,
        dimension_numbers=(((2,), (0,)), ((), ())),
        preferred_element_type=jnp.float32)

    # Center vertical tap (kh=1), bias folded into the accumulator init.
    acc_ref[...] = jnp.broadcast_to(bias[:, None, :], (TN, H, WCout)) + dot(x, w_ref[1])
    # Top tap (kh=0): output row h reads input row h-1 -> out rows 1..H-1 use x rows 0..H-2.
    acc_ref[:, 1:, :] += dot(x[:, :H - 1, :], w_ref[0])
    # Bottom tap (kh=2): output row h reads input row h+1 -> out rows 0..H-2 use x rows 1..H-1.
    acc_ref[:, :H - 1, :] += dot(x[:, 1:, :], w_ref[2])

    o_ref[...] = acc_ref[...].astype(o_ref.dtype)


def _pick_block_n(N, target=64):
    """Largest divisor of N that is <= target, preferring >= 2 grid steps (megacore)."""
    tn = min(N, target)
    while N % tn:
        tn -= 1
    if tn == N and N > 1:
        tn = max(d for d in range(1, N // 2 + 1) if N % d == 0)
    return tn


def time_distributed_conv3x3(x_btchw, weight_oihw, bias_o, *, block_n=None):
    """TimeDistributed(Conv2d(Cin, Cout, 3, padding=1)) forward.

    x_btchw:     (B, T, Cin, H, W)   PyTorch NCHW with leading time
    weight_oihw: (Cout, Cin, 3, 3)   PyTorch Conv2d weight layout
    bias_o:      (Cout,)
    returns:     (B, T, Cout, H, W)
    """
    B, T, Cin, H, W = x_btchw.shape
    Cout = weight_oihw.shape[0]
    N = B * T
    dtype = x_btchw.dtype
    assert H >= 2, "kernel assumes at least 2 rows for the vertical halo"

    # --- TimeDistributed glue: merge (B, T) -> N; NCHW -> lane-flattened NHWC (N, H, W*Cin). ---
    # TODO(synk): if the surrounding dmri_pcconv model is kept NHWC end-to-end, these boundary
    # transposes (one HBM pass each way) disappear entirely.
    x_flat = jnp.transpose(x_btchw.reshape(N, Cin, H, W), (0, 2, 3, 1)).reshape(N, H, W * Cin)

    # Banded weights: for each vertical tap kh, fold the 3 horizontal taps AND the horizontal
    # zero-padding into a (W*Cin, W*Cout) matrix.  Built with kron (exact 0/1 elementwise
    # products, no matmul rounding of the weights).
    taps = jnp.transpose(weight_oihw, (2, 3, 1, 0)).astype(dtype)   # (kh, kw, Cin, Cout)
    bands = []
    for kh in range(3):
        band = jnp.zeros((W * Cin, W * Cout), dtype)
        for kw in range(3):
            shift = jnp.eye(W, W, k=1 - kw, dtype=dtype)            # out col w <- in col w+kw-1
            band = band + jnp.kron(shift, taps[kh, kw])
        bands.append(band)
    w_bands = jnp.stack(bands)                                      # (3, W*Cin, W*Cout)
    b_flat = jnp.tile(bias_o.astype(dtype), W).reshape(1, W * Cout)

    TN = block_n if block_n is not None else _pick_block_n(N)
    assert N % TN == 0

    kernel = functools.partial(_conv3x3_banded_kernel, H=H, W=W, Cin=Cin, Cout=Cout)

    y_flat = pl.pallas_call(
        kernel,
        out_shape=jax.ShapeDtypeStruct((N, H, W * Cout), dtype),
        grid_spec=pltpu.PrefetchScalarGridSpec(
            num_scalar_prefetch=0,
            grid=(N // TN,),
            in_specs=[
                pl.BlockSpec((TN, H, W * Cin), lambda n: (n, 0, 0)),
                pl.BlockSpec((3, W * Cin, W * Cout), lambda n: (0, 0, 0)),
                pl.BlockSpec((1, W * Cout), lambda n: (0, 0)),
            ],
            out_specs=pl.BlockSpec((TN, H, W * Cout), lambda n: (n, 0, 0)),
            scratch_shapes=[pltpu.VMEM((TN, H, W * Cout), jnp.float32)],
        ),
        compiler_params=pltpu.CompilerParams(
            dimension_semantics=("parallel",)),
    )(x_flat, w_bands, b_flat)

    # Un-flatten lanes, back to NCHW, un-merge time.
    y = y_flat.reshape(N, H, W, Cout)
    y = jnp.transpose(y, (0, 3, 1, 2)).reshape(B, T, Cout, H, W)
    return y


def _reference(x_btchw, weight_oihw, bias_o):
    """Pure-JAX reference (lax conv) for correctness checking."""
    B, T, Cin, H, W = x_btchw.shape
    Cout = weight_oihw.shape[0]
    x_nhwc = jnp.transpose(x_btchw.reshape(B * T, Cin, H, W), (0, 2, 3, 1))
    w_hwio = jnp.transpose(weight_oihw, (2, 3, 1, 0))
    y = jax.lax.conv_general_dilated(
        x_nhwc, w_hwio, window_strides=(1, 1), padding="SAME",
        dimension_numbers=("NHWC", "HWIO", "NHWC"))
    y = y + bias_o[None, None, None, :]
    y = jnp.transpose(y, (0, 3, 1, 2)).reshape(B, T, Cout, H, W)
    return y


if __name__ == "__main__":
    B, T, Cin, Cout, H, W = 2, 8, 4, 8, 16, 16   # W * Cout = 128 -> lane-dense output

    key = jax.random.PRNGKey(0)
    kx, kw, kb = jax.random.split(key, 3)
    x = jax.random.normal(kx, (B, T, Cin, H, W), dtype=jnp.float32)
    weight = jax.random.normal(kw, (Cout, Cin, 3, 3), dtype=jnp.float32) * 0.1
    bias = jax.random.normal(kb, (Cout,), dtype=jnp.float32) * 0.1

    y = time_distributed_conv3x3(x, weight, bias)
    y = jax.block_until_ready(y)

    y_ref = jax.block_until_ready(_reference(x, weight, bias))
    assert y.shape == (B, T, Cout, H, W)
    assert jnp.allclose(y, y_ref, atol=2e-4, rtol=2e-4)

    print("KERNEL_OK")
</pallas_src>

<mosaic_0001>
module attributes {stable_mosaic.version = 11 : i64} {
  func.func @_conv3x3_banded_kernel(%arg0: i32, %arg1: memref<8x16x64xf32, #tpu.memory_space<vmem>>, %arg2: memref<3x64x128xf32, #tpu.memory_space<vmem>>, %arg3: memref<1x128xf32, #tpu.memory_space<vmem>>, %arg4: memref<8x16x128xf32, #tpu.memory_space<vmem>>, %arg5: memref<8x16x128xf32, #tpu.memory_space<vmem>>) attributes {dimension_semantics = [#tpu.dimension_semantics<parallel>], iteration_bounds = array<i64: 2>, scalar_prefetch = 0 : i64, scratch_operands = 1 : i64, tpu.core_type = #tpu.core_type<tc>, window_params = [{transform_indices = @transform_0, window_bounds = array<i64: 8, 16, 64>}, {pipeline_mode = #tpu.pipeline_mode<synchronous>, transform_indices = @transform_1, window_bounds = array<i64: 3, 64, 128>}, {pipeline_mode = #tpu.pipeline_mode<synchronous>, transform_indices = @transform_2, window_bounds = array<i64: 1, 128>}, {transform_indices = @transform_3, window_bounds = array<i64: 8, 16, 128>}]} {
    %c0 = arith.constant 0 : index
    %c0_0 = arith.constant 0 : index
    %c0_1 = arith.constant 0 : index
    %0 = vector.load %arg1[%c0, %c0_0, %c0_1] : memref<8x16x64xf32, #tpu.memory_space<vmem>>, vector<8x16x64xf32>
    %c0_2 = arith.constant 0 : index
    %c0_3 = arith.constant 0 : index
    %1 = vector.load %arg3[%c0_2, %c0_3] : memref<1x128xf32, #tpu.memory_space<vmem>>, vector<1x128xf32>
    %2 = vector.shape_cast %1 : vector<1x128xf32> to vector<1x1x128xf32>
    %3 = vector.shape_cast %2 : vector<1x1x128xf32> to vector<1x1x128xf32>
    %4 = vector.broadcast %3 : vector<1x1x128xf32> to vector<8x16x128xf32>
    %c1 = arith.constant 1 : index
    %c0_4 = arith.constant 0 : index
    %c0_5 = arith.constant 0 : index
    %5 = vector.load %arg2[%c1, %c0_4, %c0_5] : memref<3x64x128xf32, #tpu.memory_space<vmem>>, vector<1x64x128xf32>
    %6 = vector.shape_cast %5 : vector<1x64x128xf32> to vector<64x128xf32>
    %cst = arith.constant dense<0.000000e+00> : vector<8x16x128xf32>
    %7 = tpu.matmul %0, %6, %cst {dimension_numbers = #tpu.dot_dimension_numbers<[2], [0], [0, 1], [1], [0, 0, 0, 1, 1, 1], [], []>} : vector<8x16x64xf32>, vector<64x128xf32>, vector<8x16x128xf32> -> vector<8x16x128xf32>
    %8 = arith.addf %4, %7 : vector<8x16x128xf32>
    %c0_6 = arith.constant 0 : index
    %c0_7 = arith.constant 0 : index
    %c0_8 = arith.constant 0 : index
    %9 = vector.load %arg5[%c0_6, %c0_7, %c0_8] : memref<8x16x128xf32, #tpu.memory_space<vmem>>, vector<8x16x128xf32>
    tpu.vector_store %arg5[%c0_6, %c0_7, %c0_8], %8 {strides = array<i32>} : memref<8x16x128xf32, #tpu.memory_space<vmem>>, vector<8x16x128xf32>,
    %c0_9 = arith.constant 0 : index
    %c1_10 = arith.constant 1 : index
    %c0_11 = arith.constant 0 : index
    %10 = vector.load %arg5[%c0_9, %c1_10, %c0_11] : memref<8x16x128xf32, #tpu.memory_space<vmem>>, vector<8x15x128xf32>
    %11 = vector.extract_strided_slice %0 {offsets = [0, 0, 0], sizes = [8, 15, 64], strides = [1, 1, 1]} : vector<8x16x64xf32> to vector<8x15x64xf32>
    %c0_12 = arith.constant 0 : index
    %c0_13 = arith.constant 0 : index
    %c0_14 = arith.constant 0 : index
    %12 = vector.load %arg2[%c0_12, %c0_13, %c0_14] : memref<3x64x128xf32, #tpu.memory_space<vmem>>, vector<1x64x128xf32>
    %13 = vector.shape_cast %12 : vector<1x64x128xf32> to vector<64x128xf32>
    %cst_15 = arith.constant dense<0.000000e+00> : vector<8x15x128xf32>
    %14 = tpu.matmul %11, %13, %cst_15 {dimension_numbers = #tpu.dot_dimension_numbers<[2], [0], [0, 1], [1], [0, 0, 0, 1, 1, 1], [], []>} : vector<8x15x64xf32>, vector<64x128xf32>, vector<8x15x128xf32> -> vector<8x15x128xf32>
    %15 = arith.addf %10, %14 : vector<8x15x128xf32>
    %c0_16 = arith.constant 0 : index
    %c1_17 = arith.constant 1 : index
    %c0_18 = arith.constant 0 : index
    %16 = vector.load %arg5[%c0_16, %c1_17, %c0_18] : memref<8x16x128xf32, #tpu.memory_space<vmem>>, vector<8x15x128xf32>
    tpu.vector_store %arg5[%c0_16, %c1_17, %c0_18], %15 {strides = array<i32>} : memref<8x16x128xf32, #tpu.memory_space<vmem>>, vector<8x15x128xf32>,
    %c0_19 = arith.constant 0 : index
    %c0_20 = arith.constant 0 : index
    %c0_21 = arith.constant 0 : index
    %17 = vector.load %arg5[%c0_19, %c0_20, %c0_21] : memref<8x16x128xf32, #tpu.memory_space<vmem>>, vector<8x15x128xf32>
    %18 = vector.extract_strided_slice %0 {offsets = [0, 1, 0], sizes = [8, 15, 64], strides = [1, 1, 1]} : vector<8x16x64xf32> to vector<8x15x64xf32>
    %c2 = arith.constant 2 : index
    %c0_22 = arith.constant 0 : index
    %c0_23 = arith.constant 0 : index
    %19 = vector.load %arg2[%c2, %c0_22, %c0_23] : memref<3x64x128xf32, #tpu.memory_space<vmem>>, vector<1x64x128xf32>
    %20 = vector.shape_cast %19 : vector<1x64x128xf32> to vector<64x128xf32>
    %cst_24 = arith.constant dense<0.000000e+00> : vector<8x15x128xf32>
    %21 = tpu.matmul %18, %20, %cst_24 {dimension_numbers = #tpu.dot_dimension_numbers<[2], [0], [0, 1], [1], [0, 0, 0, 1, 1, 1], [], []>} : vector<8x15x64xf32>, vector<64x128xf32>, vector<8x15x128xf32> -> vector<8x15x128xf32>
    %22 = arith.addf %17, %21 : vector<8x15x128xf32>
    %c0_25 = arith.constant 0 : index
    %c0_26 = arith.constant 0 : index
    %c0_27 = arith.constant 0 : index
    %23 = vector.load %arg5[%c0_25, %c0_26, %c0_27] : memref<8x16x128xf32, #tpu.memory_space<vmem>>, vector<8x15x128xf32>
    tpu.vector_store %arg5[%c0_25, %c0_26, %c0_27], %22 {strides = array<i32>} : memref<8x16x128xf32, #tpu.memory_space<vmem>>, vector<8x15x128xf32>,
    %c0_28 = arith.constant 0 : index
    %c0_29 = arith.constant 0 : index
    %c0_30 = arith.constant 0 : index
    %24 = vector.load %arg5[%c0_28, %c0_29, %c0_30] : memref<8x16x128xf32, #tpu.memory_space<vmem>>, vector<8x16x128xf32>
    %c0_31 = arith.constant 0 : index
    %c0_32 = arith.constant 0 : index
    %c0_33 = arith.constant 0 : index
    %25 = vector.load %arg4[%c0_31, %c0_32, %c0_33] : memref<8x16x128xf32, #tpu.memory_space<vmem>>, vector<8x16x128xf32>
    tpu.vector_store %arg4[%c0_31, %c0_32, %c0_33], %24 {strides = array<i32>} : memref<8x16x128xf32, #tpu.memory_space<vmem>>, vector<8x16x128xf32>,
    return
  }
  func.func @transform_0(%arg0: i32) -> (i32, i32, i32) {
    %c0_i32 = arith.constant 0 : i32
    %c0_i32_0 = arith.constant 0 : i32
    %c0_i32_1 = arith.constant 0 : i32
    return %arg0, %c0_i32, %c0_i32_0 : i32, i32, i32
  }
  func.func @transform_1(%arg0: i32) -> (i32, i32, i32) {
    %c0_i32 = arith.constant 0 : i32
    %c0_i32_0 = arith.constant 0 : i32
    %c0_i32_1 = arith.constant 0 : i32
    %c0_i32_2 = arith.constant 0 : i32
    return %c0_i32, %c0_i32_0, %c0_i32_1 : i32, i32, i32
  }
  func.func @transform_2(%arg0: i32) -> (i32, i32) {
    %c0_i32 = arith.constant 0 : i32
    %c0_i32_0 = arith.constant 0 : i32
    %c0_i32_1 = arith.constant 0 : i32
    return %c0_i32, %c0_i32_0 : i32, i32
  }
  func.func @transform_3(%arg0: i32) -> (i32, i32, i32) {
    %c0_i32 = arith.constant 0 : i32
    %c0_i32_0 = arith.constant 0 : i32
    %c0_i32_1 = arith.constant 0 : i32
    return %arg0, %c0_i32, %c0_i32_0 : i32, i32, i32
  }
}

</mosaic_0001>

<llo_original>
// kernel: tpu_custom_call.1
$region0: #{tpu_custom_call.1}
  #allocation0 [shape = 'u32[]', space=smem, size = 0x4, offset = 0x4, fixed_abs, tag = 'smem constant byte address 0x4 - core index']
  #allocation1 [shape = 'u32[144,128]{1,0:T(1,128)}', space=vmem, size = 0x12000, scoped, tag = 'internal scratch']
  #allocation2 [shape = 'f32[8,16,128]{2,1,0:T(8,128)}', space=vmem, size = 0x10000, scoped, tag = 'scratch operand']
  %s0 = inlined_call_operand.hbm [shape: f32[16,16,64], index: 0, kind: input, shape index: {}]
  %s1 = inlined_call_operand.hbm [shape: f32[3,64,128], index: 1, kind: input, shape index: {}]
  %s2 = inlined_call_operand.vmem [shape: f32[1,128], index: 2, kind: input, shape index: {}]
  %s3 = inlined_call_operand.hbm [shape: f32[16,16,128], index: 3, kind: output, shape index: {}]
  %s4 = sld [smem:[#allocation0]]
  $region53: #{tpu_custom_call.1} parent=0
    _
  %s6 = ssub.s32 1, %s4
  %s7 = scalar_select 0, %s6, %s4
  $region1: #{tpu_custom_call.1} parent=0
    #allocation3 [shape = 'u8[131072]{0}', space=vmem, size = 0x20000, scoped, tag = 'input window, operand 0']
    #allocation4 [shape = 's32[2]{0}', space=sflag, size = 0x8, scoped, tag = 'scoped memory for tpu_custom_call.1']
    #allocation5 [shape = 's32[2]{0}', space=sflag, size = 0x8, scoped, tag = 'scoped memory for tpu_custom_call.1']
    #allocation6 [shape = 'u8[98304]{0}', space=vmem, size = 0x18000, scoped, tag = 'input window, operand 1, single buffered']
    #allocation7 [shape = 's32[1]{0}', space=sflag, size = 0x4, scoped, tag = 'scoped memory for tpu_custom_call.1']
    #allocation8 [shape = 'u8[131072]{0}', space=vmem, size = 0x20000, scoped, tag = 'output window, operand 0']
    %8 = vsyncpa [#allocation4], 0
    %s9 = scalar_lea.sflag [#allocation4], 1
    %10 = vsyncpa %s9, 0
    %11 = vsyncpa [#allocation7], 0
    %12 = vsyncpa [#allocation5], 0
    %s13 = scalar_lea.sflag [#allocation5], 1
    %14 = vsyncpa %s13, 0
    loop: start=0, step=1, limit=4
    $region2: #{tpu_custom_call.1} parent=1 // loop_pre_header
      _
    $region3: #{tpu_custom_call.1} parent=1 // loop_header
      %s16 = sphi 0, %s20
      %p17 = scmp.ge.s32.totalorder %s16, 4
      %s26 = sphi 0, %s28
      %s29 = sphi 0, %s26
      %s30 = sphi 0, %s29
      %s46 = sphi 0, %s30
      %s50 = sphi 0, %s50
      %s52 = sphi 0, %s50
      %s53 = sphi 0, %s52
      %s67 = sphi 0, %s53
      %s71 = sphi 0, %s71
      %s73 = sphi 0, %s71
      %s74 = sphi 0, %s73
      %s88 = sphi 0, %s74
      %s94 = sphi 0, %s96
      %s97 = sphi 0, %s94
      %s98 = sphi 0, %s97
      %s114 = sphi 0, %s98
    $region4: #{tpu_custom_call.1} parent=1 // loop_header_branch
      %19 = sbr.rel (%p17) target = $region8
    $region5: #{tpu_custom_call.1} parent=1 // loop_body
      %s21 = ssub.s32 %s16, 1
      %s22 = ssub.s32 %s16, 2
      %s23 = sadd.s32 %s16, 1
      %s24 = ssub.s32 %s16, %s23
      %p25 = scmp.eq.s32.totalorder %s24, 0
      %s27 = sadd.s32 %s26, 1
      %s28 = scalar_select %p25, %s26, %s27
      %p31 = pneg %p25
      %p32 = scmp.eq.s32.totalorder %s16, 1
      %p33 = por %p31, %p32
      %p34 = scmp.ne.s32.totalorder %s26, %s29
      %p35 = scmp.eq.s32.totalorder %s16, 0
      %p36 = por %p34, %p35
      %p37 = scmp.ne.s32.totalorder %s26, %s29
      %p38 = scmp.eq.s32.totalorder %s21, 1
      %p39 = por %p37, %p38
      %p40 = scmp.ne.s32.totalorder %s29, %s30
      %p41 = scmp.eq.s32.totalorder %s21, 0
      %p42 = por %p40, %p41
      %p43 = scmp.ne.s32.totalorder %s29, %s30
      %p44 = scmp.eq.s32.totalorder %s22, 1
      %p45 = por %p43, %p44
      %p47 = scmp.ne.s32.totalorder %s30, %s46
      %p48 = scmp.eq.s32.totalorder %s22, 0
      %p49 = por %p47, %p48
      %s51 = sadd.s32 %s50, 1
      %p54 = scmp.eq.s32.totalorder %s16, 1
      %p55 = scmp.ne.s32.totalorder %s50, %s52
      %p56 = scmp.eq.s32.totalorder %s16, 0
      %p57 = por %p55, %p56
      %p58 = scmp.ne.s32.totalorder %s50, %s52
      %p59 = scmp.eq.s32.totalorder %s21, 1
      %p60 = por %p58, %p59
      %p61 = scmp.ne.s32.totalorder %s52, %s53
      %p62 = scmp.eq.s32.totalorder %s21, 0
      %p63 = por %p61, %p62
      %p64 = scmp.ne.s32.totalorder %s52, %s53
      %p65 = scmp.eq.s32.totalorder %s22, 1
      %p66 = por %p64, %p65
      %p68 = scmp.ne.s32.totalorder %s53, %s67
      %p69 = scmp.eq.s32.totalorder %s22, 0
      %p70 = por %p68, %p69
      %s72 = sadd.s32 %s71, 1
      %p75 = scmp.eq.s32.totalorder %s16, 1
      %p76 = scmp.ne.s32.totalorder %s71, %s73
      %p77 = scmp.eq.s32.totalorder %s16, 0
      %p78 = por %p76, %p77
      %p79 = scmp.ne.s32.totalorder %s71, %s73
      %p80 = scmp.eq.s32.totalorder %s21, 1
      %p81 = por %p79, %p80
      %p82 = scmp.ne.s32.totalorder %s73, %s74
      %p83 = scmp.eq.s32.totalorder %s21, 0
      %p84 = por %p82, %p83
      %p85 = scmp.ne.s32.totalorder %s73, %s74
      %p86 = scmp.eq.s32.totalorder %s22, 1
      %p87 = por %p85, %p86
      %p89 = scmp.ne.s32.totalorder %s74, %s88
      %p90 = scmp.eq.s32.totalorder %s22, 0
      %p91 = por %p89, %p90
      %s92 = ssub.s32 %s16, %s23
      %p93 = scmp.eq.s32.totalorder %s92, 0
      %s95 = sadd.s32 %s94, 1
      %s96 = scalar_select %p93, %s94, %s95
      %p99 = pneg %p93
      %p100 = scmp.eq.s32.totalorder %s16, 1
      %p101 = por %p99, %p100
      %p102 = scmp.ne.s32.totalorder %s94, %s97
      %p103 = scmp.eq.s32.totalorder %s16, 0
      %p104 = por %p102, %p103
      %p105 = scmp.ne.s32.totalorder %s94, %s97
      %p106 = scmp.eq.s32.totalorder %s21, 1
      %p107 = por %p105, %p106
      %p108 = scmp.ne.s32.totalorder %s97, %s98
      %p109 = scmp.eq.s32.totalorder %s21, 0
      %p110 = por %p108, %p109
      %p111 = scmp.ne.s32.totalorder %s97, %s98
      %p112 = scmp.eq.s32.totalorder %s22, 1
      %p113 = por %p111, %p112
      %p115 = scmp.ne.s32.totalorder %s98, %s114
      %p116 = scmp.eq.s32.totalorder %s22, 0
      %p117 = por %p115, %p116
      %p118 = scmp.le.s32.totalorder 1, %s16
      %p119 = scmp.lt.s32.totalorder %s16, 3
      %p120 = pnand %p118, %p119
      %p121 = pneg %p120
      // Predicated region
      $region9: #{tpu_custom_call.1} parent=5 // pred_check
        _
      $region10: #{tpu_custom_call.1} parent=5 // pred_check_branch
        %123 = sbr.rel (%p120) target = $region12
      $region11: #{tpu_custom_call.1} parent=5 // pred_region
        %s124 = ssub.s32 %s16, 1
        // Predicated region
        $region13: #{tpu_custom_call.1} parent=11 // pred_check
          %p125 = pneg %p63
        $region14: #{tpu_custom_call.1} parent=11 // pred_check_branch
          %127 = sbr.rel (%p125) target = $region16
        $region15: #{tpu_custom_call.1} parent=11 // pred_region
          %s129 = ssub.s32 3072, 3072
          %130 = vsyncadd [#allocation7], %s129
          %s131 = sshll.u32 [#allocation6], 4
          %s132 = int_to_ptr.vmem [resolvable:$true] %s131
          %137 = dma.hbm_to_vmem [thread:$0]  %s1, 3072, %s132, [#allocation7], 128, 128, 8
        $region16: #{tpu_custom_call.1} parent=11 // pred_fallthru
          _
        // Predicated region
        $region17: #{tpu_custom_call.1} parent=11 // pred_check
          %p138 = pneg %p84
        $region18: #{tpu_custom_call.1} parent=11 // pred_check_branch
          %140 = sbr.rel (%p138) target = $region20
        $region19: #{tpu_custom_call.1} parent=11 // pred_region
          _
        $region20: #{tpu_custom_call.1} parent=11 // pred_fallthru
          _
      $region12: #{tpu_custom_call.1} parent=5 // pred_fallthru
        _
      %p141 = scmp.lt.s32.totalorder %s16, 2
      // Predicated region
      $region21: #{tpu_custom_call.1} parent=5 // pred_check
        %p142 = pneg %p141
      $region22: #{tpu_custom_call.1} parent=5 // pred_check_branch
        %144 = sbr.rel (%p142) target = $region24
      $region23: #{tpu_custom_call.1} parent=5 // pred_region
        // Predicated region
        $region25: #{tpu_custom_call.1} parent=23 // pred_check
          %p145 = pneg %p36
        $region26: #{tpu_custom_call.1} parent=23 // pred_check_branch
          %147 = sbr.rel (%p145) target = $region28
        $region27: #{tpu_custom_call.1} parent=23 // pred_region
          %s148 = sand.u32 %s26, 1
          %s149 = scalar_lea.sflag [#allocation4], %s148
          %s150 = sand.u32 %s26, 1
          %s151 = smul.addr %s150, 128
          %s152 = scalar_lea.vmem [#allocation3], %s151
          %s153 = smul.u32 8, %s16
          %s155 = ssub.s32 2048, 2048
          %156 = vsyncadd %s149, %s155
          %s157 = smul.addr %s153, 2
          %s158 = smul.addr %s157, 128
          %s159 = scalar_lea.hbm %s0, %s158
          %s160 = sshll.u32 %s152, 4
          %s161 = int_to_ptr.vmem [resolvable:$true] %s160
          %166 = dma.hbm_to_vmem [thread:$0]  %s159, 2048, %s161, %s149, 128, 128, 8
        $region28: #{tpu_custom_call.1} parent=23 // pred_fallthru
          _
      $region24: #{tpu_custom_call.1} parent=5 // pred_fallthru
        _
      %p167 = scmp.le.s32.totalorder 1, %s16
      %p168 = scmp.lt.s32.totalorder %s16, 3
      %p169 = pnand %p167, %p168
      %p170 = pneg %p169
      // Predicated region
      $region29: #{tpu_custom_call.1} parent=5 // pred_check
        _
      $region30: #{tpu_custom_call.1} parent=5 // pred_check_branch
        %172 = sbr.rel (%p169) target = $region32
      $region31: #{tpu_custom_call.1} parent=5 // pred_region
        %s173 = ssub.s32 %s16, 1
        %s174 = sand.u32 %s29, 1
        %s175 = scalar_lea.sflag [#allocation4], %s174
        %s176 = sand.u32 %s29, 1
        %s177 = smul.addr %s176, 128
        %s178 = scalar_lea.vmem [#allocation3], %s177
        // Predicated region
        $region33: #{tpu_custom_call.1} parent=31 // pred_check
          %p179 = pneg %p42
        $region34: #{tpu_custom_call.1} parent=31 // pred_check_branch
          %181 = sbr.rel (%p179) target = $region36
        $region35: #{tpu_custom_call.1} parent=31 // pred_region
          %182 = dma.done %s175, 2048
        $region36: #{tpu_custom_call.1} parent=31 // pred_fallthru
          _
        // Predicated region
        $region37: #{tpu_custom_call.1} parent=31 // pred_check
          %p183 = pneg %p63
        $region38: #{tpu_custom_call.1} parent=31 // pred_check_branch
          %185 = sbr.rel (%p183) target = $region40
        $region39: #{tpu_custom_call.1} parent=31 // pred_region
          %186 = dma.done [#allocation7], 3072
        $region40: #{tpu_custom_call.1} parent=31 // pred_fallthru
          _
        %s187 = sand.u32 %s29, 1
        %s188 = scalar_lea.sflag [#allocation4], %s187
        %s189 = sand.u32 %s29, 1
        %s190 = smul.addr %s189, 128
        %s191 = scalar_lea.vmem [#allocation3], %s190
        %p192 = pneg %p42
        %p193 = pneg %p39
        %p194 = pneg %p63
        %p195 = pneg %p60
        %p196 = pneg %p84
        %p197 = pneg %p81
        %p198 = pneg %p110
        %p199 = pneg %p107
        %s200 = sand.u32 %s97, 1
        %s201 = scalar_lea.sflag [#allocation5], %s200
        %s202 = sand.u32 %s97, 1
        %s203 = smul.addr %s202, 128
        %s204 = scalar_lea.vmem [#allocation8], %s203
        %s205 = smul.u32 8, %s21
        %s206 = smul.u32 8, %s21
        %v207 = vld [vmem:[%s178] sm:$0xff]
        %v208 = vld [vmem:[%s178 + $0x8] sm:$0xff]
        %v209 = vld [vmem:[%s178 + $0x10] sm:$0xff]
        %v210 = vld [vmem:[%s178 + $0x18] sm:$0xff]
        %v211 = vld [vmem:[%s178 + $0x20] sm:$0xff]
        %v212 = vld [vmem:[%s178 + $0x28] sm:$0xff]
        %v213 = vld [vmem:[%s178 + $0x30] sm:$0xff]
        %v214 = vld [vmem:[%s178 + $0x38] sm:$0xff]
        %v215 = vld [vmem:[%s178 + $0x40] sm:$0xff]
        %v216 = vld [vmem:[%s178 + $0x48] sm:$0xff]
        %v217 = vld [vmem:[%s178 + $0x50] sm:$0xff]
        %v218 = vld [vmem:[%s178 + $0x58] sm:$0xff]
        %v219 = vld [vmem:[%s178 + $0x60] sm:$0xff]
        %v220 = vld [vmem:[%s178 + $0x68] sm:$0xff]
        %v221 = vld [vmem:[%s178 + $0x70] sm:$0xff]
        %v222 = vld [vmem:[%s178 + $0x78] sm:$0xff]
        %v223 = vld [vmem:[%s2] sm:$0x1]
        %v225 = vlaneseq
        %v226 = vshrl.u32 %v225, 7
        %v227 = vsub.s32 0, %v226
        %v228 = vrot.slane %v223, %v227
        %s230 = scalar_lea.vmem [#allocation6], 64
        %v231 = vld [vmem:[%s230] sm:$0xff]
        %v232 = vld [vmem:[%s230 + $0x8] sm:$0xff]
        %v233 = vld [vmem:[%s230 + $0x10] sm:$0xff]
        %v234 = vld [vmem:[%s230 + $0x18] sm:$0xff]
        %v235 = vld [vmem:[%s230 + $0x20] sm:$0xff]
        %v236 = vld [vmem:[%s230 + $0x28] sm:$0xff]
        %v237 = vld [vmem:[%s230 + $0x30] sm:$0xff]
        %v238 = vld [vmem:[%s230 + $0x38] sm:$0xff]
        %vm239 = vcmask 523264
        %v241 = vsel %vm239, %v207, 0
        %v244 = vsel %vm239, %v208, 0
        %v247 = vsel %vm239, %v209, 0
        %v250 = vsel %vm239, %v210, 0
        %v253 = vsel %vm239, %v211, 0
        %v256 = vsel %vm239, %v212, 0
        %v259 = vsel %vm239, %v213, 0
        %v262 = vsel %vm239, %v214, 0
        %v265 = vsel %vm239, %v215, 0
        %v268 = vsel %vm239, %v216, 0
        %v271 = vsel %vm239, %v217, 0
        %v274 = vsel %vm239, %v218, 0
        %v277 = vsel %vm239, %v219, 0
        %v280 = vsel %vm239, %v220, 0
        %v283 = vsel %vm239, %v221, 0
        %v286 = vsel %vm239, %v222, 0
        %288 = vmatprep.subr.mxu0 0.0
        %289 = vmatpush1.msra.mxu0 %v231
        %290 = vmatprep.subr.mxu0 0.0
        %291 = vmatpush1.msra.mxu0 %v232
        %292 = vmatprep.subr.mxu0 0.0
        %293 = vmatpush1.msra.mxu0 %v233
        %294 = vmatprep.subr.mxu0 0.0
        %295 = vmatpush1.msra.mxu0 %v234
        %296 = vmatprep.subr.mxu0 0.0
        %297 = vmatpush1.msra.mxu0 %v235
        %298 = vmatprep.subr.mxu0 0.0
        %299 = vmatpush1.msra.mxu0 %v236
        %300 = vmatprep.subr.mxu0 0.0
        %301 = vmatpush1.msra.mxu0 %v237
        %302 = vmatprep.subr.mxu0 0.0
        %303 = vmatpush1.msra.mxu0 %v238
        %304 = vmatprep.subr.mxu0 0.0
        %305 = vmatpush1.msra.mxu0 0.0
        %306 = vmatprep.subr.mxu0 0.0
        %307 = vmatpush1.msra.mxu0 0.0
        %308 = vmatprep.subr.mxu0 0.0
        %309 = vmatpush1.msra.mxu0 0.0
        %310 = vmatprep.subr.mxu0 0.0
        %311 = vmatpush1.msra.mxu0 0.0
        %312 = vmatprep.subr.mxu0 0.0
        %313 = vmatpush1.msra.mxu0 0.0
        %314 = vmatprep.subr.mxu0 0.0
        %315 = vmatpush1.msra.mxu0 0.0
        %316 = vmatprep.subr.mxu0 0.0
        %317 = vmatpush1.msra.mxu0 0.0
        %318 = vmatprep.subr.mxu0 0.0
        %319 = vmatpush1.msra.mxu0 0.0
        %320 = vmatprep.subr.mxu0 0.0
        %321 = vmatpush1.msra.mxu0 0.0
        %322 = vmatprep.subr.mxu0 0.0
        %323 = vmatpush1.msra.mxu0 0.0
        %324 = vmatprep.subr.mxu0 0.0
        %325 = vmatpush1.msra.mxu0 0.0
        %326 = vmatprep.subr.mxu0 0.0
        %327 = vmatpush1.msra.mxu0 0.0
        %328 = vmatprep.subr.mxu0 0.0
        %329 = vmatpush1.msra.mxu0 0.0
        %330 = vmatprep.subr.mxu0 0.0
        %331 = vmatpush1.msra.mxu0 0.0
        %332 = vmatprep.subr.mxu0 0.0
        %333 = vmatpush1.msra.mxu0 0.0
        %334 = vmatprep.subr.mxu0 0.0
        %335 = vmatpush1.msra.mxu0 0.0
        %336 = vmatprep.subr.mxu0 0.0
        %337 = vmatpush1.msra.mxu0 0.0
        %338 = vmatprep.subr.mxu0 0.0
        %339 = vmatpush1.msra.mxu0 0.0
        %340 = vmatprep.subr.mxu0 0.0
        %341 = vmatpush1.msra.mxu0 0.0
        %342 = vmatprep.subr.mxu0 0.0
        %343 = vmatpush1.msra.mxu0 0.0
        %344 = vmatprep.subr.mxu0 0.0
        %345 = vmatpush1.msra.mxu0 0.0
        %346 = vmatprep.subr.mxu0 0.0
        %347 = vmatpush1.msra.mxu0 0.0
        %348 = vmatprep.subr.mxu0 0.0
        %349 = vmatpush1.msra.mxu0 0.0
        %350 = vmatprep.subr.mxu0 0.0
        %351 = vmatpush1.msra.mxu0 0.0
        %352 = vmatprep.mubr.f32.mxu0 0.0
        %353 = vmatmul.mubr.f32.gmra.mrb[0].mxu0 %v241
        %v354 = vpop.f32.mrb[0].mxu0
        %v355 = vadd.f32 0.0, %v354
        %v356 = vpop.f32.mrb[0].mxu0
        %357 = vmatprep.mubr.f32.mxu0 0.0
        %358 = vmatmul.mubr.f32.gmra.mrb[0].mxu0 %v244
        %v359 = vpop.f32.mrb[0].mxu0
        %v360 = vadd.f32 0.0, %v359
        %v361 = vpop.f32.mrb[0].mxu0
        %362 = vmatprep.mubr.f32.mxu0 0.0
        %363 = vmatmul.mubr.f32.gmra.mrb[0].mxu0 %v247
        %v364 = vpop.f32.mrb[0].mxu0
        %v365 = vadd.f32 0.0, %v364
        %v366 = vpop.f32.mrb[0].mxu0
        %367 = vmatprep.mubr.f32.mxu0 0.0
        %368 = vmatmul.mubr.f32.gmra.mrb[0].mxu0 %v250
        %v369 = vpop.f32.mrb[0].mxu0
        %v370 = vadd.f32 0.0, %v369
        %v371 = vpop.f32.mrb[0].mxu0
        %372 = vmatprep.mubr.f32.mxu0 0.0
        %373 = vmatmul.mubr.f32.gmra.mrb[0].mxu0 %v253
        %v374 = vpop.f32.mrb[0].mxu0
        %v375 = vadd.f32 0.0, %v374
        %v376 = vpop.f32.mrb[0].mxu0
        %377 = vmatprep.mubr.f32.mxu0 0.0
        %378 = vmatmul.mubr.f32.gmra.mrb[0].mxu0 %v256
        %v379 = vpop.f32.mrb[0].mxu0
        %v380 = vadd.f32 0.0, %v379
        %v381 = vpop.f32.mrb[0].mxu0
        %382 = vmatprep.mubr.f32.mxu0 0.0
        %383 = vmatmul.mubr.f32.gmra.mrb[0].mxu0 %v259
        %v384 = vpop.f32.mrb[0].mxu0
        %v385 = vadd.f32 0.0, %v384
        %v386 = vpop.f32.mrb[0].mxu0
        %387 = vmatprep.mubr.f32.mxu0 0.0
        %388 = vmatmul.mubr.f32.gmra.mrb[0].mxu0 %v262
        %v389 = vpop.f32.mrb[0].mxu0
        %v390 = vadd.f32 0.0, %v389
        %v391 = vpop.f32.mrb[0].mxu0
        %392 = vmatprep.mubr.f32.mxu0 0.0
        %393 = vmatmul.mubr.f32.gmra.mrb[0].mxu0 %v265
        %v394 = vpop.f32.mrb[0].mxu0
        %v395 = vadd.f32 0.0, %v394
        %v396 = vpop.f32.mrb[0].mxu0
        %397 = vmatprep.mubr.f32.mxu0 0.0
        %398 = vmatmul.mubr.f32.gmra.mrb[0].mxu0 %v268
        %v399 = vpop.f32.mrb[0].mxu0
        %v400 = vadd.f32 0.0, %v399
        %v401 = vpop.f32.mrb[0].mxu0
        %402 = vmatprep.mubr.f32.mxu0 0.0
        %403 = vmatmul.mubr.f32.gmra.mrb[0].mxu0 %v271
        %v404 = vpop.f32.mrb[0].mxu0
        %v405 = vadd.f32 0.0, %v404
        %v406 = vpop.f32.mrb[0].mxu0
        %407 = vmatprep.mubr.f32.mxu0 0.0
        %408 = vmatmul.mubr.f32.gmra.mrb[0].mxu0 %v274
        %v409 = vpop.f32.mrb[0].mxu0
        %v410 = vadd.f32 0.0, %v409
        %v411 = vpop.f32.mrb[0].mxu0
        %412 = vmatprep.mubr.f32.mxu0 0.0
        %413 = vmatmul.mubr.f32.gmra.mrb[0].mxu0 %v277
        %v414 = vpop.f32.mrb[0].mxu0
        %v415 = vadd.f32 0.0, %v414
        %v416 = vpop.f32.mrb[0].mxu0
        %417 = vmatprep.mubr.f32.mxu0 0.0
        %418 = vmatmul.mubr.f32.gmra.mrb[0].mxu0 %v280
        %v419 = vpop.f32.mrb[0].mxu0
        %v420 = vadd.f32 0.0, %v419
        %v421 = vpop.f32.mrb[0].mxu0
        %422 = vmatprep.mubr.f32.mxu0 0.0
        %423 = vmatmul.mubr.f32.gmra.mrb[0].mxu0 %v283
        %v424 = vpop.f32.mrb[0].mxu0
        %v425 = vadd.f32 0.0, %v424
        %v426 = vpop.f32.mrb[0].mxu0
        %427 = vmatprep.mubr.f32.mxu0 0.0
        %428 = vmatmul.mubr.f32.gmra.mrb[0].mxu0 %v286
        %v429 = vpop.f32.mrb[0].mxu0
        %v430 = vadd.f32 0.0, %v429
        %v431 = vpop.f32.mrb[0].mxu0
        %432 = vdwg.mxu0
        %v433 = vadd.f32 %v228, %v355
        %v434 = vadd.f32 %v228, %v360
        %v435 = vadd.f32 %v228, %v365
        %v436 = vadd.f32 %v228, %v370
        %v437 = vadd.f32 %v228, %v375
        %v438 = vadd.f32 %v228, %v380
        %v439 = vadd.f32 %v228, %v385
        %v440 = vadd.f32 %v228, %v390
        %v441 = vadd.f32 %v228, %v395
        %v442 = vadd.f32 %v228, %v400
        %v443 = vadd.f32 %v228, %v405
        %v444 = vadd.f32 %v228, %v410
        %v445 = vadd.f32 %v228, %v415
        %v446 = vadd.f32 %v228, %v420
        %v447 = vadd.f32 %v228, %v425
        %v448 = vadd.f32 %v228, %v430
        %449 = vst [vmem:[#allocation2] sm:$0xff] %v433
        %450 = vst [vmem:[#allocation2 + $0x8] sm:$0xff] %v434
        %451 = vst [vmem:[#allocation2 + $0x10] sm:$0xff] %v435
        %452 = vst [vmem:[#allocation2 + $0x18] sm:$0xff] %v436
        %453 = vst [vmem:[#allocation2 + $0x20] sm:$0xff] %v437
        %454 = vst [vmem:[#allocation2 + $0x28] sm:$0xff] %v438
        %455 = vst [vmem:[#allocation2 + $0x30] sm:$0xff] %v439
        %456 = vst [vmem:[#allocation2 + $0x38] sm:$0xff] %v440
        %457 = vst [vmem:[#allocation2 + $0x40] sm:$0xff] %v441
        %458 = vst [vmem:[#allocation2 + $0x48] sm:$0xff] %v442
        %459 = vst [vmem:[#allocation2 + $0x50] sm:$0xff] %v443
        %460 = vst [vmem:[#allocation2 + $0x58] sm:$0xff] %v444
        %461 = vst [vmem:[#allocation2 + $0x60] sm:$0xff] %v445
        %462 = vst [vmem:[#allocation2 + $0x68] sm:$0xff] %v446
        %463 = vst [vmem:[#allocation2 + $0x70] sm:$0xff] %v447
        %464 = vst [vmem:[#allocation2 + $0x78] sm:$0xff] %v448
        %v465 = vld [vmem:[#allocation2 + $0x1] sm:$0xff]
        %v466 = vld [vmem:[#allocation2 + $0x9] sm:$0x7f]
        %v467 = vld [vmem:[#allocation2 + $0x11] sm:$0xff]
        %v468 = vld [vmem:[#allocation2 + $0x19] sm:$0x7f]
        %v469 = vld [vmem:[#allocation2 + $0x21] sm:$0xff]
        %v470 = vld [vmem:[#allocation2 + $0x29] sm:$0x7f]
        %v471 = vld [vmem:[#allocation2 + $0x31] sm:$0xff]
        %v472 = vld [vmem:[#allocation2 + $0x39] sm:$0x7f]
        %v473 = vld [vmem:[#allocation2 + $0x41] sm:$0xff]
        %v474 = vld [vmem:[#allocation2 + $0x49] sm:$0x7f]
        %v475 = vld [vmem:[#allocation2 + $0x51] sm:$0xff]
        %v476 = vld [vmem:[#allocation2 + $0x59] sm:$0x7f]
        %v477 = vld [vmem:[#allocation2 + $0x61] sm:$0xff]
        %v478 = vld [vmem:[#allocation2 + $0x69] sm:$0x7f]
        %v479 = vld [vmem:[#allocation2 + $0x71] sm:$0xff]
        %v480 = vld [vmem:[#allocation2 + $0x79] sm:$0x7f]
        %v481 = vld [vmem:[#allocation6] sm:$0xff]
        %v482 = vld [vmem:[#allocation6 + $0x8] sm:$0xff]
        %v483 = vld [vmem:[#allocation6 + $0x10] sm:$0xff]
        %v484 = vld [vmem:[#allocation6 + $0x18] sm:$0xff]
        %v485 = vld [vmem:[#allocation6 + $0x20] sm:$0xff]
        %v486 = vld [vmem:[#allocation6 + $0x28] sm:$0xff]
        %v487 = vld [vmem:[#allocation6 + $0x30] sm:$0xff]
        %v488 = vld [vmem:[#allocation6 + $0x38] sm:$0xff]
        %v489 = vcombine.high %v207, %v207
        %v491 = vunpack.c.l.s4 1966171168
        %v492 = vunpack.c.0.s8 %v491
        %v493 = vlaneseq
        %v494 = vshrl.u32 %v493, 7
        %v495 = vsub.s32 %v492, %v494
        %v496 = vrot.slane %v207, %v495
        %v498 = vunpack.c.l.s4 1966171168
        %v499 = vunpack.c.0.s8 %v498
        %v500 = vlaneseq
        %v501 = vshrl.u32 %v500, 7
        %v502 = vsub.s32 %v499, %v501
        %v503 = vrot.slane %v489, %v502
        %v504 = vcombine.high %v496, %v496
        %v505 = vcombine.high %v503, %v503
        %v507 = vunpack.c.l.s4 1966171168
        %v508 = vunpack.c.0.s8 %v507
        %v509 = vlaneseq
        %v510 = vshrl.u32 %v509, 7
        %v511 = vsub.s32 %v508, %v510
        %v512 = vrot.slane %v496, %v511
        %v514 = vunpack.c.l.s4 1966171168
        %v515 = vunpack.c.0.s8 %v514
        %v516 = vlaneseq
        %v517 = vshrl.u32 %v516, 7
        %v518 = vsub.s32 %v515, %v517
        %v519 = vrot.slane %v503, %v518
        %v521 = vunpack.c.l.s4 1966171168
        %v522 = vunpack.c.0.s8 %v521
        %v523 = vlaneseq
        %v524 = vshrl.u32 %v523, 7
        %v525 = vsub.s32 %v522, %v524
        %v526 = vrot.slane %v504, %v525
        %v528 = vunpack.c.l.s4 1966171168
        %v529 = vunpack.c.0.s8 %v528
        %v530 = vlaneseq
        %v531 = vshrl.u32 %v530, 7
        %v532 = vsub.s32 %v529, %v531
        %v533 = vrot.slane %v505, %v532
        %v534 = vcombine.high %v512, %v512
        %v535 = vcombine.high %v519, %v519
        %v536 = vcombine.high %v526, %v526
        %v537 = vcombine.high %v533, %v533
        %v538 = vcombine.high %v208, %v208
        %v540 = vunpack.c.l.s4 1966171168
        %v541 = vunpack.c.0.s8 %v540
        %v542 = vlaneseq
        %v543 = vshrl.u32 %v542, 7
        %v544 = vsub.s32 %v541, %v543
        %v545 = vrot.slane %v208, %v544
        %v547 = vunpack.c.l.s4 1966171168
        %v548 = vunpack.c.0.s8 %v547
        %v549 = vlaneseq
        %v550 = vshrl.u32 %v549, 7
        %v551 = vsub.s32 %v548, %v550
        %v552 = vrot.slane %v538, %v551
        %v553 = vcombine.high %v545, %v545
        %v554 = vcombine.high %v552, %v552
        %v556 = vunpack.c.l.s4 1966171168
        %v557 = vunpack.c.0.s8 %v556
        %v558 = vlaneseq
        %v559 = vshrl.u32 %v558, 7
        %v560 = vsub.s32 %v557, %v559
        %v561 = vrot.slane %v545, %v560
        %v563 = vunpack.c.l.s4 1966171168
        %v564 = vunpack.c.0.s8 %v563
        %v565 = vlaneseq
        %v566 = vshrl.u32 %v565, 7
        %v567 = vsub.s32 %v564, %v566
        %v568 = vrot.slane %v552, %v567
        %v570 = vunpack.c.l.s4 1966171168
        %v571 = vunpack.c.0.s8 %v570
        %v572 = vlaneseq
        %v573 = vshrl.u32 %v572, 7
        %v574 = vsub.s32 %v571, %v573
        %v575 = vrot.slane %v553, %v574
        %v577 = vunpack.c.l.s4 1966171168
        %v578 = vunpack.c.0.s8 %v577
        %v579 = vlaneseq
        %v580 = vshrl.u32 %v579, 7
        %v581 = vsub.s32 %v578, %v580
        %v582 = vrot.slane %v554, %v581
        %v583 = vcombine.high %v561, %v561
        %v584 = vcombine.high %v568, %v568
        %v585 = vcombine.high %v575, %v575
        %v586 = vcombine.high %v209, %v209
        %v588 = vunpack.c.l.s4 1966171168
        %v589 = vunpack.c.0.s8 %v588
        %v590 = vlaneseq
        %v591 = vshrl.u32 %v590, 7
        %v592 = vsub.s32 %v589, %v591
        %v593 = vrot.slane %v209, %v592
        %v595 = vunpack.c.l.s4 1966171168
        %v596 = vunpack.c.0.s8 %v595
        %v597 = vlaneseq
        %v598 = vshrl.u32 %v597, 7
        %v599 = vsub.s32 %v596, %v598
        %v600 = vrot.slane %v586, %v599
        %v601 = vcombine.high %v593, %v593
        %v602 = vcombine.high %v600, %v600
        %v604 = vunpack.c.l.s4 1966171168
        %v605 = vunpack.c.0.s8 %v604
        %v606 = vlaneseq
        %v607 = vshrl.u32 %v606, 7
        %v608 = vsub.s32 %v605, %v607
        %v609 = vrot.slane %v593, %v608
        %v611 = vunpack.c.l.s4 1966171168
        %v612 = vunpack.c.0.s8 %v611
        %v613 = vlaneseq
        %v614 = vshrl.u32 %v613, 7
        %v615 = vsub.s32 %v612, %v614
        %v616 = vrot.slane %v600, %v615
        %v618 = vunpack.c.l.s4 1966171168
        %v619 = vunpack.c.0.s8 %v618
        %v620 = vlaneseq
        %v621 = vshrl.u32 %v620, 7
        %v622 = vsub.s32 %v619, %v621
        %v623 = vrot.slane %v601, %v622
        %v625 = vunpack.c.l.s4 1966171168
        %v626 = vunpack.c.0.s8 %v625
        %v627 = vlaneseq
        %v628 = vshrl.u32 %v627, 7
        %v629 = vsub.s32 %v626, %v628
        %v630 = vrot.slane %v602, %v629
        %v631 = vcombine.high %v609, %v609
        %v632 = vcombine.high %v616, %v616
        %v633 = vcombine.high %v623, %v623
        %v634 = vcombine.high %v630, %v630
        %v635 = vcombine.high %v210, %v210
        %v637 = vunpack.c.l.s4 1966171168
        %v638 = vunpack.c.0.s8 %v637
        %v639 = vlaneseq
        %v640 = vshrl.u32 %v639, 7
        %v641 = vsub.s32 %v638, %v640
        %v642 = vrot.slane %v210, %v641
        %v644 = vunpack.c.l.s4 1966171168
        %v645 = vunpack.c.0.s8 %v644
        %v646 = vlaneseq
        %v647 = vshrl.u32 %v646, 7
        %v648 = vsub.s32 %v645, %v647
        %v649 = vrot.slane %v635, %v648
        %v650 = vcombine.high %v642, %v642
        %v651 = vcombine.high %v649, %v649
        %v653 = vunpack.c.l.s4 1966171168
        %v654 = vunpack.c.0.s8 %v653
        %v655 = vlaneseq
        %v656 = vshrl.u32 %v655, 7
        %v657 = vsub.s32 %v654, %v656
        %v658 = vrot.slane %v642, %v657
        %v660 = vunpack.c.l.s4 1966171168
        %v661 = vunpack.c.0.s8 %v660
        %v662 = vlaneseq
        %v663 = vshrl.u32 %v662, 7
        %v664 = vsub.s32 %v661, %v663
        %v665 = vrot.slane %v649, %v664
        %v667 = vunpack.c.l.s4 1966171168
        %v668 = vunpack.c.0.s8 %v667
        %v669 = vlaneseq
        %v670 = vshrl.u32 %v669, 7
        %v671 = vsub.s32 %v668, %v670
        %v672 = vrot.slane %v650, %v671
        %v674 = vunpack.c.l.s4 1966171168
        %v675 = vunpack.c.0.s8 %v674
        %v676 = vlaneseq
        %v677 = vshrl.u32 %v676, 7
        %v678 = vsub.s32 %v675, %v677
        %v679 = vrot.slane %v651, %v678
        %v680 = vcombine.high %v658, %v658
        %v681 = vcombine.high %v665, %v665
        %v682 = vcombine.high %v672, %v672
        %v683 = vcombine.high %v211, %v211
        %v685 = vunpack.c.l.s4 1966171168
        %v686 = vunpack.c.0.s8 %v685
        %v687 = vlaneseq
        %v688 = vshrl.u32 %v687, 7
        %v689 = vsub.s32 %v686, %v688
        %v690 = vrot.slane %v211, %v689
        %v692 = vunpack.c.l.s4 1966171168
        %v693 = vunpack.c.0.s8 %v692
        %v694 = vlaneseq
        %v695 = vshrl.u32 %v694, 7
        %v696 = vsub.s32 %v693, %v695
        %v697 = vrot.slane %v683, %v696
        %v698 = vcombine.high %v690, %v690
        %v699 = vcombine.high %v697, %v697
        %v701 = vunpack.c.l.s4 1966171168
        %v702 = vunpack.c.0.s8 %v701
        %v703 = vlaneseq
        %v704 = vshrl.u32 %v703, 7
        %v705 = vsub.s32 %v702, %v704
        %v706 = vrot.slane %v690, %v705
        %v708 = vunpack.c.l.s4 1966171168
        %v709 = vunpack.c.0.s8 %v708
        %v710 = vlaneseq
        %v711 = vshrl.u32 %v710, 7
        %v712 = vsub.s32 %v709, %v711
        %v713 = vrot.slane %v697, %v712
        %v715 = vunpack.c.l.s4 1966171168
        %v716 = vunpack.c.0.s8 %v715
        %v717 = vlaneseq
        %v718 = vshrl.u32 %v717, 7
        %v719 = vsub.s32 %v716, %v718
        %v720 = vrot.slane %v698, %v719
        %v722 = vunpack.c.l.s4 1966171168
        %v723 = vunpack.c.0.s8 %v722
        %v724 = vlaneseq
        %v725 = vshrl.u32 %v724, 7
        %v726 = vsub.s32 %v723, %v725
        %v727 = vrot.slane %v699, %v726
        %v728 = vcombine.high %v706, %v706
        %v729 = vcombine.high %v713, %v713
        %v730 = vcombine.high %v720, %v720
        %v731 = vcombine.high %v727, %v727
        %v732 = vcombine.high %v212, %v212
        %v734 = vunpack.c.l.s4 1966171168
        %v735 = vunpack.c.0.s8 %v734
        %v736 = vlaneseq
        %v737 = vshrl.u32 %v736, 7
        %v738 = vsub.s32 %v735, %v737
        %v739 = vrot.slane %v212, %v738
        %v741 = vunpack.c.l.s4 1966171168
        %v742 = vunpack.c.0.s8 %v741
        %v743 = vlaneseq
        %v744 = vshrl.u32 %v743, 7
        %v745 = vsub.s32 %v742, %v744
        %v746 = vrot.slane %v732, %v745
        %v747 = vcombine.high %v739, %v739
        %v748 = vcombine.high %v746, %v746
        %v750 = vunpack.c.l.s4 1966171168
        %v751 = vunpack.c.0.s8 %v750
        %v752 = vlaneseq
        %v753 = vshrl.u32 %v752, 7
        %v754 = vsub.s32 %v751, %v753
        %v755 = vrot.slane %v739, %v754
        %v757 = vunpack.c.l.s4 1966171168
        %v758 = vunpack.c.0.s8 %v757
        %v759 = vlaneseq
        %v760 = vshrl.u32 %v759, 7
        %v761 = vsub.s32 %v758, %v760
        %v762 = vrot.slane %v746, %v761
        %v764 = vunpack.c.l.s4 1966171168
        %v765 = vunpack.c.0.s8 %v764
        %v766 = vlaneseq
        %v767 = vshrl.u32 %v766, 7
        %v768 = vsub.s32 %v765, %v767
        %v769 = vrot.slane %v747, %v768
        %v771 = vunpack.c.l.s4 1966171168
        %v772 = vunpack.c.0.s8 %v771
        %v773 = vlaneseq
        %v774 = vshrl.u32 %v773, 7
        %v775 = vsub.s32 %v772, %v774
        %v776 = vrot.slane %v748, %v775
        %v777 = vcombine.high %v755, %v755
        %v778 = vcombine.high %v762, %v762
        %v779 = vcombine.high %v769, %v769
        %v780 = vcombine.high %v213, %v213
        %v782 = vunpack.c.l.s4 1966171168
        %v783 = vunpack.c.0.s8 %v782
        %v784 = vlaneseq
        %v785 = vshrl.u32 %v784, 7
        %v786 = vsub.s32 %v783, %v785
        %v787 = vrot.slane %v213, %v786
        %v789 = vunpack.c.l.s4 1966171168
        %v790 = vunpack.c.0.s8 %v789
        %v791 = vlaneseq
        %v792 = vshrl.u32 %v791, 7
        %v793 = vsub.s32 %v790, %v792
        %v794 = vrot.slane %v780, %v793
        %v795 = vcombine.high %v787, %v787
        %v796 = vcombine.high %v794, %v794
        %v798 = vunpack.c.l.s4 1966171168
        %v799 = vunpack.c.0.s8 %v798
        %v800 = vlaneseq
        %v801 = vshrl.u32 %v800, 7
        %v802 = vsub.s32 %v799, %v801
        %v803 = vrot.slane %v787, %v802
        %v805 = vunpack.c.l.s4 1966171168
        %v806 = vunpack.c.0.s8 %v805
        %v807 = vlaneseq
        %v808 = vshrl.u32 %v807, 7
        %v809 = vsub.s32 %v806, %v808
        %v810 = vrot.slane %v794, %v809
        %v812 = vunpack.c.l.s4 1966171168
        %v813 = vunpack.c.0.s8 %v812
        %v814 = vlaneseq
        %v815 = vshrl.u32 %v814, 7
        %v816 = vsub.s32 %v813, %v815
        %v817 = vrot.slane %v795, %v816
        %v819 = vunpack.c.l.s4 1966171168
        %v820 = vunpack.c.0.s8 %v819
        %v821 = vlaneseq
        %v822 = vshrl.u32 %v821, 7
        %v823 = vsub.s32 %v820, %v822
        %v824 = vrot.slane %v796, %v823
        %v825 = vcombine.high %v803, %v803
        %v826 = vcombine.high %v810, %v810
        %v827 = vcombine.high %v817, %v817
        %v828 = vcombine.high %v824, %v824
        %v829 = vcombine.high %v214, %v214
        %v831 = vunpack.c.l.s4 1966171168
        %v832 = vunpack.c.0.s8 %v831
        %v833 = vlaneseq
        %v834 = vshrl.u32 %v833, 7
        %v835 = vsub.s32 %v832, %v834
        %v836 = vrot.slane %v214, %v835
        %v838 = vunpack.c.l.s4 1966171168
        %v839 = vunpack.c.0.s8 %v838
        %v840 = vlaneseq
        %v841 = vshrl.u32 %v840, 7
        %v842 = vsub.s32 %v839, %v841
        %v843 = vrot.slane %v829, %v842
        %v844 = vcombine.high %v836, %v836
        %v845 = vcombine.high %v843, %v843
        %v847 = vunpack.c.l.s4 1966171168
        %v848 = vunpack.c.0.s8 %v847
        %v849 = vlaneseq
        %v850 = vshrl.u32 %v849, 7
        %v851 = vsub.s32 %v848, %v850
        %v852 = vrot.slane %v836, %v851
        %v854 = vunpack.c.l.s4 1966171168
        %v855 = vunpack.c.0.s8 %v854
        %v856 = vlaneseq
        %v857 = vshrl.u32 %v856, 7
        %v858 = vsub.s32 %v855, %v857
        %v859 = vrot.slane %v843, %v858
        %v861 = vunpack.c.l.s4 1966171168
        %v862 = vunpack.c.0.s8 %v861
        %v863 = vlaneseq
        %v864 = vshrl.u32 %v863, 7
        %v865 = vsub.s32 %v862, %v864
        %v866 = vrot.slane %v844, %v865
        %v868 = vunpack.c.l.s4 1966171168
        %v869 = vunpack.c.0.s8 %v868
        %v870 = vlaneseq
        %v871 = vshrl.u32 %v870, 7
        %v872 = vsub.s32 %v869, %v871
        %v873 = vrot.slane %v845, %v872
        %v874 = vcombine.high %v852, %v852
        %v875 = vcombine.high %v859, %v859
        %v876 = vcombine.high %v866, %v866
        %v877 = vcombine.high %v215, %v215
        %v879 = vunpack.c.l.s4 1966171168
        %v880 = vunpack.c.0.s8 %v879
        %v881 = vlaneseq
        %v882 = vshrl.u32 %v881, 7
        %v883 = vsub.s32 %v880, %v882
        %v884 = vrot.slane %v215, %v883
        %v886 = vunpack.c.l.s4 1966171168
        %v887 = vunpack.c.0.s8 %v886
        %v888 = vlaneseq
        %v889 = vshrl.u32 %v888, 7
        %v890 = vsub.s32 %v887, %v889
        %v891 = vrot.slane %v877, %v890
        %v892 = vcombine.high %v884, %v884
        %v893 = vcombine.high %v891, %v891
        %v895 = vunpack.c.l.s4 1966171168
        %v896 = vunpack.c.0.s8 %v895
        %v897 = vlaneseq
        %v898 = vshrl.u32 %v897, 7
        %v899 = vsub.s32 %v896, %v898
        %v900 = vrot.slane %v884, %v899
        %v902 = vunpack.c.l.s4 1966171168
        %v903 = vunpack.c.0.s8 %v902
        %v904 = vlaneseq
        %v905 = vshrl.u32 %v904, 7
        %v906 = vsub.s32 %v903, %v905
        %v907 = vrot.slane %v891, %v906
        %v909 = vunpack.c.l.s4 1966171168
        %v910 = vunpack.c.0.s8 %v909
        %v911 = vlaneseq
        %v912 = vshrl.u32 %v911, 7
        %v913 = vsub.s32 %v910, %v912
        %v914 = vrot.slane %v892, %v913
        %v916 = vunpack.c.l.s4 1966171168
        %v917 = vunpack.c.0.s8 %v916
        %v918 = vlaneseq
        %v919 = vshrl.u32 %v918, 7
        %v920 = vsub.s32 %v917, %v919
        %v921 = vrot.slane %v893, %v920
        %v922 = vcombine.high %v900, %v900
        %v923 = vcombine.high %v907, %v907
        %v924 = vcombine.high %v914, %v914
        %v925 = vcombine.high %v921, %v921
        %v926 = vcombine.high %v216, %v216
        %v928 = vunpack.c.l.s4 1966171168
        %v929 = vunpack.c.0.s8 %v928
        %v930 = vlaneseq
        %v931 = vshrl.u32 %v930, 7
        %v932 = vsub.s32 %v929, %v931
        %v933 = vrot.slane %v216, %v932
        %v935 = vunpack.c.l.s4 1966171168
        %v936 = vunpack.c.0.s8 %v935
        %v937 = vlaneseq
        %v938 = vshrl.u32 %v937, 7
        %v939 = vsub.s32 %v936, %v938
        %v940 = vrot.slane %v926, %v939
        %v941 = vcombine.high %v933, %v933
        %v942 = vcombine.high %v940, %v940
        %v944 = vunpack.c.l.s4 1966171168
        %v945 = vunpack.c.0.s8 %v944
        %v946 = vlaneseq
        %v947 = vshrl.u32 %v946, 7
        %v948 = vsub.s32 %v945, %v947
        %v949 = vrot.slane %v933, %v948
        %v951 = vunpack.c.l.s4 1966171168
        %v952 = vunpack.c.0.s8 %v951
        %v953 = vlaneseq
        %v954 = vshrl.u32 %v953, 7
        %v955 = vsub.s32 %v952, %v954
        %v956 = vrot.slane %v940, %v955
        %v958 = vunpack.c.l.s4 1966171168
        %v959 = vunpack.c.0.s8 %v958
        %v960 = vlaneseq
        %v961 = vshrl.u32 %v960, 7
        %v962 = vsub.s32 %v959, %v961
        %v963 = vrot.slane %v941, %v962
        %v965 = vunpack.c.l.s4 1966171168
        %v966 = vunpack.c.0.s8 %v965
        %v967 = vlaneseq
        %v968 = vshrl.u32 %v967, 7
        %v969 = vsub.s32 %v966, %v968
        %v970 = vrot.slane %v942, %v969
        %v971 = vcombine.high %v949, %v949
        %v972 = vcombine.high %v956, %v956
        %v973 = vcombine.high %v963, %v963
        %v974 = vcombine.high %v217, %v217
        %v976 = vunpack.c.l.s4 1966171168
        %v977 = vunpack.c.0.s8 %v976
        %v978 = vlaneseq
        %v979 = vshrl.u32 %v978, 7
        %v980 = vsub.s32 %v977, %v979
        %v981 = vrot.slane %v217, %v980
        %v983 = vunpack.c.l.s4 1966171168
        %v984 = vunpack.c.0.s8 %v983
        %v985 = vlaneseq
        %v986 = vshrl.u32 %v985, 7
        %v987 = vsub.s32 %v984, %v986
        %v988 = vrot.slane %v974, %v987
        %v989 = vcombine.high %v981, %v981
        %v990 = vcombine.high %v988, %v988
        %v992 = vunpack.c.l.s4 1966171168
        %v993 = vunpack.c.0.s8 %v992
        %v994 = vlaneseq
        %v995 = vshrl.u32 %v994, 7
        %v996 = vsub.s32 %v993, %v995
        %v997 = vrot.slane %v981, %v996
        %v999 = vunpack.c.l.s4 1966171168
        %v1000 = vunpack.c.0.s8 %v999
        %v1001 = vlaneseq
        %v1002 = vshrl.u32 %v1001, 7
        %v1003 = vsub.s32 %v1000, %v1002
        %v1004 = vrot.slane %v988, %v1003
        %v1006 = vunpack.c.l.s4 1966171168
        %v1007 = vunpack.c.0.s8 %v1006
        %v1008 = vlaneseq
        %v1009 = vshrl.u32 %v1008, 7
        %v1010 = vsub.s32 %v1007, %v1009
        %v1011 = vrot.slane %v989, %v1010
        %v1013 = vunpack.c.l.s4 1966171168
        %v1014 = vunpack.c.0.s8 %v1013
        %v1015 = vlaneseq
        %v1016 = vshrl.u32 %v1015, 7
        %v1017 = vsub.s32 %v1014, %v1016
        %v1018 = vrot.slane %v990, %v1017
        %v1019 = vcombine.high %v997, %v997
        %v1020 = vcombine.high %v1004, %v1004
        %v1021 = vcombine.high %v1011, %v1011
        %v1022 = vcombine.high %v1018, %v1018
        %v1023 = vcombine.high %v218, %v218
        %v1025 = vunpack.c.l.s4 1966171168
        %v1026 = vunpack.c.0.s8 %v1025
        %v1027 = vlaneseq
        %v1028 = vshrl.u32 %v1027, 7
        %v1029 = vsub.s32 %v1026, %v1028
        %v1030 = vrot.slane %v218, %v1029
        %v1032 = vunpack.c.l.s4 1966171168
        %v1033 = vunpack.c.0.s8 %v1032
        %v1034 = vlaneseq
        %v1035 = vshrl.u32 %v1034, 7
        %v1036 = vsub.s32 %v1033, %v1035
        %v1037 = vrot.slane %v1023, %v1036
        %v1038 = vcombine.high %v1030, %v1030
        %v1039 = vcombine.high %v1037, %v1037
        %v1041 = vunpack.c.l.s4 1966171168
        %v1042 = vunpack.c.0.s8 %v1041
        %v1043 = vlaneseq
        %v1044 = vshrl.u32 %v1043, 7
        %v1045 = vsub.s32 %v1042, %v1044
        %v1046 = vrot.slane %v1030, %v1045
        %v1048 = vunpack.c.l.s4 1966171168
        %v1049 = vunpack.c.0.s8 %v1048
        %v1050 = vlaneseq
        %v1051 = vshrl.u32 %v1050, 7
        %v1052 = vsub.s32 %v1049, %v1051
        %v1053 = vrot.slane %v1037, %v1052
        %v1055 = vunpack.c.l.s4 1966171168
        %v1056 = vunpack.c.0.s8 %v1055
        %v1057 = vlaneseq
        %v1058 = vshrl.u32 %v1057, 7
        %v1059 = vsub.s32 %v1056, %v1058
        %v1060 = vrot.slane %v1038, %v1059
        %v1062 = vunpack.c.l.s4 1966171168
        %v1063 = vunpack.c.0.s8 %v1062
        %v1064 = vlaneseq
        %v1065 = vshrl.u32 %v1064, 7
        %v1066 = vsub.s32 %v1063, %v1065
        %v1067 = vrot.slane %v1039, %v1066
        %v1068 = vcombine.high %v1046, %v1046
        %v1069 = vcombine.high %v1053, %v1053
        %v1070 = vcombine.high %v1060, %v1060
        %v1071 = vcombine.high %v219, %v219
        %v1073 = vunpack.c.l.s4 1966171168
        %v1074 = vunpack.c.0.s8 %v1073
        %v1075 = vlaneseq
        %v1076 = vshrl.u32 %v1075, 7
        %v1077 = vsub.s32 %v1074, %v1076
        %v1078 = vrot.slane %v219, %v1077
        %v1080 = vunpack.c.l.s4 1966171168
        %v1081 = vunpack.c.0.s8 %v1080
        %v1082 = vlaneseq
        %v1083 = vshrl.u32 %v1082, 7
        %v1084 = vsub.s32 %v1081, %v1083
        %v1085 = vrot.slane %v1071, %v1084
        %v1086 = vcombine.high %v1078, %v1078
        %v1087 = vcombine.high %v1085, %v1085
        %v1089 = vunpack.c.l.s4 1966171168
        %v1090 = vunpack.c.0.s8 %v1089
        %v1091 = vlaneseq
        %v1092 = vshrl.u32 %v1091, 7
        %v1093 = vsub.s32 %v1090, %v1092
        %v1094 = vrot.slane %v1078, %v1093
        %v1096 = vunpack.c.l.s4 1966171168
        %v1097 = vunpack.c.0.s8 %v1096
        %v1098 = vlaneseq
        %v1099 = vshrl.u32 %v1098, 7
        %v1100 = vsub.s32 %v1097, %v1099
        %v1101 = vrot.slane %v1085, %v1100
        %v1103 = vunpack.c.l.s4 1966171168
        %v1104 = vunpack.c.0.s8 %v1103
        %v1105 = vlaneseq
        %v1106 = vshrl.u32 %v1105, 7
        %v1107 = vsub.s32 %v1104, %v1106
        %v1108 = vrot.slane %v1086, %v1107
        %v1110 = vunpack.c.l.s4 1966171168
        %v1111 = vunpack.c.0.s8 %v1110
        %v1112 = vlaneseq
        %v1113 = vshrl.u32 %v1112, 7
        %v1114 = vsub.s32 %v1111, %v1113
        %v1115 = vrot.slane %v1087, %v1114
        %v1116 = vcombine.high %v1094, %v1094
        %v1117 = vcombine.high %v1101, %v1101
        %v1118 = vcombine.high %v1108, %v1108
        %v1119 = vcombine.high %v1115, %v1115
        %v1120 = vcombine.high %v220, %v220
        %v1122 = vunpack.c.l.s4 1966171168
        %v1123 = vunpack.c.0.s8 %v1122
        %v1124 = vlaneseq
        %v1125 = vshrl.u32 %v1124, 7
        %v1126 = vsub.s32 %v1123, %v1125
        %v1127 = vrot.slane %v220, %v1126
        %v1129 = vunpack.c.l.s4 1966171168
        %v1130 = vunpack.c.0.s8 %v1129
        %v1131 = vlaneseq
        %v1132 = vshrl.u32 %v1131, 7
        %v1133 = vsub.s32 %v1130, %v1132
        %v1134 = vrot.slane %v1120, %v1133
        %v1135 = vcombine.high %v1127, %v1127
        %v1136 = vcombine.high %v1134, %v1134
        %v1138 = vunpack.c.l.s4 1966171168
        %v1139 = vunpack.c.0.s8 %v1138
        %v1140 = vlaneseq
        %v1141 = vshrl.u32 %v1140, 7
        %v1142 = vsub.s32 %v1139, %v1141
        %v1143 = vrot.slane %v1127, %v1142
        %v1145 = vunpack.c.l.s4 1966171168
        %v1146 = vunpack.c.0.s8 %v1145
        %v1147 = vlaneseq
        %v1148 = vshrl.u32 %v1147, 7
        %v1149 = vsub.s32 %v1146, %v1148
        %v1150 = vrot.slane %v1134, %v1149
        %v1152 = vunpack.c.l.s4 1966171168
        %v1153 = vunpack.c.0.s8 %v1152
        %v1154 = vlaneseq
        %v1155 = vshrl.u32 %v1154, 7
        %v1156 = vsub.s32 %v1153, %v1155
        %v1157 = vrot.slane %v1135, %v1156
        %v1159 = vunpack.c.l.s4 1966171168
        %v1160 = vunpack.c.0.s8 %v1159
        %v1161 = vlaneseq
        %v1162 = vshrl.u32 %v1161, 7
        %v1163 = vsub.s32 %v1160, %v1162
        %v1164 = vrot.slane %v1136, %v1163
        %v1165 = vcombine.high %v1143, %v1143
        %v1166 = vcombine.high %v1150, %v1150
        %v1167 = vcombine.high %v1157, %v1157
        %v1168 = vcombine.high %v221, %v221
        %v1170 = vunpack.c.l.s4 1966171168
        %v1171 = vunpack.c.0.s8 %v1170
        %v1172 = vlaneseq
        %v1173 = vshrl.u32 %v1172, 7
        %v1174 = vsub.s32 %v1171, %v1173
        %v1175 = vrot.slane %v221, %v1174
        %v1177 = vunpack.c.l.s4 1966171168
        %v1178 = vunpack.c.0.s8 %v1177
        %v1179 = vlaneseq
        %v1180 = vshrl.u32 %v1179, 7
        %v1181 = vsub.s32 %v1178, %v1180
        %v1182 = vrot.slane %v1168, %v1181
        %v1183 = vcombine.high %v1175, %v1175
        %v1184 = vcombine.high %v1182, %v1182
        %v1186 = vunpack.c.l.s4 1966171168
        %v1187 = vunpack.c.0.s8 %v1186
        %v1188 = vlaneseq
        %v1189 = vshrl.u32 %v1188, 7
        %v1190 = vsub.s32 %v1187, %v1189
        %v1191 = vrot.slane %v1175, %v1190
        %v1193 = vunpack.c.l.s4 1966171168
        %v1194 = vunpack.c.0.s8 %v1193
        %v1195 = vlaneseq
        %v1196 = vshrl.u32 %v1195, 7
        %v1197 = vsub.s32 %v1194, %v1196
        %v1198 = vrot.slane %v1182, %v1197
        %v1200 = vunpack.c.l.s4 1966171168
        %v1201 = vunpack.c.0.s8 %v1200
        %v1202 = vlaneseq
        %v1203 = vshrl.u32 %v1202, 7
        %v1204 = vsub.s32 %v1201, %v1203
        %v1205 = vrot.slane %v1183, %v1204
        %v1207 = vunpack.c.l.s4 1966171168
        %v1208 = vunpack.c.0.s8 %v1207
        %v1209 = vlaneseq
        %v1210 = vshrl.u32 %v1209, 7
        %v1211 = vsub.s32 %v1208, %v1210
        %v1212 = vrot.slane %v1184, %v1211
        %v1213 = vcombine.high %v1191, %v1191
        %v1214 = vcombine.high %v1198, %v1198
        %v1215 = vcombine.high %v1205, %v1205
        %v1216 = vcombine.high %v1212, %v1212
        %v1217 = vcombine.high %v222, %v222
        %v1219 = vunpack.c.l.s4 1966171168
        %v1220 = vunpack.c.0.s8 %v1219
        %v1221 = vlaneseq
        %v1222 = vshrl.u32 %v1221, 7
        %v1223 = vsub.s32 %v1220, %v1222
        %v1224 = vrot.slane %v222, %v1223
        %v1226 = vunpack.c.l.s4 1966171168
        %v1227 = vunpack.c.0.s8 %v1226
        %v1228 = vlaneseq
        %v1229 = vshrl.u32 %v1228, 7
        %v1230 = vsub.s32 %v1227, %v1229
        %v1231 = vrot.slane %v1217, %v1230
        %v1232 = vcombine.high %v1224, %v1224
        %v1233 = vcombine.high %v1231, %v1231
        %v1235 = vunpack.c.l.s4 1966171168
        %v1236 = vunpack.c.0.s8 %v1235
        %v1237 = vlaneseq
        %v1238 = vshrl.u32 %v1237, 7
        %v1239 = vsub.s32 %v1236, %v1238
        %v1240 = vrot.slane %v1224, %v1239
        %v1242 = vunpack.c.l.s4 1966171168
        %v1243 = vunpack.c.0.s8 %v1242
        %v1244 = vlaneseq
        %v1245 = vshrl.u32 %v1244, 7
        %v1246 = vsub.s32 %v1243, %v1245
        %v1247 = vrot.slane %v1231, %v1246
        %v1249 = vunpack.c.l.s4 1966171168
        %v1250 = vunpack.c.0.s8 %v1249
        %v1251 = vlaneseq
        %v1252 = vshrl.u32 %v1251, 7
        %v1253 = vsub.s32 %v1250, %v1252
        %v1254 = vrot.slane %v1232, %v1253
        %v1256 = vunpack.c.l.s4 1966171168
        %v1257 = vunpack.c.0.s8 %v1256
        %v1258 = vlaneseq
        %v1259 = vshrl.u32 %v1258, 7
        %v1260 = vsub.s32 %v1257, %v1259
        %v1261 = vrot.slane %v1233, %v1260
        %v1262 = vcombine.high %v1240, %v1240
        %v1263 = vcombine.high %v1247, %v1247
        %v1264 = vcombine.high %v1254, %v1254
        %v1265 = vcombine.low %v512, %v526
        %v1266 = vcombine.low %v534, %v536
        %v1267 = vcombine.low %v519, %v533
        %v1268 = vcombine.low %v535, %v537
        %v1270 = vunpack.c.l.s4 1966171168
        %v1271 = vunpack.c.0.s8 %v1270
        %v1272 = vlaneseq
        %v1273 = vshrl.u32 %v1272, 7
        %v1274 = vsub.s32 %v1271, %v1273
        %v1275 = vrot.slane %v1265, %v1274
        %v1277 = vunpack.c.l.s4 1966171168
        %v1278 = vunpack.c.0.s8 %v1277
        %v1279 = vlaneseq
        %v1280 = vshrl.u32 %v1279, 7
        %v1281 = vsub.s32 %v1278, %v1280
        %v1282 = vrot.slane %v1266, %v1281
        %v1284 = vunpack.c.l.s4 1966171168
        %v1285 = vunpack.c.0.s8 %v1284
        %v1286 = vlaneseq
        %v1287 = vshrl.u32 %v1286, 7
        %v1288 = vsub.s32 %v1285, %v1287
        %v1289 = vrot.slane %v1267, %v1288
        %v1291 = vunpack.c.l.s4 1966171168
        %v1292 = vunpack.c.0.s8 %v1291
        %v1293 = vlaneseq
        %v1294 = vshrl.u32 %v1293, 7
        %v1295 = vsub.s32 %v1292, %v1294
        %v1296 = vrot.slane %v1268, %v1295
        %v1297 = vcombine.low %v1275, %v1282
        %v1298 = vcombine.low %v1289, %v1296
        %v1300 = vunpack.c.l.s4 1966171168
        %v1301 = vunpack.c.0.s8 %v1300
        %v1302 = vlaneseq
        %v1303 = vshrl.u32 %v1302, 7
        %v1304 = vsub.s32 %v1301, %v1303
        %v1305 = vrot.slane %v1297, %v1304
        %v1307 = vunpack.c.l.s4 1966171168
        %v1308 = vunpack.c.0.s8 %v1307
        %v1309 = vlaneseq
        %v1310 = vshrl.u32 %v1309, 7
        %v1311 = vsub.s32 %v1308, %v1310
        %v1312 = vrot.slane %v1298, %v1311
        %v1313 = vcombine.low %v1305, %v1312
        %v1314 = vcombine.low %v561, %v575
        %v1315 = vcombine.low %v583, %v585
        %v1316 = vcombine.low %v568, %v582
        %v1317 = vcombine.low %v584, %v609
        %v1319 = vunpack.c.l.s4 1966171168
        %v1320 = vunpack.c.0.s8 %v1319
        %v1321 = vlaneseq
        %v1322 = vshrl.u32 %v1321, 7
        %v1323 = vsub.s32 %v1320, %v1322
        %v1324 = vrot.slane %v1314, %v1323
        %v1326 = vunpack.c.l.s4 1966171168
        %v1327 = vunpack.c.0.s8 %v1326
        %v1328 = vlaneseq
        %v1329 = vshrl.u32 %v1328, 7
        %v1330 = vsub.s32 %v1327, %v1329
        %v1331 = vrot.slane %v1315, %v1330
        %v1333 = vunpack.c.l.s4 1966171168
        %v1334 = vunpack.c.0.s8 %v1333
        %v1335 = vlaneseq
        %v1336 = vshrl.u32 %v1335, 7
        %v1337 = vsub.s32 %v1334, %v1336
        %v1338 = vrot.slane %v1316, %v1337
        %v1340 = vunpack.c.l.s4 1966171168
        %v1341 = vunpack.c.0.s8 %v1340
        %v1342 = vlaneseq
        %v1343 = vshrl.u32 %v1342, 7
        %v1344 = vsub.s32 %v1341, %v1343
        %v1345 = vrot.slane %v1317, %v1344
        %v1346 = vcombine.low %v1324, %v1331
        %v1347 = vcombine.low %v1338, %v1345
        %v1349 = vunpack.c.l.s4 1966171168
        %v1350 = vunpack.c.0.s8 %v1349
        %v1351 = vlaneseq
        %v1352 = vshrl.u32 %v1351, 7
        %v1353 = vsub.s32 %v1350, %v1352
        %v1354 = vrot.slane %v1346, %v1353
        %v1356 = vunpack.c.l.s4 1966171168
        %v1357 = vunpack.c.0.s8 %v1356
        %v1358 = vlaneseq
        %v1359 = vshrl.u32 %v1358, 7
        %v1360 = vsub.s32 %v1357, %v1359
        %v1361 = vrot.slane %v1347, %v1360
        %v1362 = vcombine.low %v1354, %v1361
        %v1363 = vcombine.low %v623, %v631
        %v1364 = vcombine.low %v633, %v616
        %v1365 = vcombine.low %v630, %v632
        %v1366 = vcombine.low %v634, %v658
        %v1368 = vunpack.c.l.s4 1966171168
        %v1369 = vunpack.c.0.s8 %v1368
        %v1370 = vlaneseq
        %v1371 = vshrl.u32 %v1370, 7
        %v1372 = vsub.s32 %v1369, %v1371
        %v1373 = vrot.slane %v1363, %v1372
        %v1375 = vunpack.c.l.s4 1966171168
        %v1376 = vunpack.c.0.s8 %v1375
        %v1377 = vlaneseq
        %v1378 = vshrl.u32 %v1377, 7
        %v1379 = vsub.s32 %v1376, %v1378
        %v1380 = vrot.slane %v1364, %v1379
        %v1382 = vunpack.c.l.s4 1966171168
        %v1383 = vunpack.c.0.s8 %v1382
        %v1384 = vlaneseq
        %v1385 = vshrl.u32 %v1384, 7
        %v1386 = vsub.s32 %v1383, %v1385
        %v1387 = vrot.slane %v1365, %v1386
        %v1389 = vunpack.c.l.s4 1966171168
        %v1390 = vunpack.c.0.s8 %v1389
        %v1391 = vlaneseq
        %v1392 = vshrl.u32 %v1391, 7
        %v1393 = vsub.s32 %v1390, %v1392
        %v1394 = vrot.slane %v1366, %v1393
        %v1395 = vcombine.low %v1373, %v1380
        %v1396 = vcombine.low %v1387, %v1394
        %v1398 = vunpack.c.l.s4 1966171168
        %v1399 = vunpack.c.0.s8 %v1398
        %v1400 = vlaneseq
        %v1401 = vshrl.u32 %v1400, 7
        %v1402 = vsub.s32 %v1399, %v1401
        %v1403 = vrot.slane %v1395, %v1402
        %v1405 = vunpack.c.l.s4 1966171168
        %v1406 = vunpack.c.0.s8 %v1405
        %v1407 = vlaneseq
        %v1408 = vshrl.u32 %v1407, 7
        %v1409 = vsub.s32 %v1406, %v1408
        %v1410 = vrot.slane %v1396, %v1409
        %v1411 = vcombine.low %v1403, %v1410
        %v1412 = vcombine.low %v672, %v680
        %v1413 = vcombine.low %v682, %v665
        %v1414 = vcombine.low %v679, %v681
        %v1415 = vcombine.low %v706, %v720
        %v1417 = vunpack.c.l.s4 1966171168
        %v1418 = vunpack.c.0.s8 %v1417
        %v1419 = vlaneseq
        %v1420 = vshrl.u32 %v1419, 7
        %v1421 = vsub.s32 %v1418, %v1420
        %v1422 = vrot.slane %v1412, %v1421
        %v1424 = vunpack.c.l.s4 1966171168
        %v1425 = vunpack.c.0.s8 %v1424
        %v1426 = vlaneseq
        %v1427 = vshrl.u32 %v1426, 7
        %v1428 = vsub.s32 %v1425, %v1427
        %v1429 = vrot.slane %v1413, %v1428
        %v1431 = vunpack.c.l.s4 1966171168
        %v1432 = vunpack.c.0.s8 %v1431
        %v1433 = vlaneseq
        %v1434 = vshrl.u32 %v1433, 7
        %v1435 = vsub.s32 %v1432, %v1434
        %v1436 = vrot.slane %v1414, %v1435
        %v1438 = vunpack.c.l.s4 1966171168
        %v1439 = vunpack.c.0.s8 %v1438
        %v1440 = vlaneseq
        %v1441 = vshrl.u32 %v1440, 7
        %v1442 = vsub.s32 %v1439, %v1441
        %v1443 = vrot.slane %v1415, %v1442
        %v1444 = vcombine.low %v1422, %v1429
        %v1445 = vcombine.low %v1436, %v1443
        %v1447 = vunpack.c.l.s4 1966171168
        %v1448 = vunpack.c.0.s8 %v1447
        %v1449 = vlaneseq
        %v1450 = vshrl.u32 %v1449, 7
        %v1451 = vsub.s32 %v1448, %v1450
        %v1452 = vrot.slane %v1444, %v1451
        %v1454 = vunpack.c.l.s4 1966171168
        %v1455 = vunpack.c.0.s8 %v1454
        %v1456 = vlaneseq
        %v1457 = vshrl.u32 %v1456, 7
        %v1458 = vsub.s32 %v1455, %v1457
        %v1459 = vrot.slane %v1445, %v1458
        %v1460 = vcombine.low %v1452, %v1459
        %v1461 = vcombine.low %v728, %v730
        %v1462 = vcombine.low %v713, %v727
        %v1463 = vcombine.low %v729, %v731
        %v1464 = vcombine.low %v755, %v769
        %v1466 = vunpack.c.l.s4 1966171168
        %v1467 = vunpack.c.0.s8 %v1466
        %v1468 = vlaneseq
        %v1469 = vshrl.u32 %v1468, 7
        %v1470 = vsub.s32 %v1467, %v1469
        %v1471 = vrot.slane %v1461, %v1470
        %v1473 = vunpack.c.l.s4 1966171168
        %v1474 = vunpack.c.0.s8 %v1473
        %v1475 = vlaneseq
        %v1476 = vshrl.u32 %v1475, 7
        %v1477 = vsub.s32 %v1474, %v1476
        %v1478 = vrot.slane %v1462, %v1477
        %v1480 = vunpack.c.l.s4 1966171168
        %v1481 = vunpack.c.0.s8 %v1480
        %v1482 = vlaneseq
        %v1483 = vshrl.u32 %v1482, 7
        %v1484 = vsub.s32 %v1481, %v1483
        %v1485 = vrot.slane %v1463, %v1484
        %v1487 = vunpack.c.l.s4 1966171168
        %v1488 = vunpack.c.0.s8 %v1487
        %v1489 = vlaneseq
        %v1490 = vshrl.u32 %v1489, 7
        %v1491 = vsub.s32 %v1488, %v1490
        %v1492 = vrot.slane %v1464, %v1491
        %v1493 = vcombine.low %v1471, %v1478
        %v1494 = vcombine.low %v1485, %v1492
        %v1496 = vunpack.c.l.s4 1966171168
        %v1497 = vunpack.c.0.s8 %v1496
        %v1498 = vlaneseq
        %v1499 = vshrl.u32 %v1498, 7
        %v1500 = vsub.s32 %v1497, %v1499
        %v1501 = vrot.slane %v1493, %v1500
        %v1503 = vunpack.c.l.s4 1966171168
        %v1504 = vunpack.c.0.s8 %v1503
        %v1505 = vlaneseq
        %v1506 = vshrl.u32 %v1505, 7
        %v1507 = vsub.s32 %v1504, %v1506
        %v1508 = vrot.slane %v1494, %v1507
        %v1509 = vcombine.low %v1501, %v1508
        %v1510 = vcombine.low %v777, %v779
        %v1511 = vcombine.low %v762, %v776
        %v1512 = vcombine.low %v778, %v803
        %v1513 = vcombine.low %v817, %v825
        %v1515 = vunpack.c.l.s4 1966171168
        %v1516 = vunpack.c.0.s8 %v1515
        %v1517 = vlaneseq
        %v1518 = vshrl.u32 %v1517, 7
        %v1519 = vsub.s32 %v1516, %v1518
        %v1520 = vrot.slane %v1510, %v1519
        %v1522 = vunpack.c.l.s4 1966171168
        %v1523 = vunpack.c.0.s8 %v1522
        %v1524 = vlaneseq
        %v1525 = vshrl.u32 %v1524, 7
        %v1526 = vsub.s32 %v1523, %v1525
        %v1527 = vrot.slane %v1511, %v1526
        %v1529 = vunpack.c.l.s4 1966171168
        %v1530 = vunpack.c.0.s8 %v1529
        %v1531 = vlaneseq
        %v1532 = vshrl.u32 %v1531, 7
        %v1533 = vsub.s32 %v1530, %v1532
        %v1534 = vrot.slane %v1512, %v1533
        %v1536 = vunpack.c.l.s4 1966171168
        %v1537 = vunpack.c.0.s8 %v1536
        %v1538 = vlaneseq
        %v1539 = vshrl.u32 %v1538, 7
        %v1540 = vsub.s32 %v1537, %v1539
        %v1541 = vrot.slane %v1513, %v1540
        %v1542 = vcombine.low %v1520, %v1527
        %v1543 = vcombine.low %v1534, %v1541
        %v1545 = vunpack.c.l.s4 1966171168
        %v1546 = vunpack.c.0.s8 %v1545
        %v1547 = vlaneseq
        %v1548 = vshrl.u32 %v1547, 7
        %v1549 = vsub.s32 %v1546, %v1548
        %v1550 = vrot.slane %v1542, %v1549
        %v1552 = vunpack.c.l.s4 1966171168
        %v1553 = vunpack.c.0.s8 %v1552
        %v1554 = vlaneseq
        %v1555 = vshrl.u32 %v1554, 7
        %v1556 = vsub.s32 %v1553, %v1555
        %v1557 = vrot.slane %v1543, %v1556
        %v1558 = vcombine.low %v1550, %v1557
        %v1559 = vcombine.low %v827, %v810
        %v1560 = vcombine.low %v824, %v826
        %v1561 = vcombine.low %v828, %v852
        %v1562 = vcombine.low %v866, %v874
        %v1564 = vunpack.c.l.s4 1966171168
        %v1565 = vunpack.c.0.s8 %v1564
        %v1566 = vlaneseq
        %v1567 = vshrl.u32 %v1566, 7
        %v1568 = vsub.s32 %v1565, %v1567
        %v1569 = vrot.slane %v1559, %v1568
        %v1571 = vunpack.c.l.s4 1966171168
        %v1572 = vunpack.c.0.s8 %v1571
        %v1573 = vlaneseq
        %v1574 = vshrl.u32 %v1573, 7
        %v1575 = vsub.s32 %v1572, %v1574
        %v1576 = vrot.slane %v1560, %v1575
        %v1578 = vunpack.c.l.s4 1966171168
        %v1579 = vunpack.c.0.s8 %v1578
        %v1580 = vlaneseq
        %v1581 = vshrl.u32 %v1580, 7
        %v1582 = vsub.s32 %v1579, %v1581
        %v1583 = vrot.slane %v1561, %v1582
        %v1585 = vunpack.c.l.s4 1966171168
        %v1586 = vunpack.c.0.s8 %v1585
        %v1587 = vlaneseq
        %v1588 = vshrl.u32 %v1587, 7
        %v1589 = vsub.s32 %v1586, %v1588
        %v1590 = vrot.slane %v1562, %v1589
        %v1591 = vcombine.low %v1569, %v1576
        %v1592 = vcombine.low %v1583, %v1590
        %v1594 = vunpack.c.l.s4 1966171168
        %v1595 = vunpack.c.0.s8 %v1594
        %v1596 = vlaneseq
        %v1597 = vshrl.u32 %v1596, 7
        %v1598 = vsub.s32 %v1595, %v1597
        %v1599 = vrot.slane %v1591, %v1598
        %v1601 = vunpack.c.l.s4 1966171168
        %v1602 = vunpack.c.0.s8 %v1601
        %v1603 = vlaneseq
        %v1604 = vshrl.u32 %v1603, 7
        %v1605 = vsub.s32 %v1602, %v1604
        %v1606 = vrot.slane %v1592, %v1605
        %v1607 = vcombine.low %v1599, %v1606
        %v1608 = vcombine.low %v876, %v859
        %v1609 = vcombine.low %v873, %v875
        %v1610 = vcombine.low %v900, %v914
        %v1611 = vcombine.low %v922, %v924
        %v1613 = vunpack.c.l.s4 1966171168
        %v1614 = vunpack.c.0.s8 %v1613
        %v1615 = vlaneseq
        %v1616 = vshrl.u32 %v1615, 7
        %v1617 = vsub.s32 %v1614, %v1616
        %v1618 = vrot.slane %v1608, %v1617
        %v1620 = vunpack.c.l.s4 1966171168
        %v1621 = vunpack.c.0.s8 %v1620
        %v1622 = vlaneseq
        %v1623 = vshrl.u32 %v1622, 7
        %v1624 = vsub.s32 %v1621, %v1623
        %v1625 = vrot.slane %v1609, %v1624
        %v1627 = vunpack.c.l.s4 1966171168
        %v1628 = vunpack.c.0.s8 %v1627
        %v1629 = vlaneseq
        %v1630 = vshrl.u32 %v1629, 7
        %v1631 = vsub.s32 %v1628, %v1630
        %v1632 = vrot.slane %v1610, %v1631
        %v1634 = vunpack.c.l.s4 1966171168
        %v1635 = vunpack.c.0.s8 %v1634
        %v1636 = vlaneseq
        %v1637 = vshrl.u32 %v1636, 7
        %v1638 = vsub.s32 %v1635, %v1637
        %v1639 = vrot.slane %v1611, %v1638
        %v1640 = vcombine.low %v1618, %v1625
        %v1641 = vcombine.low %v1632, %v1639
        %v1643 = vunpack.c.l.s4 1966171168
        %v1644 = vunpack.c.0.s8 %v1643
        %v1645 = vlaneseq
        %v1646 = vshrl.u32 %v1645, 7
        %v1647 = vsub.s32 %v1644, %v1646
        %v1648 = vrot.slane %v1640, %v1647
        %v1650 = vunpack.c.l.s4 1966171168
        %v1651 = vunpack.c.0.s8 %v1650
        %v1652 = vlaneseq
        %v1653 = vshrl.u32 %v1652, 7
        %v1654 = vsub.s32 %v1651, %v1653
        %v1655 = vrot.slane %v1641, %v1654
        %v1656 = vcombine.low %v1648, %v1655
        %v1657 = vcombine.low %v907, %v921
        %v1658 = vcombine.low %v923, %v925
        %v1659 = vcombine.low %v949, %v963
        %v1660 = vcombine.low %v971, %v973
        %v1662 = vunpack.c.l.s4 1966171168
        %v1663 = vunpack.c.0.s8 %v1662
        %v1664 = vlaneseq
        %v1665 = vshrl.u32 %v1664, 7
        %v1666 = vsub.s32 %v1663, %v1665
        %v1667 = vrot.slane %v1657, %v1666
        %v1669 = vunpack.c.l.s4 1966171168
        %v1670 = vunpack.c.0.s8 %v1669
        %v1671 = vlaneseq
        %v1672 = vshrl.u32 %v1671, 7
        %v1673 = vsub.s32 %v1670, %v1672
        %v1674 = vrot.slane %v1658, %v1673
        %v1676 = vunpack.c.l.s4 1966171168
        %v1677 = vunpack.c.0.s8 %v1676
        %v1678 = vlaneseq
        %v1679 = vshrl.u32 %v1678, 7
        %v1680 = vsub.s32 %v1677, %v1679
        %v1681 = vrot.slane %v1659, %v1680
        %v1683 = vunpack.c.l.s4 1966171168
        %v1684 = vunpack.c.0.s8 %v1683
        %v1685 = vlaneseq
        %v1686 = vshrl.u32 %v1685, 7
        %v1687 = vsub.s32 %v1684, %v1686
        %v1688 = vrot.slane %v1660, %v1687
        %v1689 = vcombine.low %v1667, %v1674
        %v1690 = vcombine.low %v1681, %v1688
        %v1692 = vunpack.c.l.s4 1966171168
        %v1693 = vunpack.c.0.s8 %v1692
        %v1694 = vlaneseq
        %v1695 = vshrl.u32 %v1694, 7
        %v1696 = vsub.s32 %v1693, %v1695
        %v1697 = vrot.slane %v1689, %v1696
        %v1699 = vunpack.c.l.s4 1966171168
        %v1700 = vunpack.c.0.s8 %v1699
        %v1701 = vlaneseq
        %v1702 = vshrl.u32 %v1701, 7
        %v1703 = vsub.s32 %v1700, %v1702
        %v1704 = vrot.slane %v1690, %v1703
        %v1705 = vcombine.low %v1697, %v1704
        %v1706 = vcombine.low %v956, %v970
        %v1707 = vcombine.low %v972, %v997
        %v1708 = vcombine.low %v1011, %v1019
        %v1709 = vcombine.low %v1021, %v1004
        %v1711 = vunpack.c.l.s4 1966171168
        %v1712 = vunpack.c.0.s8 %v1711
        %v1713 = vlaneseq
        %v1714 = vshrl.u32 %v1713, 7
        %v1715 = vsub.s32 %v1712, %v1714
        %v1716 = vrot.slane %v1706, %v1715
        %v1718 = vunpack.c.l.s4 1966171168
        %v1719 = vunpack.c.0.s8 %v1718
        %v1720 = vlaneseq
        %v1721 = vshrl.u32 %v1720, 7
        %v1722 = vsub.s32 %v1719, %v1721
        %v1723 = vrot.slane %v1707, %v1722
        %v1725 = vunpack.c.l.s4 1966171168
        %v1726 = vunpack.c.0.s8 %v1725
        %v1727 = vlaneseq
        %v1728 = vshrl.u32 %v1727, 7
        %v1729 = vsub.s32 %v1726, %v1728
        %v1730 = vrot.slane %v1708, %v1729
        %v1732 = vunpack.c.l.s4 1966171168
        %v1733 = vunpack.c.0.s8 %v1732
        %v1734 = vlaneseq
        %v1735 = vshrl.u32 %v1734, 7
        %v1736 = vsub.s32 %v1733, %v1735
        %v1737 = vrot.slane %v1709, %v1736
        %v1738 = vcombine.low %v1716, %v1723
        %v1739 = vcombine.low %v1730, %v1737
        %v1741 = vunpack.c.l.s4 1966171168
        %v1742 = vunpack.c.0.s8 %v1741
        %v1743 = vlaneseq
        %v1744 = vshrl.u32 %v1743, 7
        %v1745 = vsub.s32 %v1742, %v1744
        %v1746 = vrot.slane %v1738, %v1745
        %v1748 = vunpack.c.l.s4 1966171168
        %v1749 = vunpack.c.0.s8 %v1748
        %v1750 = vlaneseq
        %v1751 = vshrl.u32 %v1750, 7
        %v1752 = vsub.s32 %v1749, %v1751
        %v1753 = vrot.slane %v1739, %v1752
        %v1754 = vcombine.low %v1746, %v1753
        %v1755 = vcombine.low %v1018, %v1020
        %v1756 = vcombine.low %v1022, %v1046
        %v1757 = vcombine.low %v1060, %v1068
        %v1758 = vcombine.low %v1070, %v1053
        %v1760 = vunpack.c.l.s4 1966171168
        %v1761 = vunpack.c.0.s8 %v1760
        %v1762 = vlaneseq
        %v1763 = vshrl.u32 %v1762, 7
        %v1764 = vsub.s32 %v1761, %v1763
        %v1765 = vrot.slane %v1755, %v1764
        %v1767 = vunpack.c.l.s4 1966171168
        %v1768 = vunpack.c.0.s8 %v1767
        %v1769 = vlaneseq
        %v1770 = vshrl.u32 %v1769, 7
        %v1771 = vsub.s32 %v1768, %v1770
        %v1772 = vrot.slane %v1756, %v1771
        %v1774 = vunpack.c.l.s4 1966171168
        %v1775 = vunpack.c.0.s8 %v1774
        %v1776 = vlaneseq
        %v1777 = vshrl.u32 %v1776, 7
        %v1778 = vsub.s32 %v1775, %v1777
        %v1779 = vrot.slane %v1757, %v1778
        %v1781 = vunpack.c.l.s4 1966171168
        %v1782 = vunpack.c.0.s8 %v1781
        %v1783 = vlaneseq
        %v1784 = vshrl.u32 %v1783, 7
        %v1785 = vsub.s32 %v1782, %v1784
        %v1786 = vrot.slane %v1758, %v1785
        %v1787 = vcombine.low %v1765, %v1772
        %v1788 = vcombine.low %v1779, %v1786
        %v1790 = vunpack.c.l.s4 1966171168
        %v1791 = vunpack.c.0.s8 %v1790
        %v1792 = vlaneseq
        %v1793 = vshrl.u32 %v1792, 7
        %v1794 = vsub.s32 %v1791, %v1793
        %v1795 = vrot.slane %v1787, %v1794
        %v1797 = vunpack.c.l.s4 1966171168
        %v1798 = vunpack.c.0.s8 %v1797
        %v1799 = vlaneseq
        %v1800 = vshrl.u32 %v1799, 7
        %v1801 = vsub.s32 %v1798, %v1800
        %v1802 = vrot.slane %v1788, %v1801
        %v1803 = vcombine.low %v1795, %v1802
        %v1804 = vcombine.low %v1067, %v1069
        %v1805 = vcombine.low %v1094, %v1108
        %v1806 = vcombine.low %v1116, %v1118
        %v1807 = vcombine.low %v1101, %v1115
        %v1809 = vunpack.c.l.s4 1966171168
        %v1810 = vunpack.c.0.s8 %v1809
        %v1811 = vlaneseq
        %v1812 = vshrl.u32 %v1811, 7
        %v1813 = vsub.s32 %v1810, %v1812
        %v1814 = vrot.slane %v1804, %v1813
        %v1816 = vunpack.c.l.s4 1966171168
        %v1817 = vunpack.c.0.s8 %v1816
        %v1818 = vlaneseq
        %v1819 = vshrl.u32 %v1818, 7
        %v1820 = vsub.s32 %v1817, %v1819
        %v1821 = vrot.slane %v1805, %v1820
        %v1823 = vunpack.c.l.s4 1966171168
        %v1824 = vunpack.c.0.s8 %v1823
        %v1825 = vlaneseq
        %v1826 = vshrl.u32 %v1825, 7
        %v1827 = vsub.s32 %v1824, %v1826
        %v1828 = vrot.slane %v1806, %v1827
        %v1830 = vunpack.c.l.s4 1966171168
        %v1831 = vunpack.c.0.s8 %v1830
        %v1832 = vlaneseq
        %v1833 = vshrl.u32 %v1832, 7
        %v1834 = vsub.s32 %v1831, %v1833
        %v1835 = vrot.slane %v1807, %v1834
        %v1836 = vcombine.low %v1814, %v1821
        %v1837 = vcombine.low %v1828, %v1835
        %v1839 = vunpack.c.l.s4 1966171168
        %v1840 = vunpack.c.0.s8 %v1839
        %v1841 = vlaneseq
        %v1842 = vshrl.u32 %v1841, 7
        %v1843 = vsub.s32 %v1840, %v1842
        %v1844 = vrot.slane %v1836, %v1843
        %v1846 = vunpack.c.l.s4 1966171168
        %v1847 = vunpack.c.0.s8 %v1846
        %v1848 = vlaneseq
        %v1849 = vshrl.u32 %v1848, 7
        %v1850 = vsub.s32 %v1847, %v1849
        %v1851 = vrot.slane %v1837, %v1850
        %v1852 = vcombine.low %v1844, %v1851
        %v1853 = vcombine.low %v1117, %v1119
        %v1854 = vcombine.low %v1143, %v1157
        %v1855 = vcombine.low %v1165, %v1167
        %v1856 = vcombine.low %v1150, %v1164
        %v1858 = vunpack.c.l.s4 1966171168
        %v1859 = vunpack.c.0.s8 %v1858
        %v1860 = vlaneseq
        %v1861 = vshrl.u32 %v1860, 7
        %v1862 = vsub.s32 %v1859, %v1861
        %v1863 = vrot.slane %v1853, %v1862
        %v1865 = vunpack.c.l.s4 1966171168
        %v1866 = vunpack.c.0.s8 %v1865
        %v1867 = vlaneseq
        %v1868 = vshrl.u32 %v1867, 7
        %v1869 = vsub.s32 %v1866, %v1868
        %v1870 = vrot.slane %v1854, %v1869
        %v1872 = vunpack.c.l.s4 1966171168
        %v1873 = vunpack.c.0.s8 %v1872
        %v1874 = vlaneseq
        %v1875 = vshrl.u32 %v1874, 7
        %v1876 = vsub.s32 %v1873, %v1875
        %v1877 = vrot.slane %v1855, %v1876
        %v1879 = vunpack.c.l.s4 1966171168
        %v1880 = vunpack.c.0.s8 %v1879
        %v1881 = vlaneseq
        %v1882 = vshrl.u32 %v1881, 7
        %v1883 = vsub.s32 %v1880, %v1882
        %v1884 = vrot.slane %v1856, %v1883
        %v1885 = vcombine.low %v1863, %v1870
        %v1886 = vcombine.low %v1877, %v1884
        %v1888 = vunpack.c.l.s4 1966171168
        %v1889 = vunpack.c.0.s8 %v1888
        %v1890 = vlaneseq
        %v1891 = vshrl.u32 %v1890, 7
        %v1892 = vsub.s32 %v1889, %v1891
        %v1893 = vrot.slane %v1885, %v1892
        %v1895 = vunpack.c.l.s4 1966171168
        %v1896 = vunpack.c.0.s8 %v1895
        %v1897 = vlaneseq
        %v1898 = vshrl.u32 %v1897, 7
        %v1899 = vsub.s32 %v1896, %v1898
        %v1900 = vrot.slane %v1886, %v1899
        %v1901 = vcombine.low %v1893, %v1900
        %v1902 = vcombine.low %v1166, %v1191
        %v1903 = vcombine.low %v1205, %v1213
        %v1904 = vcombine.low %v1215, %v1198
        %v1905 = vcombine.low %v1212, %v1214
        %v1907 = vunpack.c.l.s4 1966171168
        %v1908 = vunpack.c.0.s8 %v1907
        %v1909 = vlaneseq
        %v1910 = vshrl.u32 %v1909, 7
        %v1911 = vsub.s32 %v1908, %v1910
        %v1912 = vrot.slane %v1902, %v1911
        %v1914 = vunpack.c.l.s4 1966171168
        %v1915 = vunpack.c.0.s8 %v1914
        %v1916 = vlaneseq
        %v1917 = vshrl.u32 %v1916, 7
        %v1918 = vsub.s32 %v1915, %v1917
        %v1919 = vrot.slane %v1903, %v1918
        %v1921 = vunpack.c.l.s4 1966171168
        %v1922 = vunpack.c.0.s8 %v1921
        %v1923 = vlaneseq
        %v1924 = vshrl.u32 %v1923, 7
        %v1925 = vsub.s32 %v1922, %v1924
        %v1926 = vrot.slane %v1904, %v1925
        %v1928 = vunpack.c.l.s4 1966171168
        %v1929 = vunpack.c.0.s8 %v1928
        %v1930 = vlaneseq
        %v1931 = vshrl.u32 %v1930, 7
        %v1932 = vsub.s32 %v1929, %v1931
        %v1933 = vrot.slane %v1905, %v1932
        %v1934 = vcombine.low %v1912, %v1919
        %v1935 = vcombine.low %v1926, %v1933
        %v1937 = vunpack.c.l.s4 1966171168
        %v1938 = vunpack.c.0.s8 %v1937
        %v1939 = vlaneseq
        %v1940 = vshrl.u32 %v1939, 7
        %v1941 = vsub.s32 %v1938, %v1940
        %v1942 = vrot.slane %v1934, %v1941
        %v1944 = vunpack.c.l.s4 1966171168
        %v1945 = vunpack.c.0.s8 %v1944
        %v1946 = vlaneseq
        %v1947 = vshrl.u32 %v1946, 7
        %v1948 = vsub.s32 %v1945, %v1947
        %v1949 = vrot.slane %v1935, %v1948
        %v1950 = vcombine.low %v1942, %v1949
        %v1951 = vcombine.low %v1216, %v1240
        %v1952 = vcombine.low %v1254, %v1262
        %v1953 = vcombine.low %v1264, %v1247
        %v1954 = vcombine.low %v1261, %v1263
        %v1956 = vunpack.c.l.s4 1966171168
        %v1957 = vunpack.c.0.s8 %v1956
        %v1958 = vlaneseq
        %v1959 = vshrl.u32 %v1958, 7
        %v1960 = vsub.s32 %v1957, %v1959
        %v1961 = vrot.slane %v1951, %v1960
        %v1963 = vunpack.c.l.s4 1966171168
        %v1964 = vunpack.c.0.s8 %v1963
        %v1965 = vlaneseq
        %v1966 = vshrl.u32 %v1965, 7
        %v1967 = vsub.s32 %v1964, %v1966
        %v1968 = vrot.slane %v1952, %v1967
        %v1970 = vunpack.c.l.s4 1966171168
        %v1971 = vunpack.c.0.s8 %v1970
        %v1972 = vlaneseq
        %v1973 = vshrl.u32 %v1972, 7
        %v1974 = vsub.s32 %v1971, %v1973
        %v1975 = vrot.slane %v1953, %v1974
        %v1977 = vunpack.c.l.s4 1966171168
        %v1978 = vunpack.c.0.s8 %v1977
        %v1979 = vlaneseq
        %v1980 = vshrl.u32 %v1979, 7
        %v1981 = vsub.s32 %v1978, %v1980
        %v1982 = vrot.slane %v1954, %v1981
        %v1983 = vcombine.low %v1961, %v1968
        %v1984 = vcombine.low %v1975, %v1982
        %v1986 = vunpack.c.l.s4 1966171168
        %v1987 = vunpack.c.0.s8 %v1986
        %v1988 = vlaneseq
        %v1989 = vshrl.u32 %v1988, 7
        %v1990 = vsub.s32 %v1987, %v1989
        %v1991 = vrot.slane %v1983, %v1990
        %v1993 = vunpack.c.l.s4 1966171168
        %v1994 = vunpack.c.0.s8 %v1993
        %v1995 = vlaneseq
        %v1996 = vshrl.u32 %v1995, 7
        %v1997 = vsub.s32 %v1994, %v1996
        %v1998 = vrot.slane %v1984, %v1997
        %v1999 = vcombine.low %v1991, %v1998
        %v2000 = vsel %vm239, %v1313, 0
        %v2002 = vsel %vm239, %v1362, 0
        %v2004 = vsel %vm239, %v1411, 0
        %v2006 = vsel %vm239, %v1460, 0
        %v2008 = vsel %vm239, %v1509, 0
        %v2010 = vsel %vm239, %v1558, 0
        %v2012 = vsel %vm239, %v1607, 0
        %v2014 = vsel %vm239, %v1656, 0
        %v2016 = vsel %vm239, %v1705, 0
        %v2018 = vsel %vm239, %v1754, 0
        %v2020 = vsel %vm239, %v1803, 0
        %v2022 = vsel %vm239, %v1852, 0
        %v2024 = vsel %vm239, %v1901, 0
        %v2026 = vsel %vm239, %v1950, 0
        %v2028 = vsel %vm239, %v1999, 0
        %2030 = vmatprep.subr.mxu0 0.0
        %2031 = vmatpush1.msra.mxu0 %v481
        %2032 = vmatprep.subr.mxu0 0.0
        %2033 = vmatpush1.msra.mxu0 %v482
        %2034 = vmatprep.subr.mxu0 0.0
        %2035 = vmatpush1.msra.mxu0 %v483
        %2036 = vmatprep.subr.mxu0 0.0
        %2037 = vmatpush1.msra.mxu0 %v484
        %2038 = vmatprep.subr.mxu0 0.0
        %2039 = vmatpush1.msra.mxu0 %v485
        %2040 = vmatprep.subr.mxu0 0.0
        %2041 = vmatpush1.msra.mxu0 %v486
        %2042 = vmatprep.subr.mxu0 0.0
        %2043 = vmatpush1.msra.mxu0 %v487
        %2044 = vmatprep.subr.mxu0 0.0
        %2045 = vmatpush1.msra.mxu0 %v488
        %2046 = vmatprep.subr.mxu0 0.0
        %2047 = vmatpush1.msra.mxu0 0.0
        %2048 = vmatprep.subr.mxu0 0.0
        %2049 = vmatpush1.msra.mxu0 0.0
        %2050 = vmatprep.subr.mxu0 0.0
        %2051 = vmatpush1.msra.mxu0 0.0
        %2052 = vmatprep.subr.mxu0 0.0
        %2053 = vmatpush1.msra.mxu0 0.0
        %2054 = vmatprep.subr.mxu0 0.0
        %2055 = vmatpush1.msra.mxu0 0.0
        %2056 = vmatprep.subr.mxu0 0.0
        %2057 = vmatpush1.msra.mxu0 0.0
        %2058 = vmatprep.subr.mxu0 0.0
        %2059 = vmatpush1.msra.mxu0 0.0
        %2060 = vmatprep.subr.mxu0 0.0
        %2061 = vmatpush1.msra.mxu0 0.0
        %2062 = vmatprep.subr.mxu0 0.0
        %2063 = vmatpush1.msra.mxu0 0.0
        %2064 = vmatprep.subr.mxu0 0.0
        %2065 = vmatpush1.msra.mxu0 0.0
        %2066 = vmatprep.subr.mxu0 0.0
        %2067 = vmatpush1.msra.mxu0 0.0
        %2068 = vmatprep.subr.mxu0 0.0
        %2069 = vmatpush1.msra.mxu0 0.0
        %2070 = vmatprep.subr.mxu0 0.0
        %2071 = vmatpush1.msra.mxu0 0.0
        %2072 = vmatprep.subr.mxu0 0.0
        %2073 = vmatpush1.msra.mxu0 0.0
        %2074 = vmatprep.subr.mxu0 0.0
        %2075 = vmatpush1.msra.mxu0 0.0
        %2076 = vmatprep.subr.mxu0 0.0
        %2077 = vmatpush1.msra.mxu0 0.0
        %2078 = vmatprep.subr.mxu0 0.0
        %2079 = vmatpush1.msra.mxu0 0.0
        %2080 = vmatprep.subr.mxu0 0.0
        %2081 = vmatpush1.msra.mxu0 0.0
        %2082 = vmatprep.subr.mxu0 0.0
        %2083 = vmatpush1.msra.mxu0 0.0
        %2084 = vmatprep.subr.mxu0 0.0
        %2085 = vmatpush1.msra.mxu0 0.0
        %2086 = vmatprep.subr.mxu0 0.0
        %2087 = vmatpush1.msra.mxu0 0.0
        %2088 = vmatprep.subr.mxu0 0.0
        %2089 = vmatpush1.msra.mxu0 0.0
        %2090 = vmatprep.subr.mxu0 0.0
        %2091 = vmatpush1.msra.mxu0 0.0
        %2092 = vmatprep.subr.mxu0 0.0
        %2093 = vmatpush1.msra.mxu0 0.0
        %2094 = vmatprep.mubr.f32.mxu0 0.0
        %2095 = vmatmul.mubr.f32.gmra.mrb[0].mxu0 %v2000
        %v2096 = vpop.f32.mrb[0].mxu0
        %v2097 = vadd.f32 0.0, %v2096
        %v2098 = vpop.f32.mrb[0].mxu0
        %2099 = vmatprep.mubr.f32.mxu0 0.0
        %2100 = vmatmul.mubr.f32.gmra.mrb[0].mxu0 %v2002
        %v2101 = vpop.f32.mrb[0].mxu0
        %v2102 = vadd.f32 0.0, %v2101
        %v2103 = vpop.f32.mrb[0].mxu0
        %2104 = vmatprep.mubr.f32.mxu0 0.0
        %2105 = vmatmul.mubr.f32.gmra.mrb[0].mxu0 %v2004
        %v2106 = vpop.f32.mrb[0].mxu0
        %v2107 = vadd.f32 0.0, %v2106
        %v2108 = vpop.f32.mrb[0].mxu0
        %2109 = vmatprep.mubr.f32.mxu0 0.0
        %2110 = vmatmul.mubr.f32.gmra.mrb[0].mxu0 %v2006
        %v2111 = vpop.f32.mrb[0].mxu0
        %v2112 = vadd.f32 0.0, %v2111
        %v2113 = vpop.f32.mrb[0].mxu0
        %2114 = vmatprep.mubr.f32.mxu0 0.0
        %2115 = vmatmul.mubr.f32.gmra.mrb[0].mxu0 %v2008
        %v2116 = vpop.f32.mrb[0].mxu0
        %v2117 = vadd.f32 0.0, %v2116
        %v2118 = vpop.f32.mrb[0].mxu0
        %2119 = vmatprep.mubr.f32.mxu0 0.0
        %2120 = vmatmul.mubr.f32.gmra.mrb[0].mxu0 %v2010
        %v2121 = vpop.f32.mrb[0].mxu0
        %v2122 = vadd.f32 0.0, %v2121
        %v2123 = vpop.f32.mrb[0].mxu0
        %2124 = vmatprep.mubr.f32.mxu0 0.0
        %2125 = vmatmul.mubr.f32.gmra.mrb[0].mxu0 %v2012
        %v2126 = vpop.f32.mrb[0].mxu0
        %v2127 = vadd.f32 0.0, %v2126
        %v2128 = vpop.f32.mrb[0].mxu0
        %2129 = vmatprep.mubr.f32.mxu0 0.0
        %2130 = vmatmul.mubr.f32.gmra.mrb[0].mxu0 %v2014
        %v2131 = vpop.f32.mrb[0].mxu0
        %v2132 = vadd.f32 0.0, %v2131
        %v2133 = vpop.f32.mrb[0].mxu0
        %2134 = vmatprep.mubr.f32.mxu0 0.0
        %2135 = vmatmul.mubr.f32.gmra.mrb[0].mxu0 %v2016
        %v2136 = vpop.f32.mrb[0].mxu0
        %v2137 = vadd.f32 0.0, %v2136
        %v2138 = vpop.f32.mrb[0].mxu0
        %2139 = vmatprep.mubr.f32.mxu0 0.0
        %2140 = vmatmul.mubr.f32.gmra.mrb[0].mxu0 %v2018
        %v2141 = vpop.f32.mrb[0].mxu0
        %v2142 = vadd.f32 0.0, %v2141
        %v2143 = vpop.f32.mrb[0].mxu0
        %2144 = vmatprep.mubr.f32.mxu0 0.0
        %2145 = vmatmul.mubr.f32.gmra.mrb[0].mxu0 %v2020
        %v2146 = vpop.f32.mrb[0].mxu0
        %v2147 = vadd.f32 0.0, %v2146
        %v2148 = vpop.f32.mrb[0].mxu0
        %2149 = vmatprep.mubr.f32.mxu0 0.0
        %2150 = vmatmul.mubr.f32.gmra.mrb[0].mxu0 %v2022
        %v2151 = vpop.f32.mrb[0].mxu0
        %v2152 = vadd.f32 0.0, %v2151
        %v2153 = vpop.f32.mrb[0].mxu0
        %2154 = vmatprep.mubr.f32.mxu0 0.0
        %2155 = vmatmul.mubr.f32.gmra.mrb[0].mxu0 %v2024
        %v2156 = vpop.f32.mrb[0].mxu0
        %v2157 = vadd.f32 0.0, %v2156
        %v2158 = vpop.f32.mrb[0].mxu0
        %2159 = vmatprep.mubr.f32.mxu0 0.0
        %2160 = vmatmul.mubr.f32.gmra.mrb[0].mxu0 %v2026
        %v2161 = vpop.f32.mrb[0].mxu0
        %v2162 = vadd.f32 0.0, %v2161
        %v2163 = vpop.f32.mrb[0].mxu0
        %2164 = vmatprep.mubr.f32.mxu0 0.0
        %2165 = vmatmul.mubr.f32.gmra.mrb[0].mxu0 %v2028
        %v2166 = vpop.f32.mrb[0].mxu0
        %v2167 = vadd.f32 0.0, %v2166
        %v2168 = vpop.f32.mrb[0].mxu0
        %2169 = vdwg.mxu0
        %v2185 = vcombine.high %v2097, %v2097
        %v2187 = vunpack.c.l.s4 1966171168
        %v2188 = vunpack.c.0.s8 %v2187
        %v2189 = vlaneseq
        %v2190 = vshrl.u32 %v2189, 7
        %v2191 = vsub.s32 %v2188, %v2190
        %v2192 = vrot.slane %v2097, %v2191
        %v2194 = vunpack.c.l.s4 1966171168
        %v2195 = vunpack.c.0.s8 %v2194
        %v2196 = vlaneseq
        %v2197 = vshrl.u32 %v2196, 7
        %v2198 = vsub.s32 %v2195, %v2197
        %v2199 = vrot.slane %v2185, %v2198
        %v2200 = vcombine.high %v2192, %v2192
        %v2201 = vcombine.high %v2199, %v2199
        %v2203 = vunpack.c.l.s4 1966171168
        %v2204 = vunpack.c.0.s8 %v2203
        %v2205 = vlaneseq
        %v2206 = vshrl.u32 %v2205, 7
        %v2207 = vsub.s32 %v2204, %v2206
        %v2208 = vrot.slane %v2192, %v2207
        %v2210 = vunpack.c.l.s4 1966171168
        %v2211 = vunpack.c.0.s8 %v2210
        %v2212 = vlaneseq
        %v2213 = vshrl.u32 %v2212, 7
        %v2214 = vsub.s32 %v2211, %v2213
        %v2215 = vrot.slane %v2199, %v2214
        %v2217 = vunpack.c.l.s4 1966171168
        %v2218 = vunpack.c.0.s8 %v2217
        %v2219 = vlaneseq
        %v2220 = vshrl.u32 %v2219, 7
        %v2221 = vsub.s32 %v2218, %v2220
        %v2222 = vrot.slane %v2200, %v2221
        %v2224 = vunpack.c.l.s4 1966171168
        %v2225 = vunpack.c.0.s8 %v2224
        %v2226 = vlaneseq
        %v2227 = vshrl.u32 %v2226, 7
        %v2228 = vsub.s32 %v2225, %v2227
        %v2229 = vrot.slane %v2201, %v2228
        %v2230 = vcombine.high %v2208, %v2208
        %v2231 = vcombine.high %v2215, %v2215
        %v2232 = vcombine.high %v2222, %v2222
        %v2233 = vcombine.high %v2229, %v2229
        %v2234 = vcombine.high %v2102, %v2102
        %v2236 = vunpack.c.l.s4 1966171168
        %v2237 = vunpack.c.0.s8 %v2236
        %v2238 = vlaneseq
        %v2239 = vshrl.u32 %v2238, 7
        %v2240 = vsub.s32 %v2237, %v2239
        %v2241 = vrot.slane %v2102, %v2240
        %v2243 = vunpack.c.l.s4 1966171168
        %v2244 = vunpack.c.0.s8 %v2243
        %v2245 = vlaneseq
        %v2246 = vshrl.u32 %v2245, 7
        %v2247 = vsub.s32 %v2244, %v2246
        %v2248 = vrot.slane %v2234, %v2247
        %v2249 = vcombine.high %v2241, %v2241
        %v2250 = vcombine.high %v2248, %v2248
        %v2252 = vunpack.c.l.s4 1966171168
        %v2253 = vunpack.c.0.s8 %v2252
        %v2254 = vlaneseq
        %v2255 = vshrl.u32 %v2254, 7
        %v2256 = vsub.s32 %v2253, %v2255
        %v2257 = vrot.slane %v2241, %v2256
        %v2259 = vunpack.c.l.s4 1966171168
        %v2260 = vunpack.c.0.s8 %v2259
        %v2261 = vlaneseq
        %v2262 = vshrl.u32 %v2261, 7
        %v2263 = vsub.s32 %v2260, %v2262
        %v2264 = vrot.slane %v2248, %v2263
        %v2266 = vunpack.c.l.s4 1966171168
        %v2267 = vunpack.c.0.s8 %v2266
        %v2268 = vlaneseq
        %v2269 = vshrl.u32 %v2268, 7
        %v2270 = vsub.s32 %v2267, %v2269
        %v2271 = vrot.slane %v2249, %v2270
        %v2273 = vunpack.c.l.s4 1966171168
        %v2274 = vunpack.c.0.s8 %v2273
        %v2275 = vlaneseq
        %v2276 = vshrl.u32 %v2275, 7
        %v2277 = vsub.s32 %v2274, %v2276
        %v2278 = vrot.slane %v2250, %v2277
        %v2279 = vcombine.high %v2257, %v2257
        %v2280 = vcombine.high %v2264, %v2264
        %v2281 = vcombine.high %v2271, %v2271
        %v2282 = vcombine.high %v2278, %v2278
        %v2283 = vcombine.high %v2107, %v2107
        %v2285 = vunpack.c.l.s4 1966171168
        %v2286 = vunpack.c.0.s8 %v2285
        %v2287 = vlaneseq
        %v2288 = vshrl.u32 %v2287, 7
        %v2289 = vsub.s32 %v2286, %v2288
        %v2290 = vrot.slane %v2107, %v2289
        %v2292 = vunpack.c.l.s4 1966171168
        %v2293 = vunpack.c.0.s8 %v2292
        %v2294 = vlaneseq
        %v2295 = vshrl.u32 %v2294, 7
        %v2296 = vsub.s32 %v2293, %v2295
        %v2297 = vrot.slane %v2283, %v2296
        %v2298 = vcombine.high %v2290, %v2290
        %v2299 = vcombine.high %v2297, %v2297
        %v2301 = vunpack.c.l.s4 1966171168
        %v2302 = vunpack.c.0.s8 %v2301
        %v2303 = vlaneseq
        %v2304 = vshrl.u32 %v2303, 7
        %v2305 = vsub.s32 %v2302, %v2304
        %v2306 = vrot.slane %v2290, %v2305
        %v2308 = vunpack.c.l.s4 1966171168
        %v2309 = vunpack.c.0.s8 %v2308
        %v2310 = vlaneseq
        %v2311 = vshrl.u32 %v2310, 7
        %v2312 = vsub.s32 %v2309, %v2311
        %v2313 = vrot.slane %v2297, %v2312
        %v2315 = vunpack.c.l.s4 1966171168
        %v2316 = vunpack.c.0.s8 %v2315
        %v2317 = vlaneseq
        %v2318 = vshrl.u32 %v2317, 7
        %v2319 = vsub.s32 %v2316, %v2318
        %v2320 = vrot.slane %v2298, %v2319
        %v2322 = vunpack.c.l.s4 1966171168
        %v2323 = vunpack.c.0.s8 %v2322
        %v2324 = vlaneseq
        %v2325 = vshrl.u32 %v2324, 7
        %v2326 = vsub.s32 %v2323, %v2325
        %v2327 = vrot.slane %v2299, %v2326
        %v2328 = vcombine.high %v2306, %v2306
        %v2329 = vcombine.high %v2313, %v2313
        %v2330 = vcombine.high %v2320, %v2320
        %v2331 = vcombine.high %v2327, %v2327
        %v2332 = vcombine.high %v2112, %v2112
        %v2334 = vunpack.c.l.s4 1966171168
        %v2335 = vunpack.c.0.s8 %v2334
        %v2336 = vlaneseq
        %v2337 = vshrl.u32 %v2336, 7
        %v2338 = vsub.s32 %v2335, %v2337
        %v2339 = vrot.slane %v2112, %v2338
        %v2341 = vunpack.c.l.s4 1966171168
        %v2342 = vunpack.c.0.s8 %v2341
        %v2343 = vlaneseq
        %v2344 = vshrl.u32 %v2343, 7
        %v2345 = vsub.s32 %v2342, %v2344
        %v2346 = vrot.slane %v2332, %v2345
        %v2347 = vcombine.high %v2339, %v2339
        %v2348 = vcombine.high %v2346, %v2346
        %v2350 = vunpack.c.l.s4 1966171168
        %v2351 = vunpack.c.0.s8 %v2350
        %v2352 = vlaneseq
        %v2353 = vshrl.u32 %v2352, 7
        %v2354 = vsub.s32 %v2351, %v2353
        %v2355 = vrot.slane %v2339, %v2354
        %v2357 = vunpack.c.l.s4 1966171168
        %v2358 = vunpack.c.0.s8 %v2357
        %v2359 = vlaneseq
        %v2360 = vshrl.u32 %v2359, 7
        %v2361 = vsub.s32 %v2358, %v2360
        %v2362 = vrot.slane %v2346, %v2361
        %v2364 = vunpack.c.l.s4 1966171168
        %v2365 = vunpack.c.0.s8 %v2364
        %v2366 = vlaneseq
        %v2367 = vshrl.u32 %v2366, 7
        %v2368 = vsub.s32 %v2365, %v2367
        %v2369 = vrot.slane %v2347, %v2368
        %v2371 = vunpack.c.l.s4 1966171168
        %v2372 = vunpack.c.0.s8 %v2371
        %v2373 = vlaneseq
        %v2374 = vshrl.u32 %v2373, 7
        %v2375 = vsub.s32 %v2372, %v2374
        %v2376 = vrot.slane %v2348, %v2375
        %v2377 = vcombine.high %v2355, %v2355
        %v2378 = vcombine.high %v2362, %v2362
        %v2379 = vcombine.high %v2369, %v2369
        %v2380 = vcombine.high %v2376, %v2376
        %v2381 = vcombine.high %v2117, %v2117
        %v2383 = vunpack.c.l.s4 1966171168
        %v2384 = vunpack.c.0.s8 %v2383
        %v2385 = vlaneseq
        %v2386 = vshrl.u32 %v2385, 7
        %v2387 = vsub.s32 %v2384, %v2386
        %v2388 = vrot.slane %v2117, %v2387
        %v2390 = vunpack.c.l.s4 1966171168
        %v2391 = vunpack.c.0.s8 %v2390
        %v2392 = vlaneseq
        %v2393 = vshrl.u32 %v2392, 7
        %v2394 = vsub.s32 %v2391, %v2393
        %v2395 = vrot.slane %v2381, %v2394
        %v2396 = vcombine.high %v2388, %v2388
        %v2397 = vcombine.high %v2395, %v2395
        %v2399 = vunpack.c.l.s4 1966171168
        %v2400 = vunpack.c.0.s8 %v2399
        %v2401 = vlaneseq
        %v2402 = vshrl.u32 %v2401, 7
        %v2403 = vsub.s32 %v2400, %v2402
        %v2404 = vrot.slane %v2388, %v2403
        %v2406 = vunpack.c.l.s4 1966171168
        %v2407 = vunpack.c.0.s8 %v2406
        %v2408 = vlaneseq
        %v2409 = vshrl.u32 %v2408, 7
        %v2410 = vsub.s32 %v2407, %v2409
        %v2411 = vrot.slane %v2395, %v2410
        %v2413 = vunpack.c.l.s4 1966171168
        %v2414 = vunpack.c.0.s8 %v2413
        %v2415 = vlaneseq
        %v2416 = vshrl.u32 %v2415, 7
        %v2417 = vsub.s32 %v2414, %v2416
        %v2418 = vrot.slane %v2396, %v2417
        %v2420 = vunpack.c.l.s4 1966171168
        %v2421 = vunpack.c.0.s8 %v2420
        %v2422 = vlaneseq
        %v2423 = vshrl.u32 %v2422, 7
        %v2424 = vsub.s32 %v2421, %v2423
        %v2425 = vrot.slane %v2397, %v2424
        %v2426 = vcombine.high %v2404, %v2404
        %v2427 = vcombine.high %v2411, %v2411
        %v2428 = vcombine.high %v2418, %v2418
        %v2429 = vcombine.high %v2425, %v2425
        %v2430 = vcombine.high %v2122, %v2122
        %v2432 = vunpack.c.l.s4 1966171168
        %v2433 = vunpack.c.0.s8 %v2432
        %v2434 = vlaneseq
        %v2435 = vshrl.u32 %v2434, 7
        %v2436 = vsub.s32 %v2433, %v2435
        %v2437 = vrot.slane %v2122, %v2436
        %v2439 = vunpack.c.l.s4 1966171168
        %v2440 = vunpack.c.0.s8 %v2439
        %v2441 = vlaneseq
        %v2442 = vshrl.u32 %v2441, 7
        %v2443 = vsub.s32 %v2440, %v2442
        %v2444 = vrot.slane %v2430, %v2443
        %v2445 = vcombine.high %v2437, %v2437
        %v2446 = vcombine.high %v2444, %v2444
        %v2448 = vunpack.c.l.s4 1966171168
        %v2449 = vunpack.c.0.s8 %v2448
        %v2450 = vlaneseq
        %v2451 = vshrl.u32 %v2450, 7
        %v2452 = vsub.s32 %v2449, %v2451
        %v2453 = vrot.slane %v2437, %v2452
        %v2455 = vunpack.c.l.s4 1966171168
        %v2456 = vunpack.c.0.s8 %v2455
        %v2457 = vlaneseq
        %v2458 = vshrl.u32 %v2457, 7
        %v2459 = vsub.s32 %v2456, %v2458
        %v2460 = vrot.slane %v2444, %v2459
        %v2462 = vunpack.c.l.s4 1966171168
        %v2463 = vunpack.c.0.s8 %v2462
        %v2464 = vlaneseq
        %v2465 = vshrl.u32 %v2464, 7
        %v2466 = vsub.s32 %v2463, %v2465
        %v2467 = vrot.slane %v2445, %v2466
        %v2469 = vunpack.c.l.s4 1966171168
        %v2470 = vunpack.c.0.s8 %v2469
        %v2471 = vlaneseq
        %v2472 = vshrl.u32 %v2471, 7
        %v2473 = vsub.s32 %v2470, %v2472
        %v2474 = vrot.slane %v2446, %v2473
        %v2475 = vcombine.high %v2453, %v2453
        %v2476 = vcombine.high %v2460, %v2460
        %v2477 = vcombine.high %v2467, %v2467
        %v2478 = vcombine.high %v2474, %v2474
        %v2479 = vcombine.high %v2127, %v2127
        %v2481 = vunpack.c.l.s4 1966171168
        %v2482 = vunpack.c.0.s8 %v2481
        %v2483 = vlaneseq
        %v2484 = vshrl.u32 %v2483, 7
        %v2485 = vsub.s32 %v2482, %v2484
        %v2486 = vrot.slane %v2127, %v2485
        %v2488 = vunpack.c.l.s4 1966171168
        %v2489 = vunpack.c.0.s8 %v2488
        %v2490 = vlaneseq
        %v2491 = vshrl.u32 %v2490, 7
        %v2492 = vsub.s32 %v2489, %v2491
        %v2493 = vrot.slane %v2479, %v2492
        %v2494 = vcombine.high %v2486, %v2486
        %v2495 = vcombine.high %v2493, %v2493
        %v2497 = vunpack.c.l.s4 1966171168
        %v2498 = vunpack.c.0.s8 %v2497
        %v2499 = vlaneseq
        %v2500 = vshrl.u32 %v2499, 7
        %v2501 = vsub.s32 %v2498, %v2500
        %v2502 = vrot.slane %v2486, %v2501
        %v2504 = vunpack.c.l.s4 1966171168
        %v2505 = vunpack.c.0.s8 %v2504
        %v2506 = vlaneseq
        %v2507 = vshrl.u32 %v2506, 7
        %v2508 = vsub.s32 %v2505, %v2507
        %v2509 = vrot.slane %v2493, %v2508
        %v2511 = vunpack.c.l.s4 1966171168
        %v2512 = vunpack.c.0.s8 %v2511
        %v2513 = vlaneseq
        %v2514 = vshrl.u32 %v2513, 7
        %v2515 = vsub.s32 %v2512, %v2514
        %v2516 = vrot.slane %v2494, %v2515
        %v2518 = vunpack.c.l.s4 1966171168
        %v2519 = vunpack.c.0.s8 %v2518
        %v2520 = vlaneseq
        %v2521 = vshrl.u32 %v2520, 7
        %v2522 = vsub.s32 %v2519, %v2521
        %v2523 = vrot.slane %v2495, %v2522
        %v2524 = vcombine.high %v2502, %v2502
        %v2525 = vcombine.high %v2509, %v2509
        %v2526 = vcombine.high %v2516, %v2516
        %v2527 = vcombine.high %v2523, %v2523
        %v2528 = vcombine.high %v2132, %v2132
        %v2530 = vunpack.c.l.s4 1966171168
        %v2531 = vunpack.c.0.s8 %v2530
        %v2532 = vlaneseq
        %v2533 = vshrl.u32 %v2532, 7
        %v2534 = vsub.s32 %v2531, %v2533
        %v2535 = vrot.slane %v2132, %v2534
        %v2537 = vunpack.c.l.s4 1966171168
        %v2538 = vunpack.c.0.s8 %v2537
        %v2539 = vlaneseq
        %v2540 = vshrl.u32 %v2539, 7
        %v2541 = vsub.s32 %v2538, %v2540
        %v2542 = vrot.slane %v2528, %v2541
        %v2543 = vcombine.high %v2535, %v2535
        %v2544 = vcombine.high %v2542, %v2542
        %v2546 = vunpack.c.l.s4 1966171168
        %v2547 = vunpack.c.0.s8 %v2546
        %v2548 = vlaneseq
        %v2549 = vshrl.u32 %v2548, 7
        %v2550 = vsub.s32 %v2547, %v2549
        %v2551 = vrot.slane %v2535, %v2550
        %v2553 = vunpack.c.l.s4 1966171168
        %v2554 = vunpack.c.0.s8 %v2553
        %v2555 = vlaneseq
        %v2556 = vshrl.u32 %v2555, 7
        %v2557 = vsub.s32 %v2554, %v2556
        %v2558 = vrot.slane %v2542, %v2557
        %v2560 = vunpack.c.l.s4 1966171168
        %v2561 = vunpack.c.0.s8 %v2560
        %v2562 = vlaneseq
        %v2563 = vshrl.u32 %v2562, 7
        %v2564 = vsub.s32 %v2561, %v2563
        %v2565 = vrot.slane %v2543, %v2564
        %v2567 = vunpack.c.l.s4 1966171168
        %v2568 = vunpack.c.0.s8 %v2567
        %v2569 = vlaneseq
        %v2570 = vshrl.u32 %v2569, 7
        %v2571 = vsub.s32 %v2568, %v2570
        %v2572 = vrot.slane %v2544, %v2571
        %v2573 = vcombine.high %v2551, %v2551
        %v2574 = vcombine.high %v2558, %v2558
        %v2575 = vcombine.high %v2565, %v2565
        %v2576 = vcombine.high %v2572, %v2572
        %v2577 = vcombine.high %v2137, %v2137
        %v2579 = vunpack.c.l.s4 1966171168
        %v2580 = vunpack.c.0.s8 %v2579
        %v2581 = vlaneseq
        %v2582 = vshrl.u32 %v2581, 7
        %v2583 = vsub.s32 %v2580, %v2582
        %v2584 = vrot.slane %v2137, %v2583
        %v2586 = vunpack.c.l.s4 1966171168
        %v2587 = vunpack.c.0.s8 %v2586
        %v2588 = vlaneseq
        %v2589 = vshrl.u32 %v2588, 7
        %v2590 = vsub.s32 %v2587, %v2589
        %v2591 = vrot.slane %v2577, %v2590
        %v2592 = vcombine.high %v2584, %v2584
        %v2593 = vcombine.high %v2591, %v2591
        %v2595 = vunpack.c.l.s4 1966171168
        %v2596 = vunpack.c.0.s8 %v2595
        %v2597 = vlaneseq
        %v2598 = vshrl.u32 %v2597, 7
        %v2599 = vsub.s32 %v2596, %v2598
        %v2600 = vrot.slane %v2584, %v2599
        %v2602 = vunpack.c.l.s4 1966171168
        %v2603 = vunpack.c.0.s8 %v2602
        %v2604 = vlaneseq
        %v2605 = vshrl.u32 %v2604, 7
        %v2606 = vsub.s32 %v2603, %v2605
        %v2607 = vrot.slane %v2591, %v2606
        %v2609 = vunpack.c.l.s4 1966171168
        %v2610 = vunpack.c.0.s8 %v2609
        %v2611 = vlaneseq
        %v2612 = vshrl.u32 %v2611, 7
        %v2613 = vsub.s32 %v2610, %v2612
        %v2614 = vrot.slane %v2592, %v2613
        %v2616 = vunpack.c.l.s4 1966171168
        %v2617 = vunpack.c.0.s8 %v2616
        %v2618 = vlaneseq
        %v2619 = vshrl.u32 %v2618, 7
        %v2620 = vsub.s32 %v2617, %v2619
        %v2621 = vrot.slane %v2593, %v2620
        %v2622 = vcombine.high %v2600, %v2600
        %v2623 = vcombine.high %v2607, %v2607
        %v2624 = vcombine.high %v2614, %v2614
        %v2625 = vcombine.high %v2621, %v2621
        %v2626 = vcombine.high %v2142, %v2142
        %v2628 = vunpack.c.l.s4 1966171168
        %v2629 = vunpack.c.0.s8 %v2628
        %v2630 = vlaneseq
        %v2631 = vshrl.u32 %v2630, 7
        %v2632 = vsub.s32 %v2629, %v2631
        %v2633 = vrot.slane %v2142, %v2632
        %v2635 = vunpack.c.l.s4 1966171168
        %v2636 = vunpack.c.0.s8 %v2635
        %v2637 = vlaneseq
        %v2638 = vshrl.u32 %v2637, 7
        %v2639 = vsub.s32 %v2636, %v2638
        %v2640 = vrot.slane %v2626, %v2639
        %v2641 = vcombine.high %v2633, %v2633
        %v2642 = vcombine.high %v2640, %v2640
        %v2644 = vunpack.c.l.s4 1966171168
        %v2645 = vunpack.c.0.s8 %v2644
        %v2646 = vlaneseq
        %v2647 = vshrl.u32 %v2646, 7
        %v2648 = vsub.s32 %v2645, %v2647
        %v2649 = vrot.slane %v2633, %v2648
        %v2651 = vunpack.c.l.s4 1966171168
        %v2652 = vunpack.c.0.s8 %v2651
        %v2653 = vlaneseq
        %v2654 = vshrl.u32 %v2653, 7
        %v2655 = vsub.s32 %v2652, %v2654
        %v2656 = vrot.slane %v2640, %v2655
        %v2658 = vunpack.c.l.s4 1966171168
        %v2659 = vunpack.c.0.s8 %v2658
        %v2660 = vlaneseq
        %v2661 = vshrl.u32 %v2660, 7
        %v2662 = vsub.s32 %v2659, %v2661
        %v2663 = vrot.slane %v2641, %v2662
        %v2665 = vunpack.c.l.s4 1966171168
        %v2666 = vunpack.c.0.s8 %v2665
        %v2667 = vlaneseq
        %v2668 = vshrl.u32 %v2667, 7
        %v2669 = vsub.s32 %v2666, %v2668
        %v2670 = vrot.slane %v2642, %v2669
        %v2671 = vcombine.high %v2649, %v2649
        %v2672 = vcombine.high %v2656, %v2656
        %v2673 = vcombine.high %v2663, %v2663
        %v2674 = vcombine.high %v2670, %v2670
        %v2675 = vcombine.high %v2147, %v2147
        %v2677 = vunpack.c.l.s4 1966171168
        %v2678 = vunpack.c.0.s8 %v2677
        %v2679 = vlaneseq
        %v2680 = vshrl.u32 %v2679, 7
        %v2681 = vsub.s32 %v2678, %v2680
        %v2682 = vrot.slane %v2147, %v2681
        %v2684 = vunpack.c.l.s4 1966171168
        %v2685 = vunpack.c.0.s8 %v2684
        %v2686 = vlaneseq
        %v2687 = vshrl.u32 %v2686, 7
        %v2688 = vsub.s32 %v2685, %v2687
        %v2689 = vrot.slane %v2675, %v2688
        %v2690 = vcombine.high %v2682, %v2682
        %v2691 = vcombine.high %v2689, %v2689
        %v2693 = vunpack.c.l.s4 1966171168
        %v2694 = vunpack.c.0.s8 %v2693
        %v2695 = vlaneseq
        %v2696 = vshrl.u32 %v2695, 7
        %v2697 = vsub.s32 %v2694, %v2696
        %v2698 = vrot.slane %v2682, %v2697
        %v2700 = vunpack.c.l.s4 1966171168
        %v2701 = vunpack.c.0.s8 %v2700
        %v2702 = vlaneseq
        %v2703 = vshrl.u32 %v2702, 7
        %v2704 = vsub.s32 %v2701, %v2703
        %v2705 = vrot.slane %v2689, %v2704
        %v2707 = vunpack.c.l.s4 1966171168
        %v2708 = vunpack.c.0.s8 %v2707
        %v2709 = vlaneseq
        %v2710 = vshrl.u32 %v2709, 7
        %v2711 = vsub.s32 %v2708, %v2710
        %v2712 = vrot.slane %v2690, %v2711
        %v2714 = vunpack.c.l.s4 1966171168
        %v2715 = vunpack.c.0.s8 %v2714
        %v2716 = vlaneseq
        %v2717 = vshrl.u32 %v2716, 7
        %v2718 = vsub.s32 %v2715, %v2717
        %v2719 = vrot.slane %v2691, %v2718
        %v2720 = vcombine.high %v2698, %v2698
        %v2721 = vcombine.high %v2705, %v2705
        %v2722 = vcombine.high %v2712, %v2712
        %v2723 = vcombine.high %v2719, %v2719
        %v2724 = vcombine.high %v2152, %v2152
        %v2726 = vunpack.c.l.s4 1966171168
        %v2727 = vunpack.c.0.s8 %v2726
        %v2728 = vlaneseq
        %v2729 = vshrl.u32 %v2728, 7
        %v2730 = vsub.s32 %v2727, %v2729
        %v2731 = vrot.slane %v2152, %v2730
        %v2733 = vunpack.c.l.s4 1966171168
        %v2734 = vunpack.c.0.s8 %v2733
        %v2735 = vlaneseq
        %v2736 = vshrl.u32 %v2735, 7
        %v2737 = vsub.s32 %v2734, %v2736
        %v2738 = vrot.slane %v2724, %v2737
        %v2739 = vcombine.high %v2731, %v2731
        %v2740 = vcombine.high %v2738, %v2738
        %v2742 = vunpack.c.l.s4 1966171168
        %v2743 = vunpack.c.0.s8 %v2742
        %v2744 = vlaneseq
        %v2745 = vshrl.u32 %v2744, 7
        %v2746 = vsub.s32 %v2743, %v2745
        %v2747 = vrot.slane %v2731, %v2746
        %v2749 = vunpack.c.l.s4 1966171168
        %v2750 = vunpack.c.0.s8 %v2749
        %v2751 = vlaneseq
        %v2752 = vshrl.u32 %v2751, 7
        %v2753 = vsub.s32 %v2750, %v2752
        %v2754 = vrot.slane %v2738, %v2753
        %v2756 = vunpack.c.l.s4 1966171168
        %v2757 = vunpack.c.0.s8 %v2756
        %v2758 = vlaneseq
        %v2759 = vshrl.u32 %v2758, 7
        %v2760 = vsub.s32 %v2757, %v2759
        %v2761 = vrot.slane %v2739, %v2760
        %v2763 = vunpack.c.l.s4 1966171168
        %v2764 = vunpack.c.0.s8 %v2763
        %v2765 = vlaneseq
        %v2766 = vshrl.u32 %v2765, 7
        %v2767 = vsub.s32 %v2764, %v2766
        %v2768 = vrot.slane %v2740, %v2767
        %v2769 = vcombine.high %v2747, %v2747
        %v2770 = vcombine.high %v2754, %v2754
        %v2771 = vcombine.high %v2761, %v2761
        %v2772 = vcombine.high %v2768, %v2768
        %v2773 = vcombine.high %v2157, %v2157
        %v2775 = vunpack.c.l.s4 1966171168
        %v2776 = vunpack.c.0.s8 %v2775
        %v2777 = vlaneseq
        %v2778 = vshrl.u32 %v2777, 7
        %v2779 = vsub.s32 %v2776, %v2778
        %v2780 = vrot.slane %v2157, %v2779
        %v2782 = vunpack.c.l.s4 1966171168
        %v2783 = vunpack.c.0.s8 %v2782
        %v2784 = vlaneseq
        %v2785 = vshrl.u32 %v2784, 7
        %v2786 = vsub.s32 %v2783, %v2785
        %v2787 = vrot.slane %v2773, %v2786
        %v2788 = vcombine.high %v2780, %v2780
        %v2789 = vcombine.high %v2787, %v2787
        %v2791 = vunpack.c.l.s4 1966171168
        %v2792 = vunpack.c.0.s8 %v2791
        %v2793 = vlaneseq
        %v2794 = vshrl.u32 %v2793, 7
        %v2795 = vsub.s32 %v2792, %v2794
        %v2796 = vrot.slane %v2780, %v2795
        %v2798 = vunpack.c.l.s4 1966171168
        %v2799 = vunpack.c.0.s8 %v2798
        %v2800 = vlaneseq
        %v2801 = vshrl.u32 %v2800, 7
        %v2802 = vsub.s32 %v2799, %v2801
        %v2803 = vrot.slane %v2787, %v2802
        %v2805 = vunpack.c.l.s4 1966171168
        %v2806 = vunpack.c.0.s8 %v2805
        %v2807 = vlaneseq
        %v2808 = vshrl.u32 %v2807, 7
        %v2809 = vsub.s32 %v2806, %v2808
        %v2810 = vrot.slane %v2788, %v2809
        %v2812 = vunpack.c.l.s4 1966171168
        %v2813 = vunpack.c.0.s8 %v2812
        %v2814 = vlaneseq
        %v2815 = vshrl.u32 %v2814, 7
        %v2816 = vsub.s32 %v2813, %v2815
        %v2817 = vrot.slane %v2789, %v2816
        %v2818 = vcombine.high %v2796, %v2796
        %v2819 = vcombine.high %v2803, %v2803
        %v2820 = vcombine.high %v2810, %v2810
        %v2821 = vcombine.high %v2817, %v2817
        %v2822 = vcombine.high %v2162, %v2162
        %v2824 = vunpack.c.l.s4 1966171168
        %v2825 = vunpack.c.0.s8 %v2824
        %v2826 = vlaneseq
        %v2827 = vshrl.u32 %v2826, 7
        %v2828 = vsub.s32 %v2825, %v2827
        %v2829 = vrot.slane %v2162, %v2828
        %v2831 = vunpack.c.l.s4 1966171168
        %v2832 = vunpack.c.0.s8 %v2831
        %v2833 = vlaneseq
        %v2834 = vshrl.u32 %v2833, 7
        %v2835 = vsub.s32 %v2832, %v2834
        %v2836 = vrot.slane %v2822, %v2835
        %v2837 = vcombine.high %v2829, %v2829
        %v2838 = vcombine.high %v2836, %v2836
        %v2840 = vunpack.c.l.s4 1966171168
        %v2841 = vunpack.c.0.s8 %v2840
        %v2842 = vlaneseq
        %v2843 = vshrl.u32 %v2842, 7
        %v2844 = vsub.s32 %v2841, %v2843
        %v2845 = vrot.slane %v2829, %v2844
        %v2847 = vunpack.c.l.s4 1966171168
        %v2848 = vunpack.c.0.s8 %v2847
        %v2849 = vlaneseq
        %v2850 = vshrl.u32 %v2849, 7
        %v2851 = vsub.s32 %v2848, %v2850
        %v2852 = vrot.slane %v2836, %v2851
        %v2854 = vunpack.c.l.s4 1966171168
        %v2855 = vunpack.c.0.s8 %v2854
        %v2856 = vlaneseq
        %v2857 = vshrl.u32 %v2856, 7
        %v2858 = vsub.s32 %v2855, %v2857
        %v2859 = vrot.slane %v2837, %v2858
        %v2861 = vunpack.c.l.s4 1966171168
        %v2862 = vunpack.c.0.s8 %v2861
        %v2863 = vlaneseq
        %v2864 = vshrl.u32 %v2863, 7
        %v2865 = vsub.s32 %v2862, %v2864
        %v2866 = vrot.slane %v2838, %v2865
        %v2867 = vcombine.high %v2845, %v2845
        %v2868 = vcombine.high %v2852, %v2852
        %v2869 = vcombine.high %v2859, %v2859
        %v2870 = vcombine.high %v2866, %v2866
        %v2871 = vcombine.high %v2167, %v2167
        %v2873 = vunpack.c.l.s4 1966171168
        %v2874 = vunpack.c.0.s8 %v2873
        %v2875 = vlaneseq
        %v2876 = vshrl.u32 %v2875, 7
        %v2877 = vsub.s32 %v2874, %v2876
        %v2878 = vrot.slane %v2167, %v2877
        %v2880 = vunpack.c.l.s4 1966171168
        %v2881 = vunpack.c.0.s8 %v2880
        %v2882 = vlaneseq
        %v2883 = vshrl.u32 %v2882, 7
        %v2884 = vsub.s32 %v2881, %v2883
        %v2885 = vrot.slane %v2871, %v2884
        %v2886 = vcombine.high %v2878, %v2878
        %v2887 = vcombine.high %v2885, %v2885
        %v2889 = vunpack.c.l.s4 1966171168
        %v2890 = vunpack.c.0.s8 %v2889
        %v2891 = vlaneseq
        %v2892 = vshrl.u32 %v2891, 7
        %v2893 = vsub.s32 %v2890, %v2892
        %v2894 = vrot.slane %v2878, %v2893
        %v2896 = vunpack.c.l.s4 1966171168
        %v2897 = vunpack.c.0.s8 %v2896
        %v2898 = vlaneseq
        %v2899 = vshrl.u32 %v2898, 7
        %v2900 = vsub.s32 %v2897, %v2899
        %v2901 = vrot.slane %v2885, %v2900
        %v2903 = vunpack.c.l.s4 1966171168
        %v2904 = vunpack.c.0.s8 %v2903
        %v2905 = vlaneseq
        %v2906 = vshrl.u32 %v2905, 7
        %v2907 = vsub.s32 %v2904, %v2906
        %v2908 = vrot.slane %v2886, %v2907
        %v2910 = vunpack.c.l.s4 1966171168
        %v2911 = vunpack.c.0.s8 %v2910
        %v2912 = vlaneseq
        %v2913 = vshrl.u32 %v2912, 7
        %v2914 = vsub.s32 %v2911, %v2913
        %v2915 = vrot.slane %v2887, %v2914
        %v2916 = vcombine.high %v2894, %v2894
        %v2917 = vcombine.high %v2901, %v2901
        %v2918 = vcombine.high %v2908, %v2908
        %v2919 = vcombine.high %v2915, %v2915
        %v2920 = vcombine.low %v2208, %v2222
        %v2921 = vcombine.low %v2230, %v2232
        %v2922 = vcombine.low %v2215, %v2229
        %v2923 = vcombine.low %v2231, %v2233
        %v2925 = vunpack.c.l.s4 1966171168
        %v2926 = vunpack.c.0.s8 %v2925
        %v2927 = vlaneseq
        %v2928 = vshrl.u32 %v2927, 7
        %v2929 = vsub.s32 %v2926, %v2928
        %v2930 = vrot.slane %v2920, %v2929
        %v2932 = vunpack.c.l.s4 1966171168
        %v2933 = vunpack.c.0.s8 %v2932
        %v2934 = vlaneseq
        %v2935 = vshrl.u32 %v2934, 7
        %v2936 = vsub.s32 %v2933, %v2935
        %v2937 = vrot.slane %v2921, %v2936
        %v2939 = vunpack.c.l.s4 1966171168
        %v2940 = vunpack.c.0.s8 %v2939
        %v2941 = vlaneseq
        %v2942 = vshrl.u32 %v2941, 7
        %v2943 = vsub.s32 %v2940, %v2942
        %v2944 = vrot.slane %v2922, %v2943
        %v2946 = vunpack.c.l.s4 1966171168
        %v2947 = vunpack.c.0.s8 %v2946
        %v2948 = vlaneseq
        %v2949 = vshrl.u32 %v2948, 7
        %v2950 = vsub.s32 %v2947, %v2949
        %v2951 = vrot.slane %v2923, %v2950
        %v2952 = vcombine.low %v2930, %v2937
        %v2953 = vcombine.low %v2944, %v2951
        %v2955 = vunpack.c.l.s4 1966171168
        %v2956 = vunpack.c.0.s8 %v2955
        %v2957 = vlaneseq
        %v2958 = vshrl.u32 %v2957, 7
        %v2959 = vsub.s32 %v2956, %v2958
        %v2960 = vrot.slane %v2952, %v2959
        %v2962 = vunpack.c.l.s4 1966171168
        %v2963 = vunpack.c.0.s8 %v2962
        %v2964 = vlaneseq
        %v2965 = vshrl.u32 %v2964, 7
        %v2966 = vsub.s32 %v2963, %v2965
        %v2967 = vrot.slane %v2953, %v2966
        %v2968 = vcombine.low %v2960, %v2967
        %v2969 = vcombine.low %v2257, %v2271
        %v2970 = vcombine.low %v2279, %v2281
        %v2971 = vcombine.low %v2264, %v2278
        %v2973 = vunpack.c.l.s4 1966171168
        %v2974 = vunpack.c.0.s8 %v2973
        %v2975 = vlaneseq
        %v2976 = vshrl.u32 %v2975, 7
        %v2977 = vsub.s32 %v2974, %v2976
        %v2978 = vrot.slane %v2969, %v2977
        %v2980 = vunpack.c.l.s4 1966171168
        %v2981 = vunpack.c.0.s8 %v2980
        %v2982 = vlaneseq
        %v2983 = vshrl.u32 %v2982, 7
        %v2984 = vsub.s32 %v2981, %v2983
        %v2985 = vrot.slane %v2970, %v2984
        %v2987 = vunpack.c.l.s4 1966171168
        %v2988 = vunpack.c.0.s8 %v2987
        %v2989 = vlaneseq
        %v2990 = vshrl.u32 %v2989, 7
        %v2991 = vsub.s32 %v2988, %v2990
        %v2992 = vrot.slane %v2971, %v2991
        %v2994 = vunpack.c.l.s4 1966171168
        %v2995 = vunpack.c.0.s8 %v2994
        %v2996 = vlaneseq
        %v2997 = vshrl.u32 %v2996, 7
        %v2998 = vsub.s32 %v2995, %v2997
        %v2999 = vrot.slane %v2280, %v2998
        %v3000 = vcombine.low %v2978, %v2985
        %v3001 = vcombine.low %v2992, %v2999
        %v3003 = vunpack.c.l.s4 1966171168
        %v3004 = vunpack.c.0.s8 %v3003
        %v3005 = vlaneseq
        %v3006 = vshrl.u32 %v3005, 7
        %v3007 = vsub.s32 %v3004, %v3006
        %v3008 = vrot.slane %v3000, %v3007
        %v3010 = vunpack.c.l.s4 1966171168
        %v3011 = vunpack.c.0.s8 %v3010
        %v3012 = vlaneseq
        %v3013 = vshrl.u32 %v3012, 7
        %v3014 = vsub.s32 %v3011, %v3013
        %v3015 = vrot.slane %v3001, %v3014
        %v3016 = vcombine.low %v3008, %v3015
        %v3017 = vcombine.low %v2282, %v2306
        %v3018 = vcombine.low %v2320, %v2328
        %v3019 = vcombine.low %v2330, %v2313
        %v3020 = vcombine.low %v2327, %v2329
        %v3022 = vunpack.c.l.s4 1966171168
        %v3023 = vunpack.c.0.s8 %v3022
        %v3024 = vlaneseq
        %v3025 = vshrl.u32 %v3024, 7
        %v3026 = vsub.s32 %v3023, %v3025
        %v3027 = vrot.slane %v3017, %v3026
        %v3029 = vunpack.c.l.s4 1966171168
        %v3030 = vunpack.c.0.s8 %v3029
        %v3031 = vlaneseq
        %v3032 = vshrl.u32 %v3031, 7
        %v3033 = vsub.s32 %v3030, %v3032
        %v3034 = vrot.slane %v3018, %v3033
        %v3036 = vunpack.c.l.s4 1966171168
        %v3037 = vunpack.c.0.s8 %v3036
        %v3038 = vlaneseq
        %v3039 = vshrl.u32 %v3038, 7
        %v3040 = vsub.s32 %v3037, %v3039
        %v3041 = vrot.slane %v3019, %v3040
        %v3043 = vunpack.c.l.s4 1966171168
        %v3044 = vunpack.c.0.s8 %v3043
        %v3045 = vlaneseq
        %v3046 = vshrl.u32 %v3045, 7
        %v3047 = vsub.s32 %v3044, %v3046
        %v3048 = vrot.slane %v3020, %v3047
        %v3049 = vcombine.low %v3027, %v3034
        %v3050 = vcombine.low %v3041, %v3048
        %v3052 = vunpack.c.l.s4 1966171168
        %v3053 = vunpack.c.0.s8 %v3052
        %v3054 = vlaneseq
        %v3055 = vshrl.u32 %v3054, 7
        %v3056 = vsub.s32 %v3053, %v3055
        %v3057 = vrot.slane %v3049, %v3056
        %v3059 = vunpack.c.l.s4 1966171168
        %v3060 = vunpack.c.0.s8 %v3059
        %v3061 = vlaneseq
        %v3062 = vshrl.u32 %v3061, 7
        %v3063 = vsub.s32 %v3060, %v3062
        %v3064 = vrot.slane %v3050, %v3063
        %v3065 = vcombine.low %v3057, %v3064
        %v3066 = vcombine.low %v2331, %v2355
        %v3067 = vcombine.low %v2369, %v2377
        %v3068 = vcombine.low %v2379, %v2362
        %v3070 = vunpack.c.l.s4 1966171168
        %v3071 = vunpack.c.0.s8 %v3070
        %v3072 = vlaneseq
        %v3073 = vshrl.u32 %v3072, 7
        %v3074 = vsub.s32 %v3071, %v3073
        %v3075 = vrot.slane %v3066, %v3074
        %v3077 = vunpack.c.l.s4 1966171168
        %v3078 = vunpack.c.0.s8 %v3077
        %v3079 = vlaneseq
        %v3080 = vshrl.u32 %v3079, 7
        %v3081 = vsub.s32 %v3078, %v3080
        %v3082 = vrot.slane %v3067, %v3081
        %v3084 = vunpack.c.l.s4 1966171168
        %v3085 = vunpack.c.0.s8 %v3084
        %v3086 = vlaneseq
        %v3087 = vshrl.u32 %v3086, 7
        %v3088 = vsub.s32 %v3085, %v3087
        %v3089 = vrot.slane %v3068, %v3088
        %v3091 = vunpack.c.l.s4 1966171168
        %v3092 = vunpack.c.0.s8 %v3091
        %v3093 = vlaneseq
        %v3094 = vshrl.u32 %v3093, 7
        %v3095 = vsub.s32 %v3092, %v3094
        %v3096 = vrot.slane %v2376, %v3095
        %v3097 = vcombine.low %v3075, %v3082
        %v3098 = vcombine.low %v3089, %v3096
        %v3100 = vunpack.c.l.s4 1966171168
        %v3101 = vunpack.c.0.s8 %v3100
        %v3102 = vlaneseq
        %v3103 = vshrl.u32 %v3102, 7
        %v3104 = vsub.s32 %v3101, %v3103
        %v3105 = vrot.slane %v3097, %v3104
        %v3107 = vunpack.c.l.s4 1966171168
        %v3108 = vunpack.c.0.s8 %v3107
        %v3109 = vlaneseq
        %v3110 = vshrl.u32 %v3109, 7
        %v3111 = vsub.s32 %v3108, %v3110
        %v3112 = vrot.slane %v3098, %v3111
        %v3113 = vcombine.low %v3105, %v3112
        %v3114 = vcombine.low %v2378, %v2380
        %v3115 = vcombine.low %v2404, %v2418
        %v3116 = vcombine.low %v2426, %v2428
        %v3117 = vcombine.low %v2411, %v2425
        %v3119 = vunpack.c.l.s4 1966171168
        %v3120 = vunpack.c.0.s8 %v3119
        %v3121 = vlaneseq
        %v3122 = vshrl.u32 %v3121, 7
        %v3123 = vsub.s32 %v3120, %v3122
        %v3124 = vrot.slane %v3114, %v3123
        %v3126 = vunpack.c.l.s4 1966171168
        %v3127 = vunpack.c.0.s8 %v3126
        %v3128 = vlaneseq
        %v3129 = vshrl.u32 %v3128, 7
        %v3130 = vsub.s32 %v3127, %v3129
        %v3131 = vrot.slane %v3115, %v3130
        %v3133 = vunpack.c.l.s4 1966171168
        %v3134 = vunpack.c.0.s8 %v3133
        %v3135 = vlaneseq
        %v3136 = vshrl.u32 %v3135, 7
        %v3137 = vsub.s32 %v3134, %v3136
        %v3138 = vrot.slane %v3116, %v3137
        %v3140 = vunpack.c.l.s4 1966171168
        %v3141 = vunpack.c.0.s8 %v3140
        %v3142 = vlaneseq
        %v3143 = vshrl.u32 %v3142, 7
        %v3144 = vsub.s32 %v3141, %v3143
        %v3145 = vrot.slane %v3117, %v3144
        %v3146 = vcombine.low %v3124, %v3131
        %v3147 = vcombine.low %v3138, %v3145
        %v3149 = vunpack.c.l.s4 1966171168
        %v3150 = vunpack.c.0.s8 %v3149
        %v3151 = vlaneseq
        %v3152 = vshrl.u32 %v3151, 7
        %v3153 = vsub.s32 %v3150, %v3152
        %v3154 = vrot.slane %v3146, %v3153
        %v3156 = vunpack.c.l.s4 1966171168
        %v3157 = vunpack.c.0.s8 %v3156
        %v3158 = vlaneseq
        %v3159 = vshrl.u32 %v3158, 7
        %v3160 = vsub.s32 %v3157, %v3159
        %v3161 = vrot.slane %v3147, %v3160
        %v3162 = vcombine.low %v3154, %v3161
        %v3163 = vcombine.low %v2427, %v2429
        %v3164 = vcombine.low %v2453, %v2467
        %v3165 = vcombine.low %v2475, %v2477
        %v3167 = vunpack.c.l.s4 1966171168
        %v3168 = vunpack.c.0.s8 %v3167
        %v3169 = vlaneseq
        %v3170 = vshrl.u32 %v3169, 7
        %v3171 = vsub.s32 %v3168, %v3170
        %v3172 = vrot.slane %v3163, %v3171
        %v3174 = vunpack.c.l.s4 1966171168
        %v3175 = vunpack.c.0.s8 %v3174
        %v3176 = vlaneseq
        %v3177 = vshrl.u32 %v3176, 7
        %v3178 = vsub.s32 %v3175, %v3177
        %v3179 = vrot.slane %v3164, %v3178
        %v3181 = vunpack.c.l.s4 1966171168
        %v3182 = vunpack.c.0.s8 %v3181
        %v3183 = vlaneseq
        %v3184 = vshrl.u32 %v3183, 7
        %v3185 = vsub.s32 %v3182, %v3184
        %v3186 = vrot.slane %v3165, %v3185
        %v3188 = vunpack.c.l.s4 1966171168
        %v3189 = vunpack.c.0.s8 %v3188
        %v3190 = vlaneseq
        %v3191 = vshrl.u32 %v3190, 7
        %v3192 = vsub.s32 %v3189, %v3191
        %v3193 = vrot.slane %v2460, %v3192
        %v3194 = vcombine.low %v3172, %v3179
        %v3195 = vcombine.low %v3186, %v3193
        %v3197 = vunpack.c.l.s4 1966171168
        %v3198 = vunpack.c.0.s8 %v3197
        %v3199 = vlaneseq
        %v3200 = vshrl.u32 %v3199, 7
        %v3201 = vsub.s32 %v3198, %v3200
        %v3202 = vrot.slane %v3194, %v3201
        %v3204 = vunpack.c.l.s4 1966171168
        %v3205 = vunpack.c.0.s8 %v3204
        %v3206 = vlaneseq
        %v3207 = vshrl.u32 %v3206, 7
        %v3208 = vsub.s32 %v3205, %v3207
        %v3209 = vrot.slane %v3195, %v3208
        %v3210 = vcombine.low %v3202, %v3209
        %v3211 = vcombine.low %v2474, %v2476
        %v3212 = vcombine.low %v2478, %v2502
        %v3213 = vcombine.low %v2516, %v2524
        %v3214 = vcombine.low %v2526, %v2509
        %v3216 = vunpack.c.l.s4 1966171168
        %v3217 = vunpack.c.0.s8 %v3216
        %v3218 = vlaneseq
        %v3219 = vshrl.u32 %v3218, 7
        %v3220 = vsub.s32 %v3217, %v3219
        %v3221 = vrot.slane %v3211, %v3220
        %v3223 = vunpack.c.l.s4 1966171168
        %v3224 = vunpack.c.0.s8 %v3223
        %v3225 = vlaneseq
        %v3226 = vshrl.u32 %v3225, 7
        %v3227 = vsub.s32 %v3224, %v3226
        %v3228 = vrot.slane %v3212, %v3227
        %v3230 = vunpack.c.l.s4 1966171168
        %v3231 = vunpack.c.0.s8 %v3230
        %v3232 = vlaneseq
        %v3233 = vshrl.u32 %v3232, 7
        %v3234 = vsub.s32 %v3231, %v3233
        %v3235 = vrot.slane %v3213, %v3234
        %v3237 = vunpack.c.l.s4 1966171168
        %v3238 = vunpack.c.0.s8 %v3237
        %v3239 = vlaneseq
        %v3240 = vshrl.u32 %v3239, 7
        %v3241 = vsub.s32 %v3238, %v3240
        %v3242 = vrot.slane %v3214, %v3241
        %v3243 = vcombine.low %v3221, %v3228
        %v3244 = vcombine.low %v3235, %v3242
        %v3246 = vunpack.c.l.s4 1966171168
        %v3247 = vunpack.c.0.s8 %v3246
        %v3248 = vlaneseq
        %v3249 = vshrl.u32 %v3248, 7
        %v3250 = vsub.s32 %v3247, %v3249
        %v3251 = vrot.slane %v3243, %v3250
        %v3253 = vunpack.c.l.s4 1966171168
        %v3254 = vunpack.c.0.s8 %v3253
        %v3255 = vlaneseq
        %v3256 = vshrl.u32 %v3255, 7
        %v3257 = vsub.s32 %v3254, %v3256
        %v3258 = vrot.slane %v3244, %v3257
        %v3259 = vcombine.low %v3251, %v3258
        %v3260 = vcombine.low %v2523, %v2525
        %v3261 = vcombine.low %v2527, %v2551
        %v3262 = vcombine.low %v2565, %v2573
        %v3264 = vunpack.c.l.s4 1966171168
        %v3265 = vunpack.c.0.s8 %v3264
        %v3266 = vlaneseq
        %v3267 = vshrl.u32 %v3266, 7
        %v3268 = vsub.s32 %v3265, %v3267
        %v3269 = vrot.slane %v3260, %v3268
        %v3271 = vunpack.c.l.s4 1966171168
        %v3272 = vunpack.c.0.s8 %v3271
        %v3273 = vlaneseq
        %v3274 = vshrl.u32 %v3273, 7
        %v3275 = vsub.s32 %v3272, %v3274
        %v3276 = vrot.slane %v3261, %v3275
        %v3278 = vunpack.c.l.s4 1966171168
        %v3279 = vunpack.c.0.s8 %v3278
        %v3280 = vlaneseq
        %v3281 = vshrl.u32 %v3280, 7
        %v3282 = vsub.s32 %v3279, %v3281
        %v3283 = vrot.slane %v3262, %v3282
        %v3285 = vunpack.c.l.s4 1966171168
        %v3286 = vunpack.c.0.s8 %v3285
        %v3287 = vlaneseq
        %v3288 = vshrl.u32 %v3287, 7
        %v3289 = vsub.s32 %v3286, %v3288
        %v3290 = vrot.slane %v2575, %v3289
        %v3291 = vcombine.low %v3269, %v3276
        %v3292 = vcombine.low %v3283, %v3290
        %v3294 = vunpack.c.l.s4 1966171168
        %v3295 = vunpack.c.0.s8 %v3294
        %v3296 = vlaneseq
        %v3297 = vshrl.u32 %v3296, 7
        %v3298 = vsub.s32 %v3295, %v3297
        %v3299 = vrot.slane %v3291, %v3298
        %v3301 = vunpack.c.l.s4 1966171168
        %v3302 = vunpack.c.0.s8 %v3301
        %v3303 = vlaneseq
        %v3304 = vshrl.u32 %v3303, 7
        %v3305 = vsub.s32 %v3302, %v3304
        %v3306 = vrot.slane %v3292, %v3305
        %v3307 = vcombine.low %v3299, %v3306
        %v3308 = vcombine.low %v2558, %v2572
        %v3309 = vcombine.low %v2574, %v2576
        %v3310 = vcombine.low %v2600, %v2614
        %v3311 = vcombine.low %v2622, %v2624
        %v3313 = vunpack.c.l.s4 1966171168
        %v3314 = vunpack.c.0.s8 %v3313
        %v3315 = vlaneseq
        %v3316 = vshrl.u32 %v3315, 7
        %v3317 = vsub.s32 %v3314, %v3316
        %v3318 = vrot.slane %v3308, %v3317
        %v3320 = vunpack.c.l.s4 1966171168
        %v3321 = vunpack.c.0.s8 %v3320
        %v3322 = vlaneseq
        %v3323 = vshrl.u32 %v3322, 7
        %v3324 = vsub.s32 %v3321, %v3323
        %v3325 = vrot.slane %v3309, %v3324
        %v3327 = vunpack.c.l.s4 1966171168
        %v3328 = vunpack.c.0.s8 %v3327
        %v3329 = vlaneseq
        %v3330 = vshrl.u32 %v3329, 7
        %v3331 = vsub.s32 %v3328, %v3330
        %v3332 = vrot.slane %v3310, %v3331
        %v3334 = vunpack.c.l.s4 1966171168
        %v3335 = vunpack.c.0.s8 %v3334
        %v3336 = vlaneseq
        %v3337 = vshrl.u32 %v3336, 7
        %v3338 = vsub.s32 %v3335, %v3337
        %v3339 = vrot.slane %v3311, %v3338
        %v3340 = vcombine.low %v3318, %v3325
        %v3341 = vcombine.low %v3332, %v3339
        %v3343 = vunpack.c.l.s4 1966171168
        %v3344 = vunpack.c.0.s8 %v3343
        %v3345 = vlaneseq
        %v3346 = vshrl.u32 %v3345, 7
        %v3347 = vsub.s32 %v3344, %v3346
        %v3348 = vrot.slane %v3340, %v3347
        %v3350 = vunpack.c.l.s4 1966171168
        %v3351 = vunpack.c.0.s8 %v3350
        %v3352 = vlaneseq
        %v3353 = vshrl.u32 %v3352, 7
        %v3354 = vsub.s32 %v3351, %v3353
        %v3355 = vrot.slane %v3341, %v3354
        %v3356 = vcombine.low %v3348, %v3355
        %v3357 = vcombine.low %v2607, %v2621
        %v3358 = vcombine.low %v2623, %v2625
        %v3359 = vcombine.low %v2649, %v2663
        %v3361 = vunpack.c.l.s4 1966171168
        %v3362 = vunpack.c.0.s8 %v3361
        %v3363 = vlaneseq
        %v3364 = vshrl.u32 %v3363, 7
        %v3365 = vsub.s32 %v3362, %v3364
        %v3366 = vrot.slane %v3357, %v3365
        %v3368 = vunpack.c.l.s4 1966171168
        %v3369 = vunpack.c.0.s8 %v3368
        %v3370 = vlaneseq
        %v3371 = vshrl.u32 %v3370, 7
        %v3372 = vsub.s32 %v3369, %v3371
        %v3373 = vrot.slane %v3358, %v3372
        %v3375 = vunpack.c.l.s4 1966171168
        %v3376 = vunpack.c.0.s8 %v3375
        %v3377 = vlaneseq
        %v3378 = vshrl.u32 %v3377, 7
        %v3379 = vsub.s32 %v3376, %v3378
        %v3380 = vrot.slane %v3359, %v3379
        %v3382 = vunpack.c.l.s4 1966171168
        %v3383 = vunpack.c.0.s8 %v3382
        %v3384 = vlaneseq
        %v3385 = vshrl.u32 %v3384, 7
        %v3386 = vsub.s32 %v3383, %v3385
        %v3387 = vrot.slane %v2671, %v3386
        %v3388 = vcombine.low %v3366, %v3373
        %v3389 = vcombine.low %v3380, %v3387
        %v3391 = vunpack.c.l.s4 1966171168
        %v3392 = vunpack.c.0.s8 %v3391
        %v3393 = vlaneseq
        %v3394 = vshrl.u32 %v3393, 7
        %v3395 = vsub.s32 %v3392, %v3394
        %v3396 = vrot.slane %v3388, %v3395
        %v3398 = vunpack.c.l.s4 1966171168
        %v3399 = vunpack.c.0.s8 %v3398
        %v3400 = vlaneseq
        %v3401 = vshrl.u32 %v3400, 7
        %v3402 = vsub.s32 %v3399, %v3401
        %v3403 = vrot.slane %v3389, %v3402
        %v3404 = vcombine.low %v3396, %v3403
        %v3405 = vcombine.low %v2673, %v2656
        %v3406 = vcombine.low %v2670, %v2672
        %v3407 = vcombine.low %v2674, %v2698
        %v3408 = vcombine.low %v2712, %v2720
        %v3410 = vunpack.c.l.s4 1966171168
        %v3411 = vunpack.c.0.s8 %v3410
        %v3412 = vlaneseq
        %v3413 = vshrl.u32 %v3412, 7
        %v3414 = vsub.s32 %v3411, %v3413
        %v3415 = vrot.slane %v3405, %v3414
        %v3417 = vunpack.c.l.s4 1966171168
        %v3418 = vunpack.c.0.s8 %v3417
        %v3419 = vlaneseq
        %v3420 = vshrl.u32 %v3419, 7
        %v3421 = vsub.s32 %v3418, %v3420
        %v3422 = vrot.slane %v3406, %v3421
        %v3424 = vunpack.c.l.s4 1966171168
        %v3425 = vunpack.c.0.s8 %v3424
        %v3426 = vlaneseq
        %v3427 = vshrl.u32 %v3426, 7
        %v3428 = vsub.s32 %v3425, %v3427
        %v3429 = vrot.slane %v3407, %v3428
        %v3431 = vunpack.c.l.s4 1966171168
        %v3432 = vunpack.c.0.s8 %v3431
        %v3433 = vlaneseq
        %v3434 = vshrl.u32 %v3433, 7
        %v3435 = vsub.s32 %v3432, %v3434
        %v3436 = vrot.slane %v3408, %v3435
        %v3437 = vcombine.low %v3415, %v3422
        %v3438 = vcombine.low %v3429, %v3436
        %v3440 = vunpack.c.l.s4 1966171168
        %v3441 = vunpack.c.0.s8 %v3440
        %v3442 = vlaneseq
        %v3443 = vshrl.u32 %v3442, 7
        %v3444 = vsub.s32 %v3441, %v3443
        %v3445 = vrot.slane %v3437, %v3444
        %v3447 = vunpack.c.l.s4 1966171168
        %v3448 = vunpack.c.0.s8 %v3447
        %v3449 = vlaneseq
        %v3450 = vshrl.u32 %v3449, 7
        %v3451 = vsub.s32 %v3448, %v3450
        %v3452 = vrot.slane %v3438, %v3451
        %v3453 = vcombine.low %v3445, %v3452
        %v3454 = vcombine.low %v2722, %v2705
        %v3455 = vcombine.low %v2719, %v2721
        %v3456 = vcombine.low %v2723, %v2747
        %v3458 = vunpack.c.l.s4 1966171168
        %v3459 = vunpack.c.0.s8 %v3458
        %v3460 = vlaneseq
        %v3461 = vshrl.u32 %v3460, 7
        %v3462 = vsub.s32 %v3459, %v3461
        %v3463 = vrot.slane %v3454, %v3462
        %v3465 = vunpack.c.l.s4 1966171168
        %v3466 = vunpack.c.0.s8 %v3465
        %v3467 = vlaneseq
        %v3468 = vshrl.u32 %v3467, 7
        %v3469 = vsub.s32 %v3466, %v3468
        %v3470 = vrot.slane %v3455, %v3469
        %v3472 = vunpack.c.l.s4 1966171168
        %v3473 = vunpack.c.0.s8 %v3472
        %v3474 = vlaneseq
        %v3475 = vshrl.u32 %v3474, 7
        %v3476 = vsub.s32 %v3473, %v3475
        %v3477 = vrot.slane %v3456, %v3476
        %v3479 = vunpack.c.l.s4 1966171168
        %v3480 = vunpack.c.0.s8 %v3479
        %v3481 = vlaneseq
        %v3482 = vshrl.u32 %v3481, 7
        %v3483 = vsub.s32 %v3480, %v3482
        %v3484 = vrot.slane %v2761, %v3483
        %v3485 = vcombine.low %v3463, %v3470
        %v3486 = vcombine.low %v3477, %v3484
        %v3488 = vunpack.c.l.s4 1966171168
        %v3489 = vunpack.c.0.s8 %v3488
        %v3490 = vlaneseq
        %v3491 = vshrl.u32 %v3490, 7
        %v3492 = vsub.s32 %v3489, %v3491
        %v3493 = vrot.slane %v3485, %v3492
        %v3495 = vunpack.c.l.s4 1966171168
        %v3496 = vunpack.c.0.s8 %v3495
        %v3497 = vlaneseq
        %v3498 = vshrl.u32 %v3497, 7
        %v3499 = vsub.s32 %v3496, %v3498
        %v3500 = vrot.slane %v3486, %v3499
        %v3501 = vcombine.low %v3493, %v3500
        %v3502 = vcombine.low %v2769, %v2771
        %v3503 = vcombine.low %v2754, %v2768
        %v3504 = vcombine.low %v2770, %v2772
        %v3505 = vcombine.low %v2796, %v2810
        %v3507 = vunpack.c.l.s4 1966171168
        %v3508 = vunpack.c.0.s8 %v3507
        %v3509 = vlaneseq
        %v3510 = vshrl.u32 %v3509, 7
        %v3511 = vsub.s32 %v3508, %v3510
        %v3512 = vrot.slane %v3502, %v3511
        %v3514 = vunpack.c.l.s4 1966171168
        %v3515 = vunpack.c.0.s8 %v3514
        %v3516 = vlaneseq
        %v3517 = vshrl.u32 %v3516, 7
        %v3518 = vsub.s32 %v3515, %v3517
        %v3519 = vrot.slane %v3503, %v3518
        %v3521 = vunpack.c.l.s4 1966171168
        %v3522 = vunpack.c.0.s8 %v3521
        %v3523 = vlaneseq
        %v3524 = vshrl.u32 %v3523, 7
        %v3525 = vsub.s32 %v3522, %v3524
        %v3526 = vrot.slane %v3504, %v3525
        %v3528 = vunpack.c.l.s4 1966171168
        %v3529 = vunpack.c.0.s8 %v3528
        %v3530 = vlaneseq
        %v3531 = vshrl.u32 %v3530, 7
        %v3532 = vsub.s32 %v3529, %v3531
        %v3533 = vrot.slane %v3505, %v3532
        %v3534 = vcombine.low %v3512, %v3519
        %v3535 = vcombine.low %v3526, %v3533
        %v3537 = vunpack.c.l.s4 1966171168
        %v3538 = vunpack.c.0.s8 %v3537
        %v3539 = vlaneseq
        %v3540 = vshrl.u32 %v3539, 7
        %v3541 = vsub.s32 %v3538, %v3540
        %v3542 = vrot.slane %v3534, %v3541
        %v3544 = vunpack.c.l.s4 1966171168
        %v3545 = vunpack.c.0.s8 %v3544
        %v3546 = vlaneseq
        %v3547 = vshrl.u32 %v3546, 7
        %v3548 = vsub.s32 %v3545, %v3547
        %v3549 = vrot.slane %v3535, %v3548
        %v3550 = vcombine.low %v3542, %v3549
        %v3551 = vcombine.low %v2818, %v2820
        %v3552 = vcombine.low %v2803, %v2817
        %v3553 = vcombine.low %v2819, %v2821
        %v3555 = vunpack.c.l.s4 1966171168
        %v3556 = vunpack.c.0.s8 %v3555
        %v3557 = vlaneseq
        %v3558 = vshrl.u32 %v3557, 7
        %v3559 = vsub.s32 %v3556, %v3558
        %v3560 = vrot.slane %v3551, %v3559
        %v3562 = vunpack.c.l.s4 1966171168
        %v3563 = vunpack.c.0.s8 %v3562
        %v3564 = vlaneseq
        %v3565 = vshrl.u32 %v3564, 7
        %v3566 = vsub.s32 %v3563, %v3565
        %v3567 = vrot.slane %v3552, %v3566
        %v3569 = vunpack.c.l.s4 1966171168
        %v3570 = vunpack.c.0.s8 %v3569
        %v3571 = vlaneseq
        %v3572 = vshrl.u32 %v3571, 7
        %v3573 = vsub.s32 %v3570, %v3572
        %v3574 = vrot.slane %v3553, %v3573
        %v3576 = vunpack.c.l.s4 1966171168
        %v3577 = vunpack.c.0.s8 %v3576
        %v3578 = vlaneseq
        %v3579 = vshrl.u32 %v3578, 7
        %v3580 = vsub.s32 %v3577, %v3579
        %v3581 = vrot.slane %v2845, %v3580
        %v3582 = vcombine.low %v3560, %v3567
        %v3583 = vcombine.low %v3574, %v3581
        %v3585 = vunpack.c.l.s4 1966171168
        %v3586 = vunpack.c.0.s8 %v3585
        %v3587 = vlaneseq
        %v3588 = vshrl.u32 %v3587, 7
        %v3589 = vsub.s32 %v3586, %v3588
        %v3590 = vrot.slane %v3582, %v3589
        %v3592 = vunpack.c.l.s4 1966171168
        %v3593 = vunpack.c.0.s8 %v3592
        %v3594 = vlaneseq
        %v3595 = vshrl.u32 %v3594, 7
        %v3596 = vsub.s32 %v3593, %v3595
        %v3597 = vrot.slane %v3583, %v3596
        %v3598 = vcombine.low %v3590, %v3597
        %v3599 = vcombine.low %v2859, %v2867
        %v3600 = vcombine.low %v2869, %v2852
        %v3601 = vcombine.low %v2866, %v2868
        %v3602 = vcombine.low %v2870, %v2894
        %v3604 = vunpack.c.l.s4 1966171168
        %v3605 = vunpack.c.0.s8 %v3604
        %v3606 = vlaneseq
        %v3607 = vshrl.u32 %v3606, 7
        %v3608 = vsub.s32 %v3605, %v3607
        %v3609 = vrot.slane %v3599, %v3608
        %v3611 = vunpack.c.l.s4 1966171168
        %v3612 = vunpack.c.0.s8 %v3611
        %v3613 = vlaneseq
        %v3614 = vshrl.u32 %v3613, 7
        %v3615 = vsub.s32 %v3612, %v3614
        %v3616 = vrot.slane %v3600, %v3615
        %v3618 = vunpack.c.l.s4 1966171168
        %v3619 = vunpack.c.0.s8 %v3618
        %v3620 = vlaneseq
        %v3621 = vshrl.u32 %v3620, 7
        %v3622 = vsub.s32 %v3619, %v3621
        %v3623 = vrot.slane %v3601, %v3622
        %v3625 = vunpack.c.l.s4 1966171168
        %v3626 = vunpack.c.0.s8 %v3625
        %v3627 = vlaneseq
        %v3628 = vshrl.u32 %v3627, 7
        %v3629 = vsub.s32 %v3626, %v3628
        %v3630 = vrot.slane %v3602, %v3629
        %v3631 = vcombine.low %v3609, %v3616
        %v3632 = vcombine.low %v3623, %v3630
        %v3634 = vunpack.c.l.s4 1966171168
        %v3635 = vunpack.c.0.s8 %v3634
        %v3636 = vlaneseq
        %v3637 = vshrl.u32 %v3636, 7
        %v3638 = vsub.s32 %v3635, %v3637
        %v3639 = vrot.slane %v3631, %v3638
        %v3641 = vunpack.c.l.s4 1966171168
        %v3642 = vunpack.c.0.s8 %v3641
        %v3643 = vlaneseq
        %v3644 = vshrl.u32 %v3643, 7
        %v3645 = vsub.s32 %v3642, %v3644
        %v3646 = vrot.slane %v3632, %v3645
        %v3647 = vcombine.low %v3639, %v3646
        %v3648 = vcombine.low %v2908, %v2916
        %v3649 = vcombine.low %v2918, %v2901
        %v3650 = vcombine.low %v2915, %v2917
        %v3652 = vunpack.c.l.s4 1966171168
        %v3653 = vunpack.c.0.s8 %v3652
        %v3654 = vlaneseq
        %v3655 = vshrl.u32 %v3654, 7
        %v3656 = vsub.s32 %v3653, %v3655
        %v3657 = vrot.slane %v3648, %v3656
        %v3659 = vunpack.c.l.s4 1966171168
        %v3660 = vunpack.c.0.s8 %v3659
        %v3661 = vlaneseq
        %v3662 = vshrl.u32 %v3661, 7
        %v3663 = vsub.s32 %v3660, %v3662
        %v3664 = vrot.slane %v3649, %v3663
        %v3666 = vunpack.c.l.s4 1966171168
        %v3667 = vunpack.c.0.s8 %v3666
        %v3668 = vlaneseq
        %v3669 = vshrl.u32 %v3668, 7
        %v3670 = vsub.s32 %v3667, %v3669
        %v3671 = vrot.slane %v3650, %v3670
        %v3673 = vunpack.c.l.s4 1966171168
        %v3674 = vunpack.c.0.s8 %v3673
        %v3675 = vlaneseq
        %v3676 = vshrl.u32 %v3675, 7
        %v3677 = vsub.s32 %v3674, %v3676
        %v3678 = vrot.slane %v2919, %v3677
        %v3679 = vcombine.low %v3657, %v3664
        %v3680 = vcombine.low %v3671, %v3678
        %v3682 = vunpack.c.l.s4 1966171168
        %v3683 = vunpack.c.0.s8 %v3682
        %v3684 = vlaneseq
        %v3685 = vshrl.u32 %v3684, 7
        %v3686 = vsub.s32 %v3683, %v3685
        %v3687 = vrot.slane %v3679, %v3686
        %v3689 = vunpack.c.l.s4 1966171168
        %v3690 = vunpack.c.0.s8 %v3689
        %v3691 = vlaneseq
        %v3692 = vshrl.u32 %v3691, 7
        %v3693 = vsub.s32 %v3690, %v3692
        %v3694 = vrot.slane %v3680, %v3693
        %v3695 = vcombine.low %v3687, %v3694
        %v3712 = vadd.f32 %v465, %v2968
        %v3713 = vadd.f32 %v466, %v3016
        %v3714 = vadd.f32 %v467, %v3065
        %v3715 = vadd.f32 %v468, %v3113
        %v3716 = vadd.f32 %v469, %v3162
        %v3717 = vadd.f32 %v470, %v3210
        %v3718 = vadd.f32 %v471, %v3259
        %v3719 = vadd.f32 %v472, %v3307
        %v3720 = vadd.f32 %v473, %v3356
        %v3721 = vadd.f32 %v474, %v3404
        %v3722 = vadd.f32 %v475, %v3453
        %v3723 = vadd.f32 %v476, %v3501
        %v3724 = vadd.f32 %v477, %v3550
        %v3725 = vadd.f32 %v478, %v3598
        %v3726 = vadd.f32 %v479, %v3647
        %v3727 = vadd.f32 %v480, %v3695
        %3728 = vst [vmem:[#allocation2 + $0x1] sm:$0xff] %v3712
        %3729 = vst [vmem:[#allocation2 + $0x9] sm:$0x7f] %v3713
        %3730 = vst [vmem:[#allocation2 + $0x11] sm:$0xff] %v3714
        %3731 = vst [vmem:[#allocation2 + $0x19] sm:$0x7f] %v3715
        %3732 = vst [vmem:[#allocation2 + $0x21] sm:$0xff] %v3716
        %3733 = vst [vmem:[#allocation2 + $0x29] sm:$0x7f] %v3717
        %3734 = vst [vmem:[#allocation2 + $0x31] sm:$0xff] %v3718
        %3735 = vst [vmem:[#allocation2 + $0x39] sm:$0x7f] %v3719
        %3736 = vst [vmem:[#allocation2 + $0x41] sm:$0xff] %v3720
        %3737 = vst [vmem:[#allocation2 + $0x49] sm:$0x7f] %v3721
        %3738 = vst [vmem:[#allocation2 + $0x51] sm:$0xff] %v3722
        %3739 = vst [vmem:[#allocation2 + $0x59] sm:$0x7f] %v3723
        %3740 = vst [vmem:[#allocation2 + $0x61] sm:$0xff] %v3724
        %3741 = vst [vmem:[#allocation2 + $0x69] sm:$0x7f] %v3725
        %3742 = vst [vmem:[#allocation2 + $0x71] sm:$0xff] %v3726
        %3743 = vst [vmem:[#allocation2 + $0x79] sm:$0x7f] %v3727
        %v3744 = vld [vmem:[#allocation2] sm:$0xff]
        %v3745 = vld [vmem:[#allocation2 + $0x8] sm:$0x7f]
        %v3746 = vld [vmem:[#allocation2 + $0x10] sm:$0xff]
        %v3747 = vld [vmem:[#allocation2 + $0x18] sm:$0x7f]
        %v3748 = vld [vmem:[#allocation2 + $0x20] sm:$0xff]
        %v3749 = vld [vmem:[#allocation2 + $0x28] sm:$0x7f]
        %v3750 = vld [vmem:[#allocation2 + $0x30] sm:$0xff]
        %v3751 = vld [vmem:[#allocation2 + $0x38] sm:$0x7f]
        %v3752 = vld [vmem:[#allocation2 + $0x40] sm:$0xff]
        %v3753 = vld [vmem:[#allocation2 + $0x48] sm:$0x7f]
        %v3754 = vld [vmem:[#allocation2 + $0x50] sm:$0xff]
        %v3755 = vld [vmem:[#allocation2 + $0x58] sm:$0x7f]
        %v3756 = vld [vmem:[#allocation2 + $0x60] sm:$0xff]
        %v3757 = vld [vmem:[#allocation2 + $0x68] sm:$0x7f]
        %v3758 = vld [vmem:[#allocation2 + $0x70] sm:$0xff]
        %v3759 = vld [vmem:[#allocation2 + $0x78] sm:$0x7f]
        %s3760 = scalar_lea.vmem [#allocation6], 128
        %v3761 = vld [vmem:[%s3760] sm:$0xff]
        %v3762 = vld [vmem:[%s3760 + $0x8] sm:$0xff]
        %v3763 = vld [vmem:[%s3760 + $0x10] sm:$0xff]
        %v3764 = vld [vmem:[%s3760 + $0x18] sm:$0xff]
        %v3765 = vld [vmem:[%s3760 + $0x20] sm:$0xff]
        %v3766 = vld [vmem:[%s3760 + $0x28] sm:$0xff]
        %v3767 = vld [vmem:[%s3760 + $0x30] sm:$0xff]
        %v3768 = vld [vmem:[%s3760 + $0x38] sm:$0xff]
        %v3769 = vcombine.high %v582, %v582
        %v3770 = vcombine.high %v679, %v679
        %v3771 = vcombine.high %v776, %v776
        %v3772 = vcombine.high %v873, %v873
        %v3773 = vcombine.high %v970, %v970
        %v3774 = vcombine.high %v1067, %v1067
        %v3775 = vcombine.high %v1164, %v1164
        %v3776 = vcombine.high %v1261, %v1261
        %v3777 = vcombine.low %v526, %v534
        %v3778 = vcombine.low %v536, %v519
        %v3779 = vcombine.low %v533, %v535
        %v3780 = vcombine.low %v537, %v561
        %v3782 = vunpack.c.l.s4 1966171168
        %v3783 = vunpack.c.0.s8 %v3782
        %v3784 = vlaneseq
        %v3785 = vshrl.u32 %v3784, 7
        %v3786 = vsub.s32 %v3783, %v3785
        %v3787 = vrot.slane %v3777, %v3786
        %v3789 = vunpack.c.l.s4 1966171168
        %v3790 = vunpack.c.0.s8 %v3789
        %v3791 = vlaneseq
        %v3792 = vshrl.u32 %v3791, 7
        %v3793 = vsub.s32 %v3790, %v3792
        %v3794 = vrot.slane %v3778, %v3793
        %v3796 = vunpack.c.l.s4 1966171168
        %v3797 = vunpack.c.0.s8 %v3796
        %v3798 = vlaneseq
        %v3799 = vshrl.u32 %v3798, 7
        %v3800 = vsub.s32 %v3797, %v3799
        %v3801 = vrot.slane %v3779, %v3800
        %v3803 = vunpack.c.l.s4 1966171168
        %v3804 = vunpack.c.0.s8 %v3803
        %v3805 = vlaneseq
        %v3806 = vshrl.u32 %v3805, 7
        %v3807 = vsub.s32 %v3804, %v3806
        %v3808 = vrot.slane %v3780, %v3807
        %v3809 = vcombine.low %v3787, %v3794
        %v3810 = vcombine.low %v3801, %v3808
        %v3812 = vunpack.c.l.s4 1966171168
        %v3813 = vunpack.c.0.s8 %v3812
        %v3814 = vlaneseq
        %v3815 = vshrl.u32 %v3814, 7
        %v3816 = vsub.s32 %v3813, %v3815
        %v3817 = vrot.slane %v3809, %v3816
        %v3819 = vunpack.c.l.s4 1966171168
        %v3820 = vunpack.c.0.s8 %v3819
        %v3821 = vlaneseq
        %v3822 = vshrl.u32 %v3821, 7
        %v3823 = vsub.s32 %v3820, %v3822
        %v3824 = vrot.slane %v3810, %v3823
        %v3825 = vcombine.low %v3817, %v3824
        %v3826 = vcombine.low %v575, %v583
        %v3827 = vcombine.low %v585, %v568
        %v3828 = vcombine.low %v582, %v584
        %v3829 = vcombine.low %v3769, %v623
        %v3831 = vunpack.c.l.s4 1966171168
        %v3832 = vunpack.c.0.s8 %v3831
        %v3833 = vlaneseq
        %v3834 = vshrl.u32 %v3833, 7
        %v3835 = vsub.s32 %v3832, %v3834
        %v3836 = vrot.slane %v3826, %v3835
        %v3838 = vunpack.c.l.s4 1966171168
        %v3839 = vunpack.c.0.s8 %v3838
        %v3840 = vlaneseq
        %v3841 = vshrl.u32 %v3840, 7
        %v3842 = vsub.s32 %v3839, %v3841
        %v3843 = vrot.slane %v3827, %v3842
        %v3845 = vunpack.c.l.s4 1966171168
        %v3846 = vunpack.c.0.s8 %v3845
        %v3847 = vlaneseq
        %v3848 = vshrl.u32 %v3847, 7
        %v3849 = vsub.s32 %v3846, %v3848
        %v3850 = vrot.slane %v3828, %v3849
        %v3852 = vunpack.c.l.s4 1966171168
        %v3853 = vunpack.c.0.s8 %v3852
        %v3854 = vlaneseq
        %v3855 = vshrl.u32 %v3854, 7
        %v3856 = vsub.s32 %v3853, %v3855
        %v3857 = vrot.slane %v3829, %v3856
        %v3858 = vcombine.low %v3836, %v3843
        %v3859 = vcombine.low %v3850, %v3857
        %v3861 = vunpack.c.l.s4 1966171168
        %v3862 = vunpack.c.0.s8 %v3861
        %v3863 = vlaneseq
        %v3864 = vshrl.u32 %v3863, 7
        %v3865 = vsub.s32 %v3862, %v3864
        %v3866 = vrot.slane %v3858, %v3865
        %v3868 = vunpack.c.l.s4 1966171168
        %v3869 = vunpack.c.0.s8 %v3868
        %v3870 = vlaneseq
        %v3871 = vshrl.u32 %v3870, 7
        %v3872 = vsub.s32 %v3869, %v3871
        %v3873 = vrot.slane %v3859, %v3872
        %v3874 = vcombine.low %v3866, %v3873
        %v3875 = vcombine.low %v631, %v633
        %v3876 = vcombine.low %v616, %v630
        %v3877 = vcombine.low %v632, %v634
        %v3878 = vcombine.low %v658, %v672
        %v3880 = vunpack.c.l.s4 1966171168
        %v3881 = vunpack.c.0.s8 %v3880
        %v3882 = vlaneseq
        %v3883 = vshrl.u32 %v3882, 7
        %v3884 = vsub.s32 %v3881, %v3883
        %v3885 = vrot.slane %v3875, %v3884
        %v3887 = vunpack.c.l.s4 1966171168
        %v3888 = vunpack.c.0.s8 %v3887
        %v3889 = vlaneseq
        %v3890 = vshrl.u32 %v3889, 7
        %v3891 = vsub.s32 %v3888, %v3890
        %v3892 = vrot.slane %v3876, %v3891
        %v3894 = vunpack.c.l.s4 1966171168
        %v3895 = vunpack.c.0.s8 %v3894
        %v3896 = vlaneseq
        %v3897 = vshrl.u32 %v3896, 7
        %v3898 = vsub.s32 %v3895, %v3897
        %v3899 = vrot.slane %v3877, %v3898
        %v3901 = vunpack.c.l.s4 1966171168
        %v3902 = vunpack.c.0.s8 %v3901
        %v3903 = vlaneseq
        %v3904 = vshrl.u32 %v3903, 7
        %v3905 = vsub.s32 %v3902, %v3904
        %v3906 = vrot.slane %v3878, %v3905
        %v3907 = vcombine.low %v3885, %v3892
        %v3908 = vcombine.low %v3899, %v3906
        %v3910 = vunpack.c.l.s4 1966171168
        %v3911 = vunpack.c.0.s8 %v3910
        %v3912 = vlaneseq
        %v3913 = vshrl.u32 %v3912, 7
        %v3914 = vsub.s32 %v3911, %v3913
        %v3915 = vrot.slane %v3907, %v3914
        %v3917 = vunpack.c.l.s4 1966171168
        %v3918 = vunpack.c.0.s8 %v3917
        %v3919 = vlaneseq
        %v3920 = vshrl.u32 %v3919, 7
        %v3921 = vsub.s32 %v3918, %v3920
        %v3922 = vrot.slane %v3908, %v3921
        %v3923 = vcombine.low %v3915, %v3922
        %v3924 = vcombine.low %v680, %v682
        %v3925 = vcombine.low %v665, %v679
        %v3926 = vcombine.low %v681, %v3770
        %v3927 = vcombine.low %v720, %v728
        %v3929 = vunpack.c.l.s4 1966171168
        %v3930 = vunpack.c.0.s8 %v3929
        %v3931 = vlaneseq
        %v3932 = vshrl.u32 %v3931, 7
        %v3933 = vsub.s32 %v3930, %v3932
        %v3934 = vrot.slane %v3924, %v3933
        %v3936 = vunpack.c.l.s4 1966171168
        %v3937 = vunpack.c.0.s8 %v3936
        %v3938 = vlaneseq
        %v3939 = vshrl.u32 %v3938, 7
        %v3940 = vsub.s32 %v3937, %v3939
        %v3941 = vrot.slane %v3925, %v3940
        %v3943 = vunpack.c.l.s4 1966171168
        %v3944 = vunpack.c.0.s8 %v3943
        %v3945 = vlaneseq
        %v3946 = vshrl.u32 %v3945, 7
        %v3947 = vsub.s32 %v3944, %v3946
        %v3948 = vrot.slane %v3926, %v3947
        %v3950 = vunpack.c.l.s4 1966171168
        %v3951 = vunpack.c.0.s8 %v3950
        %v3952 = vlaneseq
        %v3953 = vshrl.u32 %v3952, 7
        %v3954 = vsub.s32 %v3951, %v3953
        %v3955 = vrot.slane %v3927, %v3954
        %v3956 = vcombine.low %v3934, %v3941
        %v3957 = vcombine.low %v3948, %v3955
        %v3959 = vunpack.c.l.s4 1966171168
        %v3960 = vunpack.c.0.s8 %v3959
        %v3961 = vlaneseq
        %v3962 = vshrl.u32 %v3961, 7
        %v3963 = vsub.s32 %v3960, %v3962
        %v3964 = vrot.slane %v3956, %v3963
        %v3966 = vunpack.c.l.s4 1966171168
        %v3967 = vunpack.c.0.s8 %v3966
        %v3968 = vlaneseq
        %v3969 = vshrl.u32 %v3968, 7
        %v3970 = vsub.s32 %v3967, %v3969
        %v3971 = vrot.slane %v3957, %v3970
        %v3972 = vcombine.low %v3964, %v3971
        %v3973 = vcombine.low %v730, %v713
        %v3974 = vcombine.low %v727, %v729
        %v3975 = vcombine.low %v731, %v755
        %v3976 = vcombine.low %v769, %v777
        %v3978 = vunpack.c.l.s4 1966171168
        %v3979 = vunpack.c.0.s8 %v3978
        %v3980 = vlaneseq
        %v3981 = vshrl.u32 %v3980, 7
        %v3982 = vsub.s32 %v3979, %v3981
        %v3983 = vrot.slane %v3973, %v3982
        %v3985 = vunpack.c.l.s4 1966171168
        %v3986 = vunpack.c.0.s8 %v3985
        %v3987 = vlaneseq
        %v3988 = vshrl.u32 %v3987, 7
        %v3989 = vsub.s32 %v3986, %v3988
        %v3990 = vrot.slane %v3974, %v3989
        %v3992 = vunpack.c.l.s4 1966171168
        %v3993 = vunpack.c.0.s8 %v3992
        %v3994 = vlaneseq
        %v3995 = vshrl.u32 %v3994, 7
        %v3996 = vsub.s32 %v3993, %v3995
        %v3997 = vrot.slane %v3975, %v3996
        %v3999 = vunpack.c.l.s4 1966171168
        %v4000 = vunpack.c.0.s8 %v3999
        %v4001 = vlaneseq
        %v4002 = vshrl.u32 %v4001, 7
        %v4003 = vsub.s32 %v4000, %v4002
        %v4004 = vrot.slane %v3976, %v4003
        %v4005 = vcombine.low %v3983, %v3990
        %v4006 = vcombine.low %v3997, %v4004
        %v4008 = vunpack.c.l.s4 1966171168
        %v4009 = vunpack.c.0.s8 %v4008
        %v4010 = vlaneseq
        %v4011 = vshrl.u32 %v4010, 7
        %v4012 = vsub.s32 %v4009, %v4011
        %v4013 = vrot.slane %v4005, %v4012
        %v4015 = vunpack.c.l.s4 1966171168
        %v4016 = vunpack.c.0.s8 %v4015
        %v4017 = vlaneseq
        %v4018 = vshrl.u32 %v4017, 7
        %v4019 = vsub.s32 %v4016, %v4018
        %v4020 = vrot.slane %v4006, %v4019
        %v4021 = vcombine.low %v4013, %v4020
        %v4022 = vcombine.low %v779, %v762
        %v4023 = vcombine.low %v776, %v778
        %v4024 = vcombine.low %v3771, %v817
        %v4025 = vcombine.low %v825, %v827
        %v4027 = vunpack.c.l.s4 1966171168
        %v4028 = vunpack.c.0.s8 %v4027
        %v4029 = vlaneseq
        %v4030 = vshrl.u32 %v4029, 7
        %v4031 = vsub.s32 %v4028, %v4030
        %v4032 = vrot.slane %v4022, %v4031
        %v4034 = vunpack.c.l.s4 1966171168
        %v4035 = vunpack.c.0.s8 %v4034
        %v4036 = vlaneseq
        %v4037 = vshrl.u32 %v4036, 7
        %v4038 = vsub.s32 %v4035, %v4037
        %v4039 = vrot.slane %v4023, %v4038
        %v4041 = vunpack.c.l.s4 1966171168
        %v4042 = vunpack.c.0.s8 %v4041
        %v4043 = vlaneseq
        %v4044 = vshrl.u32 %v4043, 7
        %v4045 = vsub.s32 %v4042, %v4044
        %v4046 = vrot.slane %v4024, %v4045
        %v4048 = vunpack.c.l.s4 1966171168
        %v4049 = vunpack.c.0.s8 %v4048
        %v4050 = vlaneseq
        %v4051 = vshrl.u32 %v4050, 7
        %v4052 = vsub.s32 %v4049, %v4051
        %v4053 = vrot.slane %v4025, %v4052
        %v4054 = vcombine.low %v4032, %v4039
        %v4055 = vcombine.low %v4046, %v4053
        %v4057 = vunpack.c.l.s4 1966171168
        %v4058 = vunpack.c.0.s8 %v4057
        %v4059 = vlaneseq
        %v4060 = vshrl.u32 %v4059, 7
        %v4061 = vsub.s32 %v4058, %v4060
        %v4062 = vrot.slane %v4054, %v4061
        %v4064 = vunpack.c.l.s4 1966171168
        %v4065 = vunpack.c.0.s8 %v4064
        %v4066 = vlaneseq
        %v4067 = vshrl.u32 %v4066, 7
        %v4068 = vsub.s32 %v4065, %v4067
        %v4069 = vrot.slane %v4055, %v4068
        %v4070 = vcombine.low %v4062, %v4069
        %v4071 = vcombine.low %v810, %v824
        %v4072 = vcombine.low %v826, %v828
        %v4073 = vcombine.low %v852, %v866
        %v4074 = vcombine.low %v874, %v876
        %v4076 = vunpack.c.l.s4 1966171168
        %v4077 = vunpack.c.0.s8 %v4076
        %v4078 = vlaneseq
        %v4079 = vshrl.u32 %v4078, 7
        %v4080 = vsub.s32 %v4077, %v4079
        %v4081 = vrot.slane %v4071, %v4080
        %v4083 = vunpack.c.l.s4 1966171168
        %v4084 = vunpack.c.0.s8 %v4083
        %v4085 = vlaneseq
        %v4086 = vshrl.u32 %v4085, 7
        %v4087 = vsub.s32 %v4084, %v4086
        %v4088 = vrot.slane %v4072, %v4087
        %v4090 = vunpack.c.l.s4 1966171168
        %v4091 = vunpack.c.0.s8 %v4090
        %v4092 = vlaneseq
        %v4093 = vshrl.u32 %v4092, 7
        %v4094 = vsub.s32 %v4091, %v4093
        %v4095 = vrot.slane %v4073, %v4094
        %v4097 = vunpack.c.l.s4 1966171168
        %v4098 = vunpack.c.0.s8 %v4097
        %v4099 = vlaneseq
        %v4100 = vshrl.u32 %v4099, 7
        %v4101 = vsub.s32 %v4098, %v4100
        %v4102 = vrot.slane %v4074, %v4101
        %v4103 = vcombine.low %v4081, %v4088
        %v4104 = vcombine.low %v4095, %v4102
        %v4106 = vunpack.c.l.s4 1966171168
        %v4107 = vunpack.c.0.s8 %v4106
        %v4108 = vlaneseq
        %v4109 = vshrl.u32 %v4108, 7
        %v4110 = vsub.s32 %v4107, %v4109
        %v4111 = vrot.slane %v4103, %v4110
        %v4113 = vunpack.c.l.s4 1966171168
        %v4114 = vunpack.c.0.s8 %v4113
        %v4115 = vlaneseq
        %v4116 = vshrl.u32 %v4115, 7
        %v4117 = vsub.s32 %v4114, %v4116
        %v4118 = vrot.slane %v4104, %v4117
        %v4119 = vcombine.low %v4111, %v4118
        %v4120 = vcombine.low %v859, %v873
        %v4121 = vcombine.low %v875, %v3772
        %v4122 = vcombine.low %v914, %v922
        %v4123 = vcombine.low %v924, %v907
        %v4125 = vunpack.c.l.s4 1966171168
        %v4126 = vunpack.c.0.s8 %v4125
        %v4127 = vlaneseq
        %v4128 = vshrl.u32 %v4127, 7
        %v4129 = vsub.s32 %v4126, %v4128
        %v4130 = vrot.slane %v4120, %v4129
        %v4132 = vunpack.c.l.s4 1966171168
        %v4133 = vunpack.c.0.s8 %v4132
        %v4134 = vlaneseq
        %v4135 = vshrl.u32 %v4134, 7
        %v4136 = vsub.s32 %v4133, %v4135
        %v4137 = vrot.slane %v4121, %v4136
        %v4139 = vunpack.c.l.s4 1966171168
        %v4140 = vunpack.c.0.s8 %v4139
        %v4141 = vlaneseq
        %v4142 = vshrl.u32 %v4141, 7
        %v4143 = vsub.s32 %v4140, %v4142
        %v4144 = vrot.slane %v4122, %v4143
        %v4146 = vunpack.c.l.s4 1966171168
        %v4147 = vunpack.c.0.s8 %v4146
        %v4148 = vlaneseq
        %v4149 = vshrl.u32 %v4148, 7
        %v4150 = vsub.s32 %v4147, %v4149
        %v4151 = vrot.slane %v4123, %v4150
        %v4152 = vcombine.low %v4130, %v4137
        %v4153 = vcombine.low %v4144, %v4151
        %v4155 = vunpack.c.l.s4 1966171168
        %v4156 = vunpack.c.0.s8 %v4155
        %v4157 = vlaneseq
        %v4158 = vshrl.u32 %v4157, 7
        %v4159 = vsub.s32 %v4156, %v4158
        %v4160 = vrot.slane %v4152, %v4159
        %v4162 = vunpack.c.l.s4 1966171168
        %v4163 = vunpack.c.0.s8 %v4162
        %v4164 = vlaneseq
        %v4165 = vshrl.u32 %v4164, 7
        %v4166 = vsub.s32 %v4163, %v4165
        %v4167 = vrot.slane %v4153, %v4166
        %v4168 = vcombine.low %v4160, %v4167
        %v4169 = vcombine.low %v921, %v923
        %v4170 = vcombine.low %v925, %v949
        %v4171 = vcombine.low %v963, %v971
        %v4172 = vcombine.low %v973, %v956
        %v4174 = vunpack.c.l.s4 1966171168
        %v4175 = vunpack.c.0.s8 %v4174
        %v4176 = vlaneseq
        %v4177 = vshrl.u32 %v4176, 7
        %v4178 = vsub.s32 %v4175, %v4177
        %v4179 = vrot.slane %v4169, %v4178
        %v4181 = vunpack.c.l.s4 1966171168
        %v4182 = vunpack.c.0.s8 %v4181
        %v4183 = vlaneseq
        %v4184 = vshrl.u32 %v4183, 7
        %v4185 = vsub.s32 %v4182, %v4184
        %v4186 = vrot.slane %v4170, %v4185
        %v4188 = vunpack.c.l.s4 1966171168
        %v4189 = vunpack.c.0.s8 %v4188
        %v4190 = vlaneseq
        %v4191 = vshrl.u32 %v4190, 7
        %v4192 = vsub.s32 %v4189, %v4191
        %v4193 = vrot.slane %v4171, %v4192
        %v4195 = vunpack.c.l.s4 1966171168
        %v4196 = vunpack.c.0.s8 %v4195
        %v4197 = vlaneseq
        %v4198 = vshrl.u32 %v4197, 7
        %v4199 = vsub.s32 %v4196, %v4198
        %v4200 = vrot.slane %v4172, %v4199
        %v4201 = vcombine.low %v4179, %v4186
        %v4202 = vcombine.low %v4193, %v4200
        %v4204 = vunpack.c.l.s4 1966171168
        %v4205 = vunpack.c.0.s8 %v4204
        %v4206 = vlaneseq
        %v4207 = vshrl.u32 %v4206, 7
        %v4208 = vsub.s32 %v4205, %v4207
        %v4209 = vrot.slane %v4201, %v4208
        %v4211 = vunpack.c.l.s4 1966171168
        %v4212 = vunpack.c.0.s8 %v4211
        %v4213 = vlaneseq
        %v4214 = vshrl.u32 %v4213, 7
        %v4215 = vsub.s32 %v4212, %v4214
        %v4216 = vrot.slane %v4202, %v4215
        %v4217 = vcombine.low %v4209, %v4216
        %v4218 = vcombine.low %v970, %v972
        %v4219 = vcombine.low %v3773, %v1011
        %v4220 = vcombine.low %v1019, %v1021
        %v4221 = vcombine.low %v1004, %v1018
        %v4223 = vunpack.c.l.s4 1966171168
        %v4224 = vunpack.c.0.s8 %v4223
        %v4225 = vlaneseq
        %v4226 = vshrl.u32 %v4225, 7
        %v4227 = vsub.s32 %v4224, %v4226
        %v4228 = vrot.slane %v4218, %v4227
        %v4230 = vunpack.c.l.s4 1966171168
        %v4231 = vunpack.c.0.s8 %v4230
        %v4232 = vlaneseq
        %v4233 = vshrl.u32 %v4232, 7
        %v4234 = vsub.s32 %v4231, %v4233
        %v4235 = vrot.slane %v4219, %v4234
        %v4237 = vunpack.c.l.s4 1966171168
        %v4238 = vunpack.c.0.s8 %v4237
        %v4239 = vlaneseq
        %v4240 = vshrl.u32 %v4239, 7
        %v4241 = vsub.s32 %v4238, %v4240
        %v4242 = vrot.slane %v4220, %v4241
        %v4244 = vunpack.c.l.s4 1966171168
        %v4245 = vunpack.c.0.s8 %v4244
        %v4246 = vlaneseq
        %v4247 = vshrl.u32 %v4246, 7
        %v4248 = vsub.s32 %v4245, %v4247
        %v4249 = vrot.slane %v4221, %v4248
        %v4250 = vcombine.low %v4228, %v4235
        %v4251 = vcombine.low %v4242, %v4249
        %v4253 = vunpack.c.l.s4 1966171168
        %v4254 = vunpack.c.0.s8 %v4253
        %v4255 = vlaneseq
        %v4256 = vshrl.u32 %v4255, 7
        %v4257 = vsub.s32 %v4254, %v4256
        %v4258 = vrot.slane %v4250, %v4257
        %v4260 = vunpack.c.l.s4 1966171168
        %v4261 = vunpack.c.0.s8 %v4260
        %v4262 = vlaneseq
        %v4263 = vshrl.u32 %v4262, 7
        %v4264 = vsub.s32 %v4261, %v4263
        %v4265 = vrot.slane %v4251, %v4264
        %v4266 = vcombine.low %v4258, %v4265
        %v4267 = vcombine.low %v1020, %v1022
        %v4268 = vcombine.low %v1046, %v1060
        %v4269 = vcombine.low %v1068, %v1070
        %v4270 = vcombine.low %v1053, %v1067
        %v4272 = vunpack.c.l.s4 1966171168
        %v4273 = vunpack.c.0.s8 %v4272
        %v4274 = vlaneseq
        %v4275 = vshrl.u32 %v4274, 7
        %v4276 = vsub.s32 %v4273, %v4275
        %v4277 = vrot.slane %v4267, %v4276
        %v4279 = vunpack.c.l.s4 1966171168
        %v4280 = vunpack.c.0.s8 %v4279
        %v4281 = vlaneseq
        %v4282 = vshrl.u32 %v4281, 7
        %v4283 = vsub.s32 %v4280, %v4282
        %v4284 = vrot.slane %v4268, %v4283
        %v4286 = vunpack.c.l.s4 1966171168
        %v4287 = vunpack.c.0.s8 %v4286
        %v4288 = vlaneseq
        %v4289 = vshrl.u32 %v4288, 7
        %v4290 = vsub.s32 %v4287, %v4289
        %v4291 = vrot.slane %v4269, %v4290
        %v4293 = vunpack.c.l.s4 1966171168
        %v4294 = vunpack.c.0.s8 %v4293
        %v4295 = vlaneseq
        %v4296 = vshrl.u32 %v4295, 7
        %v4297 = vsub.s32 %v4294, %v4296
        %v4298 = vrot.slane %v4270, %v4297
        %v4299 = vcombine.low %v4277, %v4284
        %v4300 = vcombine.low %v4291, %v4298
        %v4302 = vunpack.c.l.s4 1966171168
        %v4303 = vunpack.c.0.s8 %v4302
        %v4304 = vlaneseq
        %v4305 = vshrl.u32 %v4304, 7
        %v4306 = vsub.s32 %v4303, %v4305
        %v4307 = vrot.slane %v4299, %v4306
        %v4309 = vunpack.c.l.s4 1966171168
        %v4310 = vunpack.c.0.s8 %v4309
        %v4311 = vlaneseq
        %v4312 = vshrl.u32 %v4311, 7
        %v4313 = vsub.s32 %v4310, %v4312
        %v4314 = vrot.slane %v4300, %v4313
        %v4315 = vcombine.low %v4307, %v4314
        %v4316 = vcombine.low %v1069, %v3774
        %v4317 = vcombine.low %v1108, %v1116
        %v4318 = vcombine.low %v1118, %v1101
        %v4319 = vcombine.low %v1115, %v1117
        %v4321 = vunpack.c.l.s4 1966171168
        %v4322 = vunpack.c.0.s8 %v4321
        %v4323 = vlaneseq
        %v4324 = vshrl.u32 %v4323, 7
        %v4325 = vsub.s32 %v4322, %v4324
        %v4326 = vrot.slane %v4316, %v4325
        %v4328 = vunpack.c.l.s4 1966171168
        %v4329 = vunpack.c.0.s8 %v4328
        %v4330 = vlaneseq
        %v4331 = vshrl.u32 %v4330, 7
        %v4332 = vsub.s32 %v4329, %v4331
        %v4333 = vrot.slane %v4317, %v4332
        %v4335 = vunpack.c.l.s4 1966171168
        %v4336 = vunpack.c.0.s8 %v4335
        %v4337 = vlaneseq
        %v4338 = vshrl.u32 %v4337, 7
        %v4339 = vsub.s32 %v4336, %v4338
        %v4340 = vrot.slane %v4318, %v4339
        %v4342 = vunpack.c.l.s4 1966171168
        %v4343 = vunpack.c.0.s8 %v4342
        %v4344 = vlaneseq
        %v4345 = vshrl.u32 %v4344, 7
        %v4346 = vsub.s32 %v4343, %v4345
        %v4347 = vrot.slane %v4319, %v4346
        %v4348 = vcombine.low %v4326, %v4333
        %v4349 = vcombine.low %v4340, %v4347
        %v4351 = vunpack.c.l.s4 1966171168
        %v4352 = vunpack.c.0.s8 %v4351
        %v4353 = vlaneseq
        %v4354 = vshrl.u32 %v4353, 7
        %v4355 = vsub.s32 %v4352, %v4354
        %v4356 = vrot.slane %v4348, %v4355
        %v4358 = vunpack.c.l.s4 1966171168
        %v4359 = vunpack.c.0.s8 %v4358
        %v4360 = vlaneseq
        %v4361 = vshrl.u32 %v4360, 7
        %v4362 = vsub.s32 %v4359, %v4361
        %v4363 = vrot.slane %v4349, %v4362
        %v4364 = vcombine.low %v4356, %v4363
        %v4365 = vcombine.low %v1119, %v1143
        %v4366 = vcombine.low %v1157, %v1165
        %v4367 = vcombine.low %v1167, %v1150
        %v4368 = vcombine.low %v1164, %v1166
        %v4370 = vunpack.c.l.s4 1966171168
        %v4371 = vunpack.c.0.s8 %v4370
        %v4372 = vlaneseq
        %v4373 = vshrl.u32 %v4372, 7
        %v4374 = vsub.s32 %v4371, %v4373
        %v4375 = vrot.slane %v4365, %v4374
        %v4377 = vunpack.c.l.s4 1966171168
        %v4378 = vunpack.c.0.s8 %v4377
        %v4379 = vlaneseq
        %v4380 = vshrl.u32 %v4379, 7
        %v4381 = vsub.s32 %v4378, %v4380
        %v4382 = vrot.slane %v4366, %v4381
        %v4384 = vunpack.c.l.s4 1966171168
        %v4385 = vunpack.c.0.s8 %v4384
        %v4386 = vlaneseq
        %v4387 = vshrl.u32 %v4386, 7
        %v4388 = vsub.s32 %v4385, %v4387
        %v4389 = vrot.slane %v4367, %v4388
        %v4391 = vunpack.c.l.s4 1966171168
        %v4392 = vunpack.c.0.s8 %v4391
        %v4393 = vlaneseq
        %v4394 = vshrl.u32 %v4393, 7
        %v4395 = vsub.s32 %v4392, %v4394
        %v4396 = vrot.slane %v4368, %v4395
        %v4397 = vcombine.low %v4375, %v4382
        %v4398 = vcombine.low %v4389, %v4396
        %v4400 = vunpack.c.l.s4 1966171168
        %v4401 = vunpack.c.0.s8 %v4400
        %v4402 = vlaneseq
        %v4403 = vshrl.u32 %v4402, 7
        %v4404 = vsub.s32 %v4401, %v4403
        %v4405 = vrot.slane %v4397, %v4404
        %v4407 = vunpack.c.l.s4 1966171168
        %v4408 = vunpack.c.0.s8 %v4407
        %v4409 = vlaneseq
        %v4410 = vshrl.u32 %v4409, 7
        %v4411 = vsub.s32 %v4408, %v4410
        %v4412 = vrot.slane %v4398, %v4411
        %v4413 = vcombine.low %v4405, %v4412
        %v4414 = vcombine.low %v3775, %v1205
        %v4415 = vcombine.low %v1213, %v1215
        %v4416 = vcombine.low %v1198, %v1212
        %v4417 = vcombine.low %v1214, %v1216
        %v4419 = vunpack.c.l.s4 1966171168
        %v4420 = vunpack.c.0.s8 %v4419
        %v4421 = vlaneseq
        %v4422 = vshrl.u32 %v4421, 7
        %v4423 = vsub.s32 %v4420, %v4422
        %v4424 = vrot.slane %v4414, %v4423
        %v4426 = vunpack.c.l.s4 1966171168
        %v4427 = vunpack.c.0.s8 %v4426
        %v4428 = vlaneseq
        %v4429 = vshrl.u32 %v4428, 7
        %v4430 = vsub.s32 %v4427, %v4429
        %v4431 = vrot.slane %v4415, %v4430
        %v4433 = vunpack.c.l.s4 1966171168
        %v4434 = vunpack.c.0.s8 %v4433
        %v4435 = vlaneseq
        %v4436 = vshrl.u32 %v4435, 7
        %v4437 = vsub.s32 %v4434, %v4436
        %v4438 = vrot.slane %v4416, %v4437
        %v4440 = vunpack.c.l.s4 1966171168
        %v4441 = vunpack.c.0.s8 %v4440
        %v4442 = vlaneseq
        %v4443 = vshrl.u32 %v4442, 7
        %v4444 = vsub.s32 %v4441, %v4443
        %v4445 = vrot.slane %v4417, %v4444
        %v4446 = vcombine.low %v4424, %v4431
        %v4447 = vcombine.low %v4438, %v4445
        %v4449 = vunpack.c.l.s4 1966171168
        %v4450 = vunpack.c.0.s8 %v4449
        %v4451 = vlaneseq
        %v4452 = vshrl.u32 %v4451, 7
        %v4453 = vsub.s32 %v4450, %v4452
        %v4454 = vrot.slane %v4446, %v4453
        %v4456 = vunpack.c.l.s4 1966171168
        %v4457 = vunpack.c.0.s8 %v4456
        %v4458 = vlaneseq
        %v4459 = vshrl.u32 %v4458, 7
        %v4460 = vsub.s32 %v4457, %v4459
        %v4461 = vrot.slane %v4447, %v4460
        %v4462 = vcombine.low %v4454, %v4461
        %v4463 = vcombine.low %v1240, %v1254
        %v4464 = vcombine.low %v1262, %v1264
        %v4465 = vcombine.low %v1247, %v1261
        %v4466 = vcombine.low %v1263, %v3776
        %v4468 = vunpack.c.l.s4 1966171168
        %v4469 = vunpack.c.0.s8 %v4468
        %v4470 = vlaneseq
        %v4471 = vshrl.u32 %v4470, 7
        %v4472 = vsub.s32 %v4469, %v4471
        %v4473 = vrot.slane %v4463, %v4472
        %v4475 = vunpack.c.l.s4 1966171168
        %v4476 = vunpack.c.0.s8 %v4475
        %v4477 = vlaneseq
        %v4478 = vshrl.u32 %v4477, 7
        %v4479 = vsub.s32 %v4476, %v4478
        %v4480 = vrot.slane %v4464, %v4479
        %v4482 = vunpack.c.l.s4 1966171168
        %v4483 = vunpack.c.0.s8 %v4482
        %v4484 = vlaneseq
        %v4485 = vshrl.u32 %v4484, 7
        %v4486 = vsub.s32 %v4483, %v4485
        %v4487 = vrot.slane %v4465, %v4486
        %v4489 = vunpack.c.l.s4 1966171168
        %v4490 = vunpack.c.0.s8 %v4489
        %v4491 = vlaneseq
        %v4492 = vshrl.u32 %v4491, 7
        %v4493 = vsub.s32 %v4490, %v4492
        %v4494 = vrot.slane %v4466, %v4493
        %v4495 = vcombine.low %v4473, %v4480
        %v4496 = vcombine.low %v4487, %v4494
        %v4498 = vunpack.c.l.s4 1966171168
        %v4499 = vunpack.c.0.s8 %v4498
        %v4500 = vlaneseq
        %v4501 = vshrl.u32 %v4500, 7
        %v4502 = vsub.s32 %v4499, %v4501
        %v4503 = vrot.slane %v4495, %v4502
        %v4505 = vunpack.c.l.s4 1966171168
        %v4506 = vunpack.c.0.s8 %v4505
        %v4507 = vlaneseq
        %v4508 = vshrl.u32 %v4507, 7
        %v4509 = vsub.s32 %v4506, %v4508
        %v4510 = vrot.slane %v4496, %v4509
        %v4511 = vcombine.low %v4503, %v4510
        %v4512 = vsel %vm239, %v3825, 0
        %v4514 = vsel %vm239, %v3874, 0
        %v4516 = vsel %vm239, %v3923, 0
        %v4518 = vsel %vm239, %v3972, 0
        %v4520 = vsel %vm239, %v4021, 0
        %v4522 = vsel %vm239, %v4070, 0
        %v4524 = vsel %vm239, %v4119, 0
        %v4526 = vsel %vm239, %v4168, 0
        %v4528 = vsel %vm239, %v4217, 0
        %v4530 = vsel %vm239, %v4266, 0
        %v4532 = vsel %vm239, %v4315, 0
        %v4534 = vsel %vm239, %v4364, 0
        %v4536 = vsel %vm239, %v4413, 0
        %v4538 = vsel %vm239, %v4462, 0
        %v4540 = vsel %vm239, %v4511, 0
        %4542 = vmatprep.subr.mxu0 0.0
        %4543 = vmatpush1.msra.mxu0 %v3761
        %4544 = vmatprep.subr.mxu0 0.0
        %4545 = vmatpush1.msra.mxu0 %v3762
        %4546 = vmatprep.subr.mxu0 0.0
        %4547 = vmatpush1.msra.mxu0 %v3763
        %4548 = vmatprep.subr.mxu0 0.0
        %4549 = vmatpush1.msra.mxu0 %v3764
        %4550 = vmatprep.subr.mxu0 0.0
        %4551 = vmatpush1.msra.mxu0 %v3765
        %4552 = vmatprep.subr.mxu0 0.0
        %4553 = vmatpush1.msra.mxu0 %v3766
        %4554 = vmatprep.subr.mxu0 0.0
        %4555 = vmatpush1.msra.mxu0 %v3767
        %4556 = vmatprep.subr.mxu0 0.0
        %4557 = vmatpush1.msra.mxu0 %v3768
        %4558 = vmatprep.subr.mxu0 0.0
        %4559 = vmatpush1.msra.mxu0 0.0
        %4560 = vmatprep.subr.mxu0 0.0
        %4561 = vmatpush1.msra.mxu0 0.0
        %4562 = vmatprep.subr.mxu0 0.0
        %4563 = vmatpush1.msra.mxu0 0.0
        %4564 = vmatprep.subr.mxu0 0.0
        %4565 = vmatpush1.msra.mxu0 0.0
        %4566 = vmatprep.subr.mxu0 0.0
        %4567 = vmatpush1.msra.mxu0 0.0
        %4568 = vmatprep.subr.mxu0 0.0
        %4569 = vmatpush1.msra.mxu0 0.0
        %4570 = vmatprep.subr.mxu0 0.0
        %4571 = vmatpush1.msra.mxu0 0.0
        %4572 = vmatprep.subr.mxu0 0.0
        %4573 = vmatpush1.msra.mxu0 0.0
        %4574 = vmatprep.subr.mxu0 0.0
        %4575 = vmatpush1.msra.mxu0 0.0
        %4576 = vmatprep.subr.mxu0 0.0
        %4577 = vmatpush1.msra.mxu0 0.0
        %4578 = vmatprep.subr.mxu0 0.0
        %4579 = vmatpush1.msra.mxu0 0.0
        %4580 = vmatprep.subr.mxu0 0.0
        %4581 = vmatpush1.msra.mxu0 0.0
        %4582 = vmatprep.subr.mxu0 0.0
        %4583 = vmatpush1.msra.mxu0 0.0
        %4584 = vmatprep.subr.mxu0 0.0
        %4585 = vmatpush1.msra.mxu0 0.0
        %4586 = vmatprep.subr.mxu0 0.0
        %4587 = vmatpush1.msra.mxu0 0.0
        %4588 = vmatprep.subr.mxu0 0.0
        %4589 = vmatpush1.msra.mxu0 0.0
        %4590 = vmatprep.subr.mxu0 0.0
        %4591 = vmatpush1.msra.mxu0 0.0
        %4592 = vmatprep.subr.mxu0 0.0
        %4593 = vmatpush1.msra.mxu0 0.0
        %4594 = vmatprep.subr.mxu0 0.0
        %4595 = vmatpush1.msra.mxu0 0.0
        %4596 = vmatprep.subr.mxu0 0.0
        %4597 = vmatpush1.msra.mxu0 0.0
        %4598 = vmatprep.subr.mxu0 0.0
        %4599 = vmatpush1.msra.mxu0 0.0
        %4600 = vmatprep.subr.mxu0 0.0
        %4601 = vmatpush1.msra.mxu0 0.0
        %4602 = vmatprep.subr.mxu0 0.0
        %4603 = vmatpush1.msra.mxu0 0.0
        %4604 = vmatprep.subr.mxu0 0.0
        %4605 = vmatpush1.msra.mxu0 0.0
        %4606 = vmatprep.mubr.f32.mxu0 0.0
        %4607 = vmatmul.mubr.f32.gmra.mrb[0].mxu0 %v4512
        %v4608 = vpop.f32.mrb[0].mxu0
        %v4609 = vadd.f32 0.0, %v4608
        %v4610 = vpop.f32.mrb[0].mxu0
        %4611 = vmatprep.mubr.f32.mxu0 0.0
        %4612 = vmatmul.mubr.f32.gmra.mrb[0].mxu0 %v4514
        %v4613 = vpop.f32.mrb[0].mxu0
        %v4614 = vadd.f32 0.0, %v4613
        %v4615 = vpop.f32.mrb[0].mxu0
        %4616 = vmatprep.mubr.f32.mxu0 0.0
        %4617 = vmatmul.mubr.f32.gmra.mrb[0].mxu0 %v4516
        %v4618 = vpop.f32.mrb[0].mxu0
        %v4619 = vadd.f32 0.0, %v4618
        %v4620 = vpop.f32.mrb[0].mxu0
        %4621 = vmatprep.mubr.f32.mxu0 0.0
        %4622 = vmatmul.mubr.f32.gmra.mrb[0].mxu0 %v4518
        %v4623 = vpop.f32.mrb[0].mxu0
        %v4624 = vadd.f32 0.0, %v4623
        %v4625 = vpop.f32.mrb[0].mxu0
        %4626 = vmatprep.mubr.f32.mxu0 0.0
        %4627 = vmatmul.mubr.f32.gmra.mrb[0].mxu0 %v4520
        %v4628 = vpop.f32.mrb[0].mxu0
        %v4629 = vadd.f32 0.0, %v4628
        %v4630 = vpop.f32.mrb[0].mxu0
        %4631 = vmatprep.mubr.f32.mxu0 0.0
        %4632 = vmatmul.mubr.f32.gmra.mrb[0].mxu0 %v4522
        %v4633 = vpop.f32.mrb[0].mxu0
        %v4634 = vadd.f32 0.0, %v4633
        %v4635 = vpop.f32.mrb[0].mxu0
        %4636 = vmatprep.mubr.f32.mxu0 0.0
        %4637 = vmatmul.mubr.f32.gmra.mrb[0].mxu0 %v4524
        %v4638 = vpop.f32.mrb[0].mxu0
        %v4639 = vadd.f32 0.0, %v4638
        %v4640 = vpop.f32.mrb[0].mxu0
        %4641 = vmatprep.mubr.f32.mxu0 0.0
        %4642 = vmatmul.mubr.f32.gmra.mrb[0].mxu0 %v4526
        %v4643 = vpop.f32.mrb[0].mxu0
        %v4644 = vadd.f32 0.0, %v4643
        %v4645 = vpop.f32.mrb[0].mxu0
        %4646 = vmatprep.mubr.f32.mxu0 0.0
        %4647 = vmatmul.mubr.f32.gmra.mrb[0].mxu0 %v4528
        %v4648 = vpop.f32.mrb[0].mxu0
        %v4649 = vadd.f32 0.0, %v4648
        %v4650 = vpop.f32.mrb[0].mxu0
        %4651 = vmatprep.mubr.f32.mxu0 0.0
        %4652 = vmatmul.mubr.f32.gmra.mrb[0].mxu0 %v4530
        %v4653 = vpop.f32.mrb[0].mxu0
        %v4654 = vadd.f32 0.0, %v4653
        %v4655 = vpop.f32.mrb[0].mxu0
        %4656 = vmatprep.mubr.f32.mxu0 0.0
        %4657 = vmatmul.mubr.f32.gmra.mrb[0].mxu0 %v4532
        %v4658 = vpop.f32.mrb[0].mxu0
        %v4659 = vadd.f32 0.0, %v4658
        %v4660 = vpop.f32.mrb[0].mxu0
        %4661 = vmatprep.mubr.f32.mxu0 0.0
        %4662 = vmatmul.mubr.f32.gmra.mrb[0].mxu0 %v4534
        %v4663 = vpop.f32.mrb[0].mxu0
        %v4664 = vadd.f32 0.0, %v4663
        %v4665 = vpop.f32.mrb[0].mxu0
        %4666 = vmatprep.mubr.f32.mxu0 0.0
        %4667 = vmatmul.mubr.f32.gmra.mrb[0].mxu0 %v4536
        %v4668 = vpop.f32.mrb[0].mxu0
        %v4669 = vadd.f32 0.0, %v4668
        %v4670 = vpop.f32.mrb[0].mxu0
        %4671 = vmatprep.mubr.f32.mxu0 0.0
        %4672 = vmatmul.mubr.f32.gmra.mrb[0].mxu0 %v4538
        %v4673 = vpop.f32.mrb[0].mxu0
        %v4674 = vadd.f32 0.0, %v4673
        %v4675 = vpop.f32.mrb[0].mxu0
        %4676 = vmatprep.mubr.f32.mxu0 0.0
        %4677 = vmatmul.mubr.f32.gmra.mrb[0].mxu0 %v4540
        %v4678 = vpop.f32.mrb[0].mxu0
        %v4679 = vadd.f32 0.0, %v4678
        %v4680 = vpop.f32.mrb[0].mxu0
        %4681 = vdwg.mxu0
        %v4697 = vcombine.high %v4609, %v4609
        %v4699 = vunpack.c.l.s4 1966171168
        %v4700 = vunpack.c.0.s8 %v4699
        %v4701 = vlaneseq
        %v4702 = vshrl.u32 %v4701, 7
        %v4703 = vsub.s32 %v4700, %v4702
        %v4704 = vrot.slane %v4609, %v4703
        %v4706 = vunpack.c.l.s4 1966171168
        %v4707 = vunpack.c.0.s8 %v4706
        %v4708 = vlaneseq
        %v4709 = vshrl.u32 %v4708, 7
        %v4710 = vsub.s32 %v4707, %v4709
        %v4711 = vrot.slane %v4697, %v4710
        %v4712 = vcombine.high %v4704, %v4704
        %v4713 = vcombine.high %v4711, %v4711
        %v4715 = vunpack.c.l.s4 1966171168
        %v4716 = vunpack.c.0.s8 %v4715
        %v4717 = vlaneseq
        %v4718 = vshrl.u32 %v4717, 7
        %v4719 = vsub.s32 %v4716, %v4718
        %v4720 = vrot.slane %v4704, %v4719
        %v4722 = vunpack.c.l.s4 1966171168
        %v4723 = vunpack.c.0.s8 %v4722
        %v4724 = vlaneseq
        %v4725 = vshrl.u32 %v4724, 7
        %v4726 = vsub.s32 %v4723, %v4725
        %v4727 = vrot.slane %v4711, %v4726
        %v4729 = vunpack.c.l.s4 1966171168
        %v4730 = vunpack.c.0.s8 %v4729
        %v4731 = vlaneseq
        %v4732 = vshrl.u32 %v4731, 7
        %v4733 = vsub.s32 %v4730, %v4732
        %v4734 = vrot.slane %v4712, %v4733
        %v4736 = vunpack.c.l.s4 1966171168
        %v4737 = vunpack.c.0.s8 %v4736
        %v4738 = vlaneseq
        %v4739 = vshrl.u32 %v4738, 7
        %v4740 = vsub.s32 %v4737, %v4739
        %v4741 = vrot.slane %v4713, %v4740
        %v4742 = vcombine.high %v4720, %v4720
        %v4743 = vcombine.high %v4727, %v4727
        %v4744 = vcombine.high %v4734, %v4734
        %v4745 = vcombine.high %v4741, %v4741
        %v4746 = vcombine.high %v4614, %v4614
        %v4748 = vunpack.c.l.s4 1966171168
        %v4749 = vunpack.c.0.s8 %v4748
        %v4750 = vlaneseq
        %v4751 = vshrl.u32 %v4750, 7
        %v4752 = vsub.s32 %v4749, %v4751
        %v4753 = vrot.slane %v4614, %v4752
        %v4755 = vunpack.c.l.s4 1966171168
        %v4756 = vunpack.c.0.s8 %v4755
        %v4757 = vlaneseq
        %v4758 = vshrl.u32 %v4757, 7
        %v4759 = vsub.s32 %v4756, %v4758
        %v4760 = vrot.slane %v4746, %v4759
        %v4761 = vcombine.high %v4753, %v4753
        %v4762 = vcombine.high %v4760, %v4760
        %v4764 = vunpack.c.l.s4 1966171168
        %v4765 = vunpack.c.0.s8 %v4764
        %v4766 = vlaneseq
        %v4767 = vshrl.u32 %v4766, 7
        %v4768 = vsub.s32 %v4765, %v4767
        %v4769 = vrot.slane %v4753, %v4768
        %v4771 = vunpack.c.l.s4 1966171168
        %v4772 = vunpack.c.0.s8 %v4771
        %v4773 = vlaneseq
        %v4774 = vshrl.u32 %v4773, 7
        %v4775 = vsub.s32 %v4772, %v4774
        %v4776 = vrot.slane %v4760, %v4775
        %v4778 = vunpack.c.l.s4 1966171168
        %v4779 = vunpack.c.0.s8 %v4778
        %v4780 = vlaneseq
        %v4781 = vshrl.u32 %v4780, 7
        %v4782 = vsub.s32 %v4779, %v4781
        %v4783 = vrot.slane %v4761, %v4782
        %v4785 = vunpack.c.l.s4 1966171168
        %v4786 = vunpack.c.0.s8 %v4785
        %v4787 = vlaneseq
        %v4788 = vshrl.u32 %v4787, 7
        %v4789 = vsub.s32 %v4786, %v4788
        %v4790 = vrot.slane %v4762, %v4789
        %v4791 = vcombine.high %v4769, %v4769
        %v4792 = vcombine.high %v4776, %v4776
        %v4793 = vcombine.high %v4783, %v4783
        %v4794 = vcombine.high %v4790, %v4790
        %v4795 = vcombine.high %v4619, %v4619
        %v4797 = vunpack.c.l.s4 1966171168
        %v4798 = vunpack.c.0.s8 %v4797
        %v4799 = vlaneseq
        %v4800 = vshrl.u32 %v4799, 7
        %v4801 = vsub.s32 %v4798, %v4800
        %v4802 = vrot.slane %v4619, %v4801
        %v4804 = vunpack.c.l.s4 1966171168
        %v4805 = vunpack.c.0.s8 %v4804
        %v4806 = vlaneseq
        %v4807 = vshrl.u32 %v4806, 7
        %v4808 = vsub.s32 %v4805, %v4807
        %v4809 = vrot.slane %v4795, %v4808
        %v4810 = vcombine.high %v4802, %v4802
        %v4811 = vcombine.high %v4809, %v4809
        %v4813 = vunpack.c.l.s4 1966171168
        %v4814 = vunpack.c.0.s8 %v4813
        %v4815 = vlaneseq
        %v4816 = vshrl.u32 %v4815, 7
        %v4817 = vsub.s32 %v4814, %v4816
        %v4818 = vrot.slane %v4802, %v4817
        %v4820 = vunpack.c.l.s4 1966171168
        %v4821 = vunpack.c.0.s8 %v4820
        %v4822 = vlaneseq
        %v4823 = vshrl.u32 %v4822, 7
        %v4824 = vsub.s32 %v4821, %v4823
        %v4825 = vrot.slane %v4809, %v4824
        %v4827 = vunpack.c.l.s4 1966171168
        %v4828 = vunpack.c.0.s8 %v4827
        %v4829 = vlaneseq
        %v4830 = vshrl.u32 %v4829, 7
        %v4831 = vsub.s32 %v4828, %v4830
        %v4832 = vrot.slane %v4810, %v4831
        %v4834 = vunpack.c.l.s4 1966171168
        %v4835 = vunpack.c.0.s8 %v4834
        %v4836 = vlaneseq
        %v4837 = vshrl.u32 %v4836, 7
        %v4838 = vsub.s32 %v4835, %v4837
        %v4839 = vrot.slane %v4811, %v4838
        %v4840 = vcombine.high %v4818, %v4818
        %v4841 = vcombine.high %v4825, %v4825
        %v4842 = vcombine.high %v4832, %v4832
        %v4843 = vcombine.high %v4839, %v4839
        %v4844 = vcombine.high %v4624, %v4624
        %v4846 = vunpack.c.l.s4 1966171168
        %v4847 = vunpack.c.0.s8 %v4846
        %v4848 = vlaneseq
        %v4849 = vshrl.u32 %v4848, 7
        %v4850 = vsub.s32 %v4847, %v4849
        %v4851 = vrot.slane %v4624, %v4850
        %v4853 = vunpack.c.l.s4 1966171168
        %v4854 = vunpack.c.0.s8 %v4853
        %v4855 = vlaneseq
        %v4856 = vshrl.u32 %v4855, 7
        %v4857 = vsub.s32 %v4854, %v4856
        %v4858 = vrot.slane %v4844, %v4857
        %v4859 = vcombine.high %v4851, %v4851
        %v4860 = vcombine.high %v4858, %v4858
        %v4862 = vunpack.c.l.s4 1966171168
        %v4863 = vunpack.c.0.s8 %v4862
        %v4864 = vlaneseq
        %v4865 = vshrl.u32 %v4864, 7
        %v4866 = vsub.s32 %v4863, %v4865
        %v4867 = vrot.slane %v4851, %v4866
        %v4869 = vunpack.c.l.s4 1966171168
        %v4870 = vunpack.c.0.s8 %v4869
        %v4871 = vlaneseq
        %v4872 = vshrl.u32 %v4871, 7
        %v4873 = vsub.s32 %v4870, %v4872
        %v4874 = vrot.slane %v4858, %v4873
        %v4876 = vunpack.c.l.s4 1966171168
        %v4877 = vunpack.c.0.s8 %v4876
        %v4878 = vlaneseq
        %v4879 = vshrl.u32 %v4878, 7
        %v4880 = vsub.s32 %v4877, %v4879
        %v4881 = vrot.slane %v4859, %v4880
        %v4883 = vunpack.c.l.s4 1966171168
        %v4884 = vunpack.c.0.s8 %v4883
        %v4885 = vlaneseq
        %v4886 = vshrl.u32 %v4885, 7
        %v4887 = vsub.s32 %v4884, %v4886
        %v4888 = vrot.slane %v4860, %v4887
        %v4889 = vcombine.high %v4867, %v4867
        %v4890 = vcombine.high %v4874, %v4874
        %v4891 = vcombine.high %v4881, %v4881
        %v4892 = vcombine.high %v4888, %v4888
        %v4893 = vcombine.high %v4629, %v4629
        %v4895 = vunpack.c.l.s4 1966171168
        %v4896 = vunpack.c.0.s8 %v4895
        %v4897 = vlaneseq
        %v4898 = vshrl.u32 %v4897, 7
        %v4899 = vsub.s32 %v4896, %v4898
        %v4900 = vrot.slane %v4629, %v4899
        %v4902 = vunpack.c.l.s4 1966171168
        %v4903 = vunpack.c.0.s8 %v4902
        %v4904 = vlaneseq
        %v4905 = vshrl.u32 %v4904, 7
        %v4906 = vsub.s32 %v4903, %v4905
        %v4907 = vrot.slane %v4893, %v4906
        %v4908 = vcombine.high %v4900, %v4900
        %v4909 = vcombine.high %v4907, %v4907
        %v4911 = vunpack.c.l.s4 1966171168
        %v4912 = vunpack.c.0.s8 %v4911
        %v4913 = vlaneseq
        %v4914 = vshrl.u32 %v4913, 7
        %v4915 = vsub.s32 %v4912, %v4914
        %v4916 = vrot.slane %v4900, %v4915
        %v4918 = vunpack.c.l.s4 1966171168
        %v4919 = vunpack.c.0.s8 %v4918
        %v4920 = vlaneseq
        %v4921 = vshrl.u32 %v4920, 7
        %v4922 = vsub.s32 %v4919, %v4921
        %v4923 = vrot.slane %v4907, %v4922
        %v4925 = vunpack.c.l.s4 1966171168
        %v4926 = vunpack.c.0.s8 %v4925
        %v4927 = vlaneseq
        %v4928 = vshrl.u32 %v4927, 7
        %v4929 = vsub.s32 %v4926, %v4928
        %v4930 = vrot.slane %v4908, %v4929
        %v4932 = vunpack.c.l.s4 1966171168
        %v4933 = vunpack.c.0.s8 %v4932
        %v4934 = vlaneseq
        %v4935 = vshrl.u32 %v4934, 7
        %v4936 = vsub.s32 %v4933, %v4935
        %v4937 = vrot.slane %v4909, %v4936
        %v4938 = vcombine.high %v4916, %v4916
        %v4939 = vcombine.high %v4923, %v4923
        %v4940 = vcombine.high %v4930, %v4930
        %v4941 = vcombine.high %v4937, %v4937
        %v4942 = vcombine.high %v4634, %v4634
        %v4944 = vunpack.c.l.s4 1966171168
        %v4945 = vunpack.c.0.s8 %v4944
        %v4946 = vlaneseq
        %v4947 = vshrl.u32 %v4946, 7
        %v4948 = vsub.s32 %v4945, %v4947
        %v4949 = vrot.slane %v4634, %v4948
        %v4951 = vunpack.c.l.s4 1966171168
        %v4952 = vunpack.c.0.s8 %v4951
        %v4953 = vlaneseq
        %v4954 = vshrl.u32 %v4953, 7
        %v4955 = vsub.s32 %v4952, %v4954
        %v4956 = vrot.slane %v4942, %v4955
        %v4957 = vcombine.high %v4949, %v4949
        %v4958 = vcombine.high %v4956, %v4956
        %v4960 = vunpack.c.l.s4 1966171168
        %v4961 = vunpack.c.0.s8 %v4960
        %v4962 = vlaneseq
        %v4963 = vshrl.u32 %v4962, 7
        %v4964 = vsub.s32 %v4961, %v4963
        %v4965 = vrot.slane %v4949, %v4964
        %v4967 = vunpack.c.l.s4 1966171168
        %v4968 = vunpack.c.0.s8 %v4967
        %v4969 = vlaneseq
        %v4970 = vshrl.u32 %v4969, 7
        %v4971 = vsub.s32 %v4968, %v4970
        %v4972 = vrot.slane %v4956, %v4971
        %v4974 = vunpack.c.l.s4 1966171168
        %v4975 = vunpack.c.0.s8 %v4974
        %v4976 = vlaneseq
        %v4977 = vshrl.u32 %v4976, 7
        %v4978 = vsub.s32 %v4975, %v4977
        %v4979 = vrot.slane %v4957, %v4978
        %v4981 = vunpack.c.l.s4 1966171168
        %v4982 = vunpack.c.0.s8 %v4981
        %v4983 = vlaneseq
        %v4984 = vshrl.u32 %v4983, 7
        %v4985 = vsub.s32 %v4982, %v4984
        %v4986 = vrot.slane %v4958, %v4985
        %v4987 = vcombine.high %v4965, %v4965
        %v4988 = vcombine.high %v4972, %v4972
        %v4989 = vcombine.high %v4979, %v4979
        %v4990 = vcombine.high %v4986, %v4986
        %v4991 = vcombine.high %v4639, %v4639
        %v4993 = vunpack.c.l.s4 1966171168
        %v4994 = vunpack.c.0.s8 %v4993
        %v4995 = vlaneseq
        %v4996 = vshrl.u32 %v4995, 7
        %v4997 = vsub.s32 %v4994, %v4996
        %v4998 = vrot.slane %v4639, %v4997
        %v5000 = vunpack.c.l.s4 1966171168
        %v5001 = vunpack.c.0.s8 %v5000
        %v5002 = vlaneseq
        %v5003 = vshrl.u32 %v5002, 7
        %v5004 = vsub.s32 %v5001, %v5003
        %v5005 = vrot.slane %v4991, %v5004
        %v5006 = vcombine.high %v4998, %v4998
        %v5007 = vcombine.high %v5005, %v5005
        %v5009 = vunpack.c.l.s4 1966171168
        %v5010 = vunpack.c.0.s8 %v5009
        %v5011 = vlaneseq
        %v5012 = vshrl.u32 %v5011, 7
        %v5013 = vsub.s32 %v5010, %v5012
        %v5014 = vrot.slane %v4998, %v5013
        %v5016 = vunpack.c.l.s4 1966171168
        %v5017 = vunpack.c.0.s8 %v5016
        %v5018 = vlaneseq
        %v5019 = vshrl.u32 %v5018, 7
        %v5020 = vsub.s32 %v5017, %v5019
        %v5021 = vrot.slane %v5005, %v5020
        %v5023 = vunpack.c.l.s4 1966171168
        %v5024 = vunpack.c.0.s8 %v5023
        %v5025 = vlaneseq
        %v5026 = vshrl.u32 %v5025, 7
        %v5027 = vsub.s32 %v5024, %v5026
        %v5028 = vrot.slane %v5006, %v5027
        %v5030 = vunpack.c.l.s4 1966171168
        %v5031 = vunpack.c.0.s8 %v5030
        %v5032 = vlaneseq
        %v5033 = vshrl.u32 %v5032, 7
        %v5034 = vsub.s32 %v5031, %v5033
        %v5035 = vrot.slane %v5007, %v5034
        %v5036 = vcombine.high %v5014, %v5014
        %v5037 = vcombine.high %v5021, %v5021
        %v5038 = vcombine.high %v5028, %v5028
        %v5039 = vcombine.high %v5035, %v5035
        %v5040 = vcombine.high %v4644, %v4644
        %v5042 = vunpack.c.l.s4 1966171168
        %v5043 = vunpack.c.0.s8 %v5042
        %v5044 = vlaneseq
        %v5045 = vshrl.u32 %v5044, 7
        %v5046 = vsub.s32 %v5043, %v5045
        %v5047 = vrot.slane %v4644, %v5046
        %v5049 = vunpack.c.l.s4 1966171168
        %v5050 = vunpack.c.0.s8 %v5049
        %v5051 = vlaneseq
        %v5052 = vshrl.u32 %v5051, 7
        %v5053 = vsub.s32 %v5050, %v5052
        %v5054 = vrot.slane %v5040, %v5053
        %v5055 = vcombine.high %v5047, %v5047
        %v5056 = vcombine.high %v5054, %v5054
        %v5058 = vunpack.c.l.s4 1966171168
        %v5059 = vunpack.c.0.s8 %v5058
        %v5060 = vlaneseq
        %v5061 = vshrl.u32 %v5060, 7
        %v5062 = vsub.s32 %v5059, %v5061
        %v5063 = vrot.slane %v5047, %v5062
        %v5065 = vunpack.c.l.s4 1966171168
        %v5066 = vunpack.c.0.s8 %v5065
        %v5067 = vlaneseq
        %v5068 = vshrl.u32 %v5067, 7
        %v5069 = vsub.s32 %v5066, %v5068
        %v5070 = vrot.slane %v5054, %v5069
        %v5072 = vunpack.c.l.s4 1966171168
        %v5073 = vunpack.c.0.s8 %v5072
        %v5074 = vlaneseq
        %v5075 = vshrl.u32 %v5074, 7
        %v5076 = vsub.s32 %v5073, %v5075
        %v5077 = vrot.slane %v5055, %v5076
        %v5079 = vunpack.c.l.s4 1966171168
        %v5080 = vunpack.c.0.s8 %v5079
        %v5081 = vlaneseq
        %v5082 = vshrl.u32 %v5081, 7
        %v5083 = vsub.s32 %v5080, %v5082
        %v5084 = vrot.slane %v5056, %v5083
        %v5085 = vcombine.high %v5063, %v5063
        %v5086 = vcombine.high %v5070, %v5070
        %v5087 = vcombine.high %v5077, %v5077
        %v5088 = vcombine.high %v5084, %v5084
        %v5089 = vcombine.high %v4649, %v4649
        %v5091 = vunpack.c.l.s4 1966171168
        %v5092 = vunpack.c.0.s8 %v5091
        %v5093 = vlaneseq
        %v5094 = vshrl.u32 %v5093, 7
        %v5095 = vsub.s32 %v5092, %v5094
        %v5096 = vrot.slane %v4649, %v5095
        %v5098 = vunpack.c.l.s4 1966171168
        %v5099 = vunpack.c.0.s8 %v5098
        %v5100 = vlaneseq
        %v5101 = vshrl.u32 %v5100, 7
        %v5102 = vsub.s32 %v5099, %v5101
        %v5103 = vrot.slane %v5089, %v5102
        %v5104 = vcombine.high %v5096, %v5096
        %v5105 = vcombine.high %v5103, %v5103
        %v5107 = vunpack.c.l.s4 1966171168
        %v5108 = vunpack.c.0.s8 %v5107
        %v5109 = vlaneseq
        %v5110 = vshrl.u32 %v5109, 7
        %v5111 = vsub.s32 %v5108, %v5110
        %v5112 = vrot.slane %v5096, %v5111
        %v5114 = vunpack.c.l.s4 1966171168
        %v5115 = vunpack.c.0.s8 %v5114
        %v5116 = vlaneseq
        %v5117 = vshrl.u32 %v5116, 7
        %v5118 = vsub.s32 %v5115, %v5117
        %v5119 = vrot.slane %v5103, %v5118
        %v5121 = vunpack.c.l.s4 1966171168
        %v5122 = vunpack.c.0.s8 %v5121
        %v5123 = vlaneseq
        %v5124 = vshrl.u32 %v5123, 7
        %v5125 = vsub.s32 %v5122, %v5124
        %v5126 = vrot.slane %v5104, %v5125
        %v5128 = vunpack.c.l.s4 1966171168
        %v5129 = vunpack.c.0.s8 %v5128
        %v5130 = vlaneseq
        %v5131 = vshrl.u32 %v5130, 7
        %v5132 = vsub.s32 %v5129, %v5131
        %v5133 = vrot.slane %v5105, %v5132
        %v5134 = vcombine.high %v5112, %v5112
        %v5135 = vcombine.high %v5119, %v5119
        %v5136 = vcombine.high %v5126, %v5126
        %v5137 = vcombine.high %v5133, %v5133
        %v5138 = vcombine.high %v4654, %v4654
        %v5140 = vunpack.c.l.s4 1966171168
        %v5141 = vunpack.c.0.s8 %v5140
        %v5142 = vlaneseq
        %v5143 = vshrl.u32 %v5142, 7
        %v5144 = vsub.s32 %v5141, %v5143
        %v5145 = vrot.slane %v4654, %v5144
        %v5147 = vunpack.c.l.s4 1966171168
        %v5148 = vunpack.c.0.s8 %v5147
        %v5149 = vlaneseq
        %v5150 = vshrl.u32 %v5149, 7
        %v5151 = vsub.s32 %v5148, %v5150
        %v5152 = vrot.slane %v5138, %v5151
        %v5153 = vcombine.high %v5145, %v5145
        %v5154 = vcombine.high %v5152, %v5152
        %v5156 = vunpack.c.l.s4 1966171168
        %v5157 = vunpack.c.0.s8 %v5156
        %v5158 = vlaneseq
        %v5159 = vshrl.u32 %v5158, 7
        %v5160 = vsub.s32 %v5157, %v5159
        %v5161 = vrot.slane %v5145, %v5160
        %v5163 = vunpack.c.l.s4 1966171168
        %v5164 = vunpack.c.0.s8 %v5163
        %v5165 = vlaneseq
        %v5166 = vshrl.u32 %v5165, 7
        %v5167 = vsub.s32 %v5164, %v5166
        %v5168 = vrot.slane %v5152, %v5167
        %v5170 = vunpack.c.l.s4 1966171168
        %v5171 = vunpack.c.0.s8 %v5170
        %v5172 = vlaneseq
        %v5173 = vshrl.u32 %v5172, 7
        %v5174 = vsub.s32 %v5171, %v5173
        %v5175 = vrot.slane %v5153, %v5174
        %v5177 = vunpack.c.l.s4 1966171168
        %v5178 = vunpack.c.0.s8 %v5177
        %v5179 = vlaneseq
        %v5180 = vshrl.u32 %v5179, 7
        %v5181 = vsub.s32 %v5178, %v5180
        %v5182 = vrot.slane %v5154, %v5181
        %v5183 = vcombine.high %v5161, %v5161
        %v5184 = vcombine.high %v5168, %v5168
        %v5185 = vcombine.high %v5175, %v5175
        %v5186 = vcombine.high %v5182, %v5182
        %v5187 = vcombine.high %v4659, %v4659
        %v5189 = vunpack.c.l.s4 1966171168
        %v5190 = vunpack.c.0.s8 %v5189
        %v5191 = vlaneseq
        %v5192 = vshrl.u32 %v5191, 7
        %v5193 = vsub.s32 %v5190, %v5192
        %v5194 = vrot.slane %v4659, %v5193
        %v5196 = vunpack.c.l.s4 1966171168
        %v5197 = vunpack.c.0.s8 %v5196
        %v5198 = vlaneseq
        %v5199 = vshrl.u32 %v5198, 7
        %v5200 = vsub.s32 %v5197, %v5199
        %v5201 = vrot.slane %v5187, %v5200
        %v5202 = vcombine.high %v5194, %v5194
        %v5203 = vcombine.high %v5201, %v5201
        %v5205 = vunpack.c.l.s4 1966171168
        %v5206 = vunpack.c.0.s8 %v5205
        %v5207 = vlaneseq
        %v5208 = vshrl.u32 %v5207, 7
        %v5209 = vsub.s32 %v5206, %v5208
        %v5210 = vrot.slane %v5194, %v5209
        %v5212 = vunpack.c.l.s4 1966171168
        %v5213 = vunpack.c.0.s8 %v5212
        %v5214 = vlaneseq
        %v5215 = vshrl.u32 %v5214, 7
        %v5216 = vsub.s32 %v5213, %v5215
        %v5217 = vrot.slane %v5201, %v5216
        %v5219 = vunpack.c.l.s4 1966171168
        %v5220 = vunpack.c.0.s8 %v5219
        %v5221 = vlaneseq
        %v5222 = vshrl.u32 %v5221, 7
        %v5223 = vsub.s32 %v5220, %v5222
        %v5224 = vrot.slane %v5202, %v5223
        %v5226 = vunpack.c.l.s4 1966171168
        %v5227 = vunpack.c.0.s8 %v5226
        %v5228 = vlaneseq
        %v5229 = vshrl.u32 %v5228, 7
        %v5230 = vsub.s32 %v5227, %v5229
        %v5231 = vrot.slane %v5203, %v5230
        %v5232 = vcombine.high %v5210, %v5210
        %v5233 = vcombine.high %v5217, %v5217
        %v5234 = vcombine.high %v5224, %v5224
        %v5235 = vcombine.high %v5231, %v5231
        %v5236 = vcombine.high %v4664, %v4664
        %v5238 = vunpack.c.l.s4 1966171168
        %v5239 = vunpack.c.0.s8 %v5238
        %v5240 = vlaneseq
        %v5241 = vshrl.u32 %v5240, 7
        %v5242 = vsub.s32 %v5239, %v5241
        %v5243 = vrot.slane %v4664, %v5242
        %v5245 = vunpack.c.l.s4 1966171168
        %v5246 = vunpack.c.0.s8 %v5245
        %v5247 = vlaneseq
        %v5248 = vshrl.u32 %v5247, 7
        %v5249 = vsub.s32 %v5246, %v5248
        %v5250 = vrot.slane %v5236, %v5249
        %v5251 = vcombine.high %v5243, %v5243
        %v5252 = vcombine.high %v5250, %v5250
        %v5254 = vunpack.c.l.s4 1966171168
        %v5255 = vunpack.c.0.s8 %v5254
        %v5256 = vlaneseq
        %v5257 = vshrl.u32 %v5256, 7
        %v5258 = vsub.s32 %v5255, %v5257
        %v5259 = vrot.slane %v5243, %v5258
        %v5261 = vunpack.c.l.s4 1966171168
        %v5262 = vunpack.c.0.s8 %v5261
        %v5263 = vlaneseq
        %v5264 = vshrl.u32 %v5263, 7
        %v5265 = vsub.s32 %v5262, %v5264
        %v5266 = vrot.slane %v5250, %v5265
        %v5268 = vunpack.c.l.s4 1966171168
        %v5269 = vunpack.c.0.s8 %v5268
        %v5270 = vlaneseq
        %v5271 = vshrl.u32 %v5270, 7
        %v5272 = vsub.s32 %v5269, %v5271
        %v5273 = vrot.slane %v5251, %v5272
        %v5275 = vunpack.c.l.s4 1966171168
        %v5276 = vunpack.c.0.s8 %v5275
        %v5277 = vlaneseq
        %v5278 = vshrl.u32 %v5277, 7
        %v5279 = vsub.s32 %v5276, %v5278
        %v5280 = vrot.slane %v5252, %v5279
        %v5281 = vcombine.high %v5259, %v5259
        %v5282 = vcombine.high %v5266, %v5266
        %v5283 = vcombine.high %v5273, %v5273
        %v5284 = vcombine.high %v5280, %v5280
        %v5285 = vcombine.high %v4669, %v4669
        %v5287 = vunpack.c.l.s4 1966171168
        %v5288 = vunpack.c.0.s8 %v5287
        %v5289 = vlaneseq
        %v5290 = vshrl.u32 %v5289, 7
        %v5291 = vsub.s32 %v5288, %v5290
        %v5292 = vrot.slane %v4669, %v5291
        %v5294 = vunpack.c.l.s4 1966171168
        %v5295 = vunpack.c.0.s8 %v5294
        %v5296 = vlaneseq
        %v5297 = vshrl.u32 %v5296, 7
        %v5298 = vsub.s32 %v5295, %v5297
        %v5299 = vrot.slane %v5285, %v5298
        %v5300 = vcombine.high %v5292, %v5292
        %v5301 = vcombine.high %v5299, %v5299
        %v5303 = vunpack.c.l.s4 1966171168
        %v5304 = vunpack.c.0.s8 %v5303
        %v5305 = vlaneseq
        %v5306 = vshrl.u32 %v5305, 7
        %v5307 = vsub.s32 %v5304, %v5306
        %v5308 = vrot.slane %v5292, %v5307
        %v5310 = vunpack.c.l.s4 1966171168
        %v5311 = vunpack.c.0.s8 %v5310
        %v5312 = vlaneseq
        %v5313 = vshrl.u32 %v5312, 7
        %v5314 = vsub.s32 %v5311, %v5313
        %v5315 = vrot.slane %v5299, %v5314
        %v5317 = vunpack.c.l.s4 1966171168
        %v5318 = vunpack.c.0.s8 %v5317
        %v5319 = vlaneseq
        %v5320 = vshrl.u32 %v5319, 7
        %v5321 = vsub.s32 %v5318, %v5320
        %v5322 = vrot.slane %v5300, %v5321
        %v5324 = vunpack.c.l.s4 1966171168
        %v5325 = vunpack.c.0.s8 %v5324
        %v5326 = vlaneseq
        %v5327 = vshrl.u32 %v5326, 7
        %v5328 = vsub.s32 %v5325, %v5327
        %v5329 = vrot.slane %v5301, %v5328
        %v5330 = vcombine.high %v5308, %v5308
        %v5331 = vcombine.high %v5315, %v5315
        %v5332 = vcombine.high %v5322, %v5322
        %v5333 = vcombine.high %v5329, %v5329
        %v5334 = vcombine.high %v4674, %v4674
        %v5336 = vunpack.c.l.s4 1966171168
        %v5337 = vunpack.c.0.s8 %v5336
        %v5338 = vlaneseq
        %v5339 = vshrl.u32 %v5338, 7
        %v5340 = vsub.s32 %v5337, %v5339
        %v5341 = vrot.slane %v4674, %v5340
        %v5343 = vunpack.c.l.s4 1966171168
        %v5344 = vunpack.c.0.s8 %v5343
        %v5345 = vlaneseq
        %v5346 = vshrl.u32 %v5345, 7
        %v5347 = vsub.s32 %v5344, %v5346
        %v5348 = vrot.slane %v5334, %v5347
        %v5349 = vcombine.high %v5341, %v5341
        %v5350 = vcombine.high %v5348, %v5348
        %v5352 = vunpack.c.l.s4 1966171168
        %v5353 = vunpack.c.0.s8 %v5352
        %v5354 = vlaneseq
        %v5355 = vshrl.u32 %v5354, 7
        %v5356 = vsub.s32 %v5353, %v5355
        %v5357 = vrot.slane %v5341, %v5356
        %v5359 = vunpack.c.l.s4 1966171168
        %v5360 = vunpack.c.0.s8 %v5359
        %v5361 = vlaneseq
        %v5362 = vshrl.u32 %v5361, 7
        %v5363 = vsub.s32 %v5360, %v5362
        %v5364 = vrot.slane %v5348, %v5363
        %v5366 = vunpack.c.l.s4 1966171168
        %v5367 = vunpack.c.0.s8 %v5366
        %v5368 = vlaneseq
        %v5369 = vshrl.u32 %v5368, 7
        %v5370 = vsub.s32 %v5367, %v5369
        %v5371 = vrot.slane %v5349, %v5370
        %v5373 = vunpack.c.l.s4 1966171168
        %v5374 = vunpack.c.0.s8 %v5373
        %v5375 = vlaneseq
        %v5376 = vshrl.u32 %v5375, 7
        %v5377 = vsub.s32 %v5374, %v5376
        %v5378 = vrot.slane %v5350, %v5377
        %v5379 = vcombine.high %v5357, %v5357
        %v5380 = vcombine.high %v5364, %v5364
        %v5381 = vcombine.high %v5371, %v5371
        %v5382 = vcombine.high %v5378, %v5378
        %v5383 = vcombine.high %v4679, %v4679
        %v5385 = vunpack.c.l.s4 1966171168
        %v5386 = vunpack.c.0.s8 %v5385
        %v5387 = vlaneseq
        %v5388 = vshrl.u32 %v5387, 7
        %v5389 = vsub.s32 %v5386, %v5388
        %v5390 = vrot.slane %v4679, %v5389
        %v5392 = vunpack.c.l.s4 1966171168
        %v5393 = vunpack.c.0.s8 %v5392
        %v5394 = vlaneseq
        %v5395 = vshrl.u32 %v5394, 7
        %v5396 = vsub.s32 %v5393, %v5395
        %v5397 = vrot.slane %v5383, %v5396
        %v5398 = vcombine.high %v5390, %v5390
        %v5399 = vcombine.high %v5397, %v5397
        %v5401 = vunpack.c.l.s4 1966171168
        %v5402 = vunpack.c.0.s8 %v5401
        %v5403 = vlaneseq
        %v5404 = vshrl.u32 %v5403, 7
        %v5405 = vsub.s32 %v5402, %v5404
        %v5406 = vrot.slane %v5390, %v5405
        %v5408 = vunpack.c.l.s4 1966171168
        %v5409 = vunpack.c.0.s8 %v5408
        %v5410 = vlaneseq
        %v5411 = vshrl.u32 %v5410, 7
        %v5412 = vsub.s32 %v5409, %v5411
        %v5413 = vrot.slane %v5397, %v5412
        %v5415 = vunpack.c.l.s4 1966171168
        %v5416 = vunpack.c.0.s8 %v5415
        %v5417 = vlaneseq
        %v5418 = vshrl.u32 %v5417, 7
        %v5419 = vsub.s32 %v5416, %v5418
        %v5420 = vrot.slane %v5398, %v5419
        %v5422 = vunpack.c.l.s4 1966171168
        %v5423 = vunpack.c.0.s8 %v5422
        %v5424 = vlaneseq
        %v5425 = vshrl.u32 %v5424, 7
        %v5426 = vsub.s32 %v5423, %v5425
        %v5427 = vrot.slane %v5399, %v5426
        %v5428 = vcombine.high %v5406, %v5406
        %v5429 = vcombine.high %v5413, %v5413
        %v5430 = vcombine.high %v5420, %v5420
        %v5431 = vcombine.high %v5427, %v5427
        %v5432 = vcombine.low %v4720, %v4734
        %v5433 = vcombine.low %v4742, %v4744
        %v5434 = vcombine.low %v4727, %v4741
        %v5435 = vcombine.low %v4743, %v4745
        %v5437 = vunpack.c.l.s4 1966171168
        %v5438 = vunpack.c.0.s8 %v5437
        %v5439 = vlaneseq
        %v5440 = vshrl.u32 %v5439, 7
        %v5441 = vsub.s32 %v5438, %v5440
        %v5442 = vrot.slane %v5432, %v5441
        %v5444 = vunpack.c.l.s4 1966171168
        %v5445 = vunpack.c.0.s8 %v5444
        %v5446 = vlaneseq
        %v5447 = vshrl.u32 %v5446, 7
        %v5448 = vsub.s32 %v5445, %v5447
        %v5449 = vrot.slane %v5433, %v5448
        %v5451 = vunpack.c.l.s4 1966171168
        %v5452 = vunpack.c.0.s8 %v5451
        %v5453 = vlaneseq
        %v5454 = vshrl.u32 %v5453, 7
        %v5455 = vsub.s32 %v5452, %v5454
        %v5456 = vrot.slane %v5434, %v5455
        %v5458 = vunpack.c.l.s4 1966171168
        %v5459 = vunpack.c.0.s8 %v5458
        %v5460 = vlaneseq
        %v5461 = vshrl.u32 %v5460, 7
        %v5462 = vsub.s32 %v5459, %v5461
        %v5463 = vrot.slane %v5435, %v5462
        %v5464 = vcombine.low %v5442, %v5449
        %v5465 = vcombine.low %v5456, %v5463
        %v5467 = vunpack.c.l.s4 1966171168
        %v5468 = vunpack.c.0.s8 %v5467
        %v5469 = vlaneseq
        %v5470 = vshrl.u32 %v5469, 7
        %v5471 = vsub.s32 %v5468, %v5470
        %v5472 = vrot.slane %v5464, %v5471
        %v5474 = vunpack.c.l.s4 1966171168
        %v5475 = vunpack.c.0.s8 %v5474
        %v5476 = vlaneseq
        %v5477 = vshrl.u32 %v5476, 7
        %v5478 = vsub.s32 %v5475, %v5477
        %v5479 = vrot.slane %v5465, %v5478
        %v5480 = vcombine.low %v5472, %v5479
        %v5481 = vcombine.low %v4769, %v4783
        %v5482 = vcombine.low %v4791, %v4793
        %v5483 = vcombine.low %v4776, %v4790
        %v5485 = vunpack.c.l.s4 1966171168
        %v5486 = vunpack.c.0.s8 %v5485
        %v5487 = vlaneseq
        %v5488 = vshrl.u32 %v5487, 7
        %v5489 = vsub.s32 %v5486, %v5488
        %v5490 = vrot.slane %v5481, %v5489
        %v5492 = vunpack.c.l.s4 1966171168
        %v5493 = vunpack.c.0.s8 %v5492
        %v5494 = vlaneseq
        %v5495 = vshrl.u32 %v5494, 7
        %v5496 = vsub.s32 %v5493, %v5495
        %v5497 = vrot.slane %v5482, %v5496
        %v5499 = vunpack.c.l.s4 1966171168
        %v5500 = vunpack.c.0.s8 %v5499
        %v5501 = vlaneseq
        %v5502 = vshrl.u32 %v5501, 7
        %v5503 = vsub.s32 %v5500, %v5502
        %v5504 = vrot.slane %v5483, %v5503
        %v5506 = vunpack.c.l.s4 1966171168
        %v5507 = vunpack.c.0.s8 %v5506
        %v5508 = vlaneseq
        %v5509 = vshrl.u32 %v5508, 7
        %v5510 = vsub.s32 %v5507, %v5509
        %v5511 = vrot.slane %v4792, %v5510
        %v5512 = vcombine.low %v5490, %v5497
        %v5513 = vcombine.low %v5504, %v5511
        %v5515 = vunpack.c.l.s4 1966171168
        %v5516 = vunpack.c.0.s8 %v5515
        %v5517 = vlaneseq
        %v5518 = vshrl.u32 %v5517, 7
        %v5519 = vsub.s32 %v5516, %v5518
        %v5520 = vrot.slane %v5512, %v5519
        %v5522 = vunpack.c.l.s4 1966171168
        %v5523 = vunpack.c.0.s8 %v5522
        %v5524 = vlaneseq
        %v5525 = vshrl.u32 %v5524, 7
        %v5526 = vsub.s32 %v5523, %v5525
        %v5527 = vrot.slane %v5513, %v5526
        %v5528 = vcombine.low %v5520, %v5527
        %v5529 = vcombine.low %v4794, %v4818
        %v5530 = vcombine.low %v4832, %v4840
        %v5531 = vcombine.low %v4842, %v4825
        %v5532 = vcombine.low %v4839, %v4841
        %v5534 = vunpack.c.l.s4 1966171168
        %v5535 = vunpack.c.0.s8 %v5534
        %v5536 = vlaneseq
        %v5537 = vshrl.u32 %v5536, 7
        %v5538 = vsub.s32 %v5535, %v5537
        %v5539 = vrot.slane %v5529, %v5538
        %v5541 = vunpack.c.l.s4 1966171168
        %v5542 = vunpack.c.0.s8 %v5541
        %v5543 = vlaneseq
        %v5544 = vshrl.u32 %v5543, 7
        %v5545 = vsub.s32 %v5542, %v5544
        %v5546 = vrot.slane %v5530, %v5545
        %v5548 = vunpack.c.l.s4 1966171168
        %v5549 = vunpack.c.0.s8 %v5548
        %v5550 = vlaneseq
        %v5551 = vshrl.u32 %v5550, 7
        %v5552 = vsub.s32 %v5549, %v5551
        %v5553 = vrot.slane %v5531, %v5552
        %v5555 = vunpack.c.l.s4 1966171168
        %v5556 = vunpack.c.0.s8 %v5555
        %v5557 = vlaneseq
        %v5558 = vshrl.u32 %v5557, 7
        %v5559 = vsub.s32 %v5556, %v5558
        %v5560 = vrot.slane %v5532, %v5559
        %v5561 = vcombine.low %v5539, %v5546
        %v5562 = vcombine.low %v5553, %v5560
        %v5564 = vunpack.c.l.s4 1966171168
        %v5565 = vunpack.c.0.s8 %v5564
        %v5566 = vlaneseq
        %v5567 = vshrl.u32 %v5566, 7
        %v5568 = vsub.s32 %v5565, %v5567
        %v5569 = vrot.slane %v5561, %v5568
        %v5571 = vunpack.c.l.s4 1966171168
        %v5572 = vunpack.c.0.s8 %v5571
        %v5573 = vlaneseq
        %v5574 = vshrl.u32 %v5573, 7
        %v5575 = vsub.s32 %v5572, %v5574
        %v5576 = vrot.slane %v5562, %v5575
        %v5577 = vcombine.low %v5569, %v5576
        %v5578 = vcombine.low %v4843, %v4867
        %v5579 = vcombine.low %v4881, %v4889
        %v5580 = vcombine.low %v4891, %v4874
        %v5582 = vunpack.c.l.s4 1966171168
        %v5583 = vunpack.c.0.s8 %v5582
        %v5584 = vlaneseq
        %v5585 = vshrl.u32 %v5584, 7
        %v5586 = vsub.s32 %v5583, %v5585
        %v5587 = vrot.slane %v5578, %v5586
        %v5589 = vunpack.c.l.s4 1966171168
        %v5590 = vunpack.c.0.s8 %v5589
        %v5591 = vlaneseq
        %v5592 = vshrl.u32 %v5591, 7
        %v5593 = vsub.s32 %v5590, %v5592
        %v5594 = vrot.slane %v5579, %v5593
        %v5596 = vunpack.c.l.s4 1966171168
        %v5597 = vunpack.c.0.s8 %v5596
        %v5598 = vlaneseq
        %v5599 = vshrl.u32 %v5598, 7
        %v5600 = vsub.s32 %v5597, %v5599
        %v5601 = vrot.slane %v5580, %v5600
        %v5603 = vunpack.c.l.s4 1966171168
        %v5604 = vunpack.c.0.s8 %v5603
        %v5605 = vlaneseq
        %v5606 = vshrl.u32 %v5605, 7
        %v5607 = vsub.s32 %v5604, %v5606
        %v5608 = vrot.slane %v4888, %v5607
        %v5609 = vcombine.low %v5587, %v5594
        %v5610 = vcombine.low %v5601, %v5608
        %v5612 = vunpack.c.l.s4 1966171168
        %v5613 = vunpack.c.0.s8 %v5612
        %v5614 = vlaneseq
        %v5615 = vshrl.u32 %v5614, 7
        %v5616 = vsub.s32 %v5613, %v5615
        %v5617 = vrot.slane %v5609, %v5616
        %v5619 = vunpack.c.l.s4 1966171168
        %v5620 = vunpack.c.0.s8 %v5619
        %v5621 = vlaneseq
        %v5622 = vshrl.u32 %v5621, 7
        %v5623 = vsub.s32 %v5620, %v5622
        %v5624 = vrot.slane %v5610, %v5623
        %v5625 = vcombine.low %v5617, %v5624
        %v5626 = vcombine.low %v4890, %v4892
        %v5627 = vcombine.low %v4916, %v4930
        %v5628 = vcombine.low %v4938, %v4940
        %v5629 = vcombine.low %v4923, %v4937
        %v5631 = vunpack.c.l.s4 1966171168
        %v5632 = vunpack.c.0.s8 %v5631
        %v5633 = vlaneseq
        %v5634 = vshrl.u32 %v5633, 7
        %v5635 = vsub.s32 %v5632, %v5634
        %v5636 = vrot.slane %v5626, %v5635
        %v5638 = vunpack.c.l.s4 1966171168
        %v5639 = vunpack.c.0.s8 %v5638
        %v5640 = vlaneseq
        %v5641 = vshrl.u32 %v5640, 7
        %v5642 = vsub.s32 %v5639, %v5641
        %v5643 = vrot.slane %v5627, %v5642
        %v5645 = vunpack.c.l.s4 1966171168
        %v5646 = vunpack.c.0.s8 %v5645
        %v5647 = vlaneseq
        %v5648 = vshrl.u32 %v5647, 7
        %v5649 = vsub.s32 %v5646, %v5648
        %v5650 = vrot.slane %v5628, %v5649
        %v5652 = vunpack.c.l.s4 1966171168
        %v5653 = vunpack.c.0.s8 %v5652
        %v5654 = vlaneseq
        %v5655 = vshrl.u32 %v5654, 7
        %v5656 = vsub.s32 %v5653, %v5655
        %v5657 = vrot.slane %v5629, %v5656
        %v5658 = vcombine.low %v5636, %v5643
        %v5659 = vcombine.low %v5650, %v5657
        %v5661 = vunpack.c.l.s4 1966171168
        %v5662 = vunpack.c.0.s8 %v5661
        %v5663 = vlaneseq
        %v5664 = vshrl.u32 %v5663, 7
        %v5665 = vsub.s32 %v5662, %v5664
        %v5666 = vrot.slane %v5658, %v5665
        %v5668 = vunpack.c.l.s4 1966171168
        %v5669 = vunpack.c.0.s8 %v5668
        %v5670 = vlaneseq
        %v5671 = vshrl.u32 %v5670, 7
        %v5672 = vsub.s32 %v5669, %v5671
        %v5673 = vrot.slane %v5659, %v5672
        %v5674 = vcombine.low %v5666, %v5673
        %v5675 = vcombine.low %v4939, %v4941
        %v5676 = vcombine.low %v4965, %v4979
        %v5677 = vcombine.low %v4987, %v4989
        %v5679 = vunpack.c.l.s4 1966171168
        %v5680 = vunpack.c.0.s8 %v5679
        %v5681 = vlaneseq
        %v5682 = vshrl.u32 %v5681, 7
        %v5683 = vsub.s32 %v5680, %v5682
        %v5684 = vrot.slane %v5675, %v5683
        %v5686 = vunpack.c.l.s4 1966171168
        %v5687 = vunpack.c.0.s8 %v5686
        %v5688 = vlaneseq
        %v5689 = vshrl.u32 %v5688, 7
        %v5690 = vsub.s32 %v5687, %v5689
        %v5691 = vrot.slane %v5676, %v5690
        %v5693 = vunpack.c.l.s4 1966171168
        %v5694 = vunpack.c.0.s8 %v5693
        %v5695 = vlaneseq
        %v5696 = vshrl.u32 %v5695, 7
        %v5697 = vsub.s32 %v5694, %v5696
        %v5698 = vrot.slane %v5677, %v5697
        %v5700 = vunpack.c.l.s4 1966171168
        %v5701 = vunpack.c.0.s8 %v5700
        %v5702 = vlaneseq
        %v5703 = vshrl.u32 %v5702, 7
        %v5704 = vsub.s32 %v5701, %v5703
        %v5705 = vrot.slane %v4972, %v5704
        %v5706 = vcombine.low %v5684, %v5691
        %v5707 = vcombine.low %v5698, %v5705
        %v5709 = vunpack.c.l.s4 1966171168
        %v5710 = vunpack.c.0.s8 %v5709
        %v5711 = vlaneseq
        %v5712 = vshrl.u32 %v5711, 7
        %v5713 = vsub.s32 %v5710, %v5712
        %v5714 = vrot.slane %v5706, %v5713
        %v5716 = vunpack.c.l.s4 1966171168
        %v5717 = vunpack.c.0.s8 %v5716
        %v5718 = vlaneseq
        %v5719 = vshrl.u32 %v5718, 7
        %v5720 = vsub.s32 %v5717, %v5719
        %v5721 = vrot.slane %v5707, %v5720
        %v5722 = vcombine.low %v5714, %v5721
        %v5723 = vcombine.low %v4986, %v4988
        %v5724 = vcombine.low %v4990, %v5014
        %v5725 = vcombine.low %v5028, %v5036
        %v5726 = vcombine.low %v5038, %v5021
        %v5728 = vunpack.c.l.s4 1966171168
        %v5729 = vunpack.c.0.s8 %v5728
        %v5730 = vlaneseq
        %v5731 = vshrl.u32 %v5730, 7
        %v5732 = vsub.s32 %v5729, %v5731
        %v5733 = vrot.slane %v5723, %v5732
        %v5735 = vunpack.c.l.s4 1966171168
        %v5736 = vunpack.c.0.s8 %v5735
        %v5737 = vlaneseq
        %v5738 = vshrl.u32 %v5737, 7
        %v5739 = vsub.s32 %v5736, %v5738
        %v5740 = vrot.slane %v5724, %v5739
        %v5742 = vunpack.c.l.s4 1966171168
        %v5743 = vunpack.c.0.s8 %v5742
        %v5744 = vlaneseq
        %v5745 = vshrl.u32 %v5744, 7
        %v5746 = vsub.s32 %v5743, %v5745
        %v5747 = vrot.slane %v5725, %v5746
        %v5749 = vunpack.c.l.s4 1966171168
        %v5750 = vunpack.c.0.s8 %v5749
        %v5751 = vlaneseq
        %v5752 = vshrl.u32 %v5751, 7
        %v5753 = vsub.s32 %v5750, %v5752
        %v5754 = vrot.slane %v5726, %v5753
        %v5755 = vcombine.low %v5733, %v5740
        %v5756 = vcombine.low %v5747, %v5754
        %v5758 = vunpack.c.l.s4 1966171168
        %v5759 = vunpack.c.0.s8 %v5758
        %v5760 = vlaneseq
        %v5761 = vshrl.u32 %v5760, 7
        %v5762 = vsub.s32 %v5759, %v5761
        %v5763 = vrot.slane %v5755, %v5762
        %v5765 = vunpack.c.l.s4 1966171168
        %v5766 = vunpack.c.0.s8 %v5765
        %v5767 = vlaneseq
        %v5768 = vshrl.u32 %v5767, 7
        %v5769 = vsub.s32 %v5766, %v5768
        %v5770 = vrot.slane %v5756, %v5769
        %v5771 = vcombine.low %v5763, %v5770
        %v5772 = vcombine.low %v5035, %v5037
        %v5773 = vcombine.low %v5039, %v5063
        %v5774 = vcombine.low %v5077, %v5085
        %v5776 = vunpack.c.l.s4 1966171168
        %v5777 = vunpack.c.0.s8 %v5776
        %v5778 = vlaneseq
        %v5779 = vshrl.u32 %v5778, 7
        %v5780 = vsub.s32 %v5777, %v5779
        %v5781 = vrot.slane %v5772, %v5780
        %v5783 = vunpack.c.l.s4 1966171168
        %v5784 = vunpack.c.0.s8 %v5783
        %v5785 = vlaneseq
        %v5786 = vshrl.u32 %v5785, 7
        %v5787 = vsub.s32 %v5784, %v5786
        %v5788 = vrot.slane %v5773, %v5787
        %v5790 = vunpack.c.l.s4 1966171168
        %v5791 = vunpack.c.0.s8 %v5790
        %v5792 = vlaneseq
        %v5793 = vshrl.u32 %v5792, 7
        %v5794 = vsub.s32 %v5791, %v5793
        %v5795 = vrot.slane %v5774, %v5794
        %v5797 = vunpack.c.l.s4 1966171168
        %v5798 = vunpack.c.0.s8 %v5797
        %v5799 = vlaneseq
        %v5800 = vshrl.u32 %v5799, 7
        %v5801 = vsub.s32 %v5798, %v5800
        %v5802 = vrot.slane %v5087, %v5801
        %v5803 = vcombine.low %v5781, %v5788
        %v5804 = vcombine.low %v5795, %v5802
        %v5806 = vunpack.c.l.s4 1966171168
        %v5807 = vunpack.c.0.s8 %v5806
        %v5808 = vlaneseq
        %v5809 = vshrl.u32 %v5808, 7
        %v5810 = vsub.s32 %v5807, %v5809
        %v5811 = vrot.slane %v5803, %v5810
        %v5813 = vunpack.c.l.s4 1966171168
        %v5814 = vunpack.c.0.s8 %v5813
        %v5815 = vlaneseq
        %v5816 = vshrl.u32 %v5815, 7
        %v5817 = vsub.s32 %v5814, %v5816
        %v5818 = vrot.slane %v5804, %v5817
        %v5819 = vcombine.low %v5811, %v5818
        %v5820 = vcombine.low %v5070, %v5084
        %v5821 = vcombine.low %v5086, %v5088
        %v5822 = vcombine.low %v5112, %v5126
        %v5823 = vcombine.low %v5134, %v5136
        %v5825 = vunpack.c.l.s4 1966171168
        %v5826 = vunpack.c.0.s8 %v5825
        %v5827 = vlaneseq
        %v5828 = vshrl.u32 %v5827, 7
        %v5829 = vsub.s32 %v5826, %v5828
        %v5830 = vrot.slane %v5820, %v5829
        %v5832 = vunpack.c.l.s4 1966171168
        %v5833 = vunpack.c.0.s8 %v5832
        %v5834 = vlaneseq
        %v5835 = vshrl.u32 %v5834, 7
        %v5836 = vsub.s32 %v5833, %v5835
        %v5837 = vrot.slane %v5821, %v5836
        %v5839 = vunpack.c.l.s4 1966171168
        %v5840 = vunpack.c.0.s8 %v5839
        %v5841 = vlaneseq
        %v5842 = vshrl.u32 %v5841, 7
        %v5843 = vsub.s32 %v5840, %v5842
        %v5844 = vrot.slane %v5822, %v5843
        %v5846 = vunpack.c.l.s4 1966171168
        %v5847 = vunpack.c.0.s8 %v5846
        %v5848 = vlaneseq
        %v5849 = vshrl.u32 %v5848, 7
        %v5850 = vsub.s32 %v5847, %v5849
        %v5851 = vrot.slane %v5823, %v5850
        %v5852 = vcombine.low %v5830, %v5837
        %v5853 = vcombine.low %v5844, %v5851
        %v5855 = vunpack.c.l.s4 1966171168
        %v5856 = vunpack.c.0.s8 %v5855
        %v5857 = vlaneseq
        %v5858 = vshrl.u32 %v5857, 7
        %v5859 = vsub.s32 %v5856, %v5858
        %v5860 = vrot.slane %v5852, %v5859
        %v5862 = vunpack.c.l.s4 1966171168
        %v5863 = vunpack.c.0.s8 %v5862
        %v5864 = vlaneseq
        %v5865 = vshrl.u32 %v5864, 7
        %v5866 = vsub.s32 %v5863, %v5865
        %v5867 = vrot.slane %v5853, %v5866
        %v5868 = vcombine.low %v5860, %v5867
        %v5869 = vcombine.low %v5119, %v5133
        %v5870 = vcombine.low %v5135, %v5137
        %v5871 = vcombine.low %v5161, %v5175
        %v5873 = vunpack.c.l.s4 1966171168
        %v5874 = vunpack.c.0.s8 %v5873
        %v5875 = vlaneseq
        %v5876 = vshrl.u32 %v5875, 7
        %v5877 = vsub.s32 %v5874, %v5876
        %v5878 = vrot.slane %v5869, %v5877
        %v5880 = vunpack.c.l.s4 1966171168
        %v5881 = vunpack.c.0.s8 %v5880
        %v5882 = vlaneseq
        %v5883 = vshrl.u32 %v5882, 7
        %v5884 = vsub.s32 %v5881, %v5883
        %v5885 = vrot.slane %v5870, %v5884
        %v5887 = vunpack.c.l.s4 1966171168
        %v5888 = vunpack.c.0.s8 %v5887
        %v5889 = vlaneseq
        %v5890 = vshrl.u32 %v5889, 7
        %v5891 = vsub.s32 %v5888, %v5890
        %v5892 = vrot.slane %v5871, %v5891
        %v5894 = vunpack.c.l.s4 1966171168
        %v5895 = vunpack.c.0.s8 %v5894
        %v5896 = vlaneseq
        %v5897 = vshrl.u32 %v5896, 7
        %v5898 = vsub.s32 %v5895, %v5897
        %v5899 = vrot.slane %v5183, %v5898
        %v5900 = vcombine.low %v5878, %v5885
        %v5901 = vcombine.low %v5892, %v5899
        %v5903 = vunpack.c.l.s4 1966171168
        %v5904 = vunpack.c.0.s8 %v5903
        %v5905 = vlaneseq
        %v5906 = vshrl.u32 %v5905, 7
        %v5907 = vsub.s32 %v5904, %v5906
        %v5908 = vrot.slane %v5900, %v5907
        %v5910 = vunpack.c.l.s4 1966171168
        %v5911 = vunpack.c.0.s8 %v5910
        %v5912 = vlaneseq
        %v5913 = vshrl.u32 %v5912, 7
        %v5914 = vsub.s32 %v5911, %v5913
        %v5915 = vrot.slane %v5901, %v5914
        %v5916 = vcombine.low %v5908, %v5915
        %v5917 = vcombine.low %v5185, %v5168
        %v5918 = vcombine.low %v5182, %v5184
        %v5919 = vcombine.low %v5186, %v5210
        %v5920 = vcombine.low %v5224, %v5232
        %v5922 = vunpack.c.l.s4 1966171168
        %v5923 = vunpack.c.0.s8 %v5922
        %v5924 = vlaneseq
        %v5925 = vshrl.u32 %v5924, 7
        %v5926 = vsub.s32 %v5923, %v5925
        %v5927 = vrot.slane %v5917, %v5926
        %v5929 = vunpack.c.l.s4 1966171168
        %v5930 = vunpack.c.0.s8 %v5929
        %v5931 = vlaneseq
        %v5932 = vshrl.u32 %v5931, 7
        %v5933 = vsub.s32 %v5930, %v5932
        %v5934 = vrot.slane %v5918, %v5933
        %v5936 = vunpack.c.l.s4 1966171168
        %v5937 = vunpack.c.0.s8 %v5936
        %v5938 = vlaneseq
        %v5939 = vshrl.u32 %v5938, 7
        %v5940 = vsub.s32 %v5937, %v5939
        %v5941 = vrot.slane %v5919, %v5940
        %v5943 = vunpack.c.l.s4 1966171168
        %v5944 = vunpack.c.0.s8 %v5943
        %v5945 = vlaneseq
        %v5946 = vshrl.u32 %v5945, 7
        %v5947 = vsub.s32 %v5944, %v5946
        %v5948 = vrot.slane %v5920, %v5947
        %v5949 = vcombine.low %v5927, %v5934
        %v5950 = vcombine.low %v5941, %v5948
        %v5952 = vunpack.c.l.s4 1966171168
        %v5953 = vunpack.c.0.s8 %v5952
        %v5954 = vlaneseq
        %v5955 = vshrl.u32 %v5954, 7
        %v5956 = vsub.s32 %v5953, %v5955
        %v5957 = vrot.slane %v5949, %v5956
        %v5959 = vunpack.c.l.s4 1966171168
        %v5960 = vunpack.c.0.s8 %v5959
        %v5961 = vlaneseq
        %v5962 = vshrl.u32 %v5961, 7
        %v5963 = vsub.s32 %v5960, %v5962
        %v5964 = vrot.slane %v5950, %v5963
        %v5965 = vcombine.low %v5957, %v5964
        %v5966 = vcombine.low %v5234, %v5217
        %v5967 = vcombine.low %v5231, %v5233
        %v5968 = vcombine.low %v5235, %v5259
        %v5970 = vunpack.c.l.s4 1966171168
        %v5971 = vunpack.c.0.s8 %v5970
        %v5972 = vlaneseq
        %v5973 = vshrl.u32 %v5972, 7
        %v5974 = vsub.s32 %v5971, %v5973
        %v5975 = vrot.slane %v5966, %v5974
        %v5977 = vunpack.c.l.s4 1966171168
        %v5978 = vunpack.c.0.s8 %v5977
        %v5979 = vlaneseq
        %v5980 = vshrl.u32 %v5979, 7
        %v5981 = vsub.s32 %v5978, %v5980
        %v5982 = vrot.slane %v5967, %v5981
        %v5984 = vunpack.c.l.s4 1966171168
        %v5985 = vunpack.c.0.s8 %v5984
        %v5986 = vlaneseq
        %v5987 = vshrl.u32 %v5986, 7
        %v5988 = vsub.s32 %v5985, %v5987
        %v5989 = vrot.slane %v5968, %v5988
        %v5991 = vunpack.c.l.s4 1966171168
        %v5992 = vunpack.c.0.s8 %v5991
        %v5993 = vlaneseq
        %v5994 = vshrl.u32 %v5993, 7
        %v5995 = vsub.s32 %v5992, %v5994
        %v5996 = vrot.slane %v5273, %v5995
        %v5997 = vcombine.low %v5975, %v5982
        %v5998 = vcombine.low %v5989, %v5996
        %v6000 = vunpack.c.l.s4 1966171168
        %v6001 = vunpack.c.0.s8 %v6000
        %v6002 = vlaneseq
        %v6003 = vshrl.u32 %v6002, 7
        %v6004 = vsub.s32 %v6001, %v6003
        %v6005 = vrot.slane %v5997, %v6004
        %v6007 = vunpack.c.l.s4 1966171168
        %v6008 = vunpack.c.0.s8 %v6007
        %v6009 = vlaneseq
        %v6010 = vshrl.u32 %v6009, 7
        %v6011 = vsub.s32 %v6008, %v6010
        %v6012 = vrot.slane %v5998, %v6011
        %v6013 = vcombine.low %v6005, %v6012
        %v6014 = vcombine.low %v5281, %v5283
        %v6015 = vcombine.low %v5266, %v5280
        %v6016 = vcombine.low %v5282, %v5284
        %v6017 = vcombine.low %v5308, %v5322
        %v6019 = vunpack.c.l.s4 1966171168
        %v6020 = vunpack.c.0.s8 %v6019
        %v6021 = vlaneseq
        %v6022 = vshrl.u32 %v6021, 7
        %v6023 = vsub.s32 %v6020, %v6022
        %v6024 = vrot.slane %v6014, %v6023
        %v6026 = vunpack.c.l.s4 1966171168
        %v6027 = vunpack.c.0.s8 %v6026
        %v6028 = vlaneseq
        %v6029 = vshrl.u32 %v6028, 7
        %v6030 = vsub.s32 %v6027, %v6029
        %v6031 = vrot.slane %v6015, %v6030
        %v6033 = vunpack.c.l.s4 1966171168
        %v6034 = vunpack.c.0.s8 %v6033
        %v6035 = vlaneseq
        %v6036 = vshrl.u32 %v6035, 7
        %v6037 = vsub.s32 %v6034, %v6036
        %v6038 = vrot.slane %v6016, %v6037
        %v6040 = vunpack.c.l.s4 1966171168
        %v6041 = vunpack.c.0.s8 %v6040
        %v6042 = vlaneseq
        %v6043 = vshrl.u32 %v6042, 7
        %v6044 = vsub.s32 %v6041, %v6043
        %v6045 = vrot.slane %v6017, %v6044
        %v6046 = vcombine.low %v6024, %v6031
        %v6047 = vcombine.low %v6038, %v6045
        %v6049 = vunpack.c.l.s4 1966171168
        %v6050 = vunpack.c.0.s8 %v6049
        %v6051 = vlaneseq
        %v6052 = vshrl.u32 %v6051, 7
        %v6053 = vsub.s32 %v6050, %v6052
        %v6054 = vrot.slane %v6046, %v6053
        %v6056 = vunpack.c.l.s4 1966171168
        %v6057 = vunpack.c.0.s8 %v6056
        %v6058 = vlaneseq
        %v6059 = vshrl.u32 %v6058, 7
        %v6060 = vsub.s32 %v6057, %v6059
        %v6061 = vrot.slane %v6047, %v6060
        %v6062 = vcombine.low %v6054, %v6061
        %v6063 = vcombine.low %v5330, %v5332
        %v6064 = vcombine.low %v5315, %v5329
        %v6065 = vcombine.low %v5331, %v5333
        %v6067 = vunpack.c.l.s4 1966171168
        %v6068 = vunpack.c.0.s8 %v6067
        %v6069 = vlaneseq
        %v6070 = vshrl.u32 %v6069, 7
        %v6071 = vsub.s32 %v6068, %v6070
        %v6072 = vrot.slane %v6063, %v6071
        %v6074 = vunpack.c.l.s4 1966171168
        %v6075 = vunpack.c.0.s8 %v6074
        %v6076 = vlaneseq
        %v6077 = vshrl.u32 %v6076, 7
        %v6078 = vsub.s32 %v6075, %v6077
        %v6079 = vrot.slane %v6064, %v6078
        %v6081 = vunpack.c.l.s4 1966171168
        %v6082 = vunpack.c.0.s8 %v6081
        %v6083 = vlaneseq
        %v6084 = vshrl.u32 %v6083, 7
        %v6085 = vsub.s32 %v6082, %v6084
        %v6086 = vrot.slane %v6065, %v6085
        %v6088 = vunpack.c.l.s4 1966171168
        %v6089 = vunpack.c.0.s8 %v6088
        %v6090 = vlaneseq
        %v6091 = vshrl.u32 %v6090, 7
        %v6092 = vsub.s32 %v6089, %v6091
        %v6093 = vrot.slane %v5357, %v6092
        %v6094 = vcombine.low %v6072, %v6079
        %v6095 = vcombine.low %v6086, %v6093
        %v6097 = vunpack.c.l.s4 1966171168
        %v6098 = vunpack.c.0.s8 %v6097
        %v6099 = vlaneseq
        %v6100 = vshrl.u32 %v6099, 7
        %v6101 = vsub.s32 %v6098, %v6100
        %v6102 = vrot.slane %v6094, %v6101
        %v6104 = vunpack.c.l.s4 1966171168
        %v6105 = vunpack.c.0.s8 %v6104
        %v6106 = vlaneseq
        %v6107 = vshrl.u32 %v6106, 7
        %v6108 = vsub.s32 %v6105, %v6107
        %v6109 = vrot.slane %v6095, %v6108
        %v6110 = vcombine.low %v6102, %v6109
        %v6111 = vcombine.low %v5371, %v5379
        %v6112 = vcombine.low %v5381, %v5364
        %v6113 = vcombine.low %v5378, %v5380
        %v6114 = vcombine.low %v5382, %v5406
        %v6116 = vunpack.c.l.s4 1966171168
        %v6117 = vunpack.c.0.s8 %v6116
        %v6118 = vlaneseq
        %v6119 = vshrl.u32 %v6118, 7
        %v6120 = vsub.s32 %v6117, %v6119
        %v6121 = vrot.slane %v6111, %v6120
        %v6123 = vunpack.c.l.s4 1966171168
        %v6124 = vunpack.c.0.s8 %v6123
        %v6125 = vlaneseq
        %v6126 = vshrl.u32 %v6125, 7
        %v6127 = vsub.s32 %v6124, %v6126
        %v6128 = vrot.slane %v6112, %v6127
        %v6130 = vunpack.c.l.s4 1966171168
        %v6131 = vunpack.c.0.s8 %v6130
        %v6132 = vlaneseq
        %v6133 = vshrl.u32 %v6132, 7
        %v6134 = vsub.s32 %v6131, %v6133
        %v6135 = vrot.slane %v6113, %v6134
        %v6137 = vunpack.c.l.s4 1966171168
        %v6138 = vunpack.c.0.s8 %v6137
        %v6139 = vlaneseq
        %v6140 = vshrl.u32 %v6139, 7
        %v6141 = vsub.s32 %v6138, %v6140
        %v6142 = vrot.slane %v6114, %v6141
        %v6143 = vcombine.low %v6121, %v6128
        %v6144 = vcombine.low %v6135, %v6142
        %v6146 = vunpack.c.l.s4 1966171168
        %v6147 = vunpack.c.0.s8 %v6146
        %v6148 = vlaneseq
        %v6149 = vshrl.u32 %v6148, 7
        %v6150 = vsub.s32 %v6147, %v6149
        %v6151 = vrot.slane %v6143, %v6150
        %v6153 = vunpack.c.l.s4 1966171168
        %v6154 = vunpack.c.0.s8 %v6153
        %v6155 = vlaneseq
        %v6156 = vshrl.u32 %v6155, 7
        %v6157 = vsub.s32 %v6154, %v6156
        %v6158 = vrot.slane %v6144, %v6157
        %v6159 = vcombine.low %v6151, %v6158
        %v6160 = vcombine.low %v5420, %v5428
        %v6161 = vcombine.low %v5430, %v5413
        %v6162 = vcombine.low %v5427, %v5429
        %v6164 = vunpack.c.l.s4 1966171168
        %v6165 = vunpack.c.0.s8 %v6164
        %v6166 = vlaneseq
        %v6167 = vshrl.u32 %v6166, 7
        %v6168 = vsub.s32 %v6165, %v6167
        %v6169 = vrot.slane %v6160, %v6168
        %v6171 = vunpack.c.l.s4 1966171168
        %v6172 = vunpack.c.0.s8 %v6171
        %v6173 = vlaneseq
        %v6174 = vshrl.u32 %v6173, 7
        %v6175 = vsub.s32 %v6172, %v6174
        %v6176 = vrot.slane %v6161, %v6175
        %v6178 = vunpack.c.l.s4 1966171168
        %v6179 = vunpack.c.0.s8 %v6178
        %v6180 = vlaneseq
        %v6181 = vshrl.u32 %v6180, 7
        %v6182 = vsub.s32 %v6179, %v6181
        %v6183 = vrot.slane %v6162, %v6182
        %v6185 = vunpack.c.l.s4 1966171168
        %v6186 = vunpack.c.0.s8 %v6185
        %v6187 = vlaneseq
        %v6188 = vshrl.u32 %v6187, 7
        %v6189 = vsub.s32 %v6186, %v6188
        %v6190 = vrot.slane %v5431, %v6189
        %v6191 = vcombine.low %v6169, %v6176
        %v6192 = vcombine.low %v6183, %v6190
        %v6194 = vunpack.c.l.s4 1966171168
        %v6195 = vunpack.c.0.s8 %v6194
        %v6196 = vlaneseq
        %v6197 = vshrl.u32 %v6196, 7
        %v6198 = vsub.s32 %v6195, %v6197
        %v6199 = vrot.slane %v6191, %v6198
        %v6201 = vunpack.c.l.s4 1966171168
        %v6202 = vunpack.c.0.s8 %v6201
        %v6203 = vlaneseq
        %v6204 = vshrl.u32 %v6203, 7
        %v6205 = vsub.s32 %v6202, %v6204
        %v6206 = vrot.slane %v6192, %v6205
        %v6207 = vcombine.low %v6199, %v6206
        %v6224 = vadd.f32 %v3744, %v5480
        %v6225 = vadd.f32 %v3745, %v5528
        %v6226 = vadd.f32 %v3746, %v5577
        %v6227 = vadd.f32 %v3747, %v5625
        %v6228 = vadd.f32 %v3748, %v5674
        %v6229 = vadd.f32 %v3749, %v5722
        %v6230 = vadd.f32 %v3750, %v5771
        %v6231 = vadd.f32 %v3751, %v5819
        %v6232 = vadd.f32 %v3752, %v5868
        %v6233 = vadd.f32 %v3753, %v5916
        %v6234 = vadd.f32 %v3754, %v5965
        %v6235 = vadd.f32 %v3755, %v6013
        %v6236 = vadd.f32 %v3756, %v6062
        %v6237 = vadd.f32 %v3757, %v6110
        %v6238 = vadd.f32 %v3758, %v6159
        %v6239 = vadd.f32 %v3759, %v6207
        %6240 = vst [vmem:[#allocation2] sm:$0xff] %v6224
        %6241 = vst [vmem:[#allocation2 + $0x8] sm:$0x7f] %v6225
        %6242 = vst [vmem:[#allocation2 + $0x10] sm:$0xff] %v6226
        %6243 = vst [vmem:[#allocation2 + $0x18] sm:$0x7f] %v6227
        %6244 = vst [vmem:[#allocation2 + $0x20] sm:$0xff] %v6228
        %6245 = vst [vmem:[#allocation2 + $0x28] sm:$0x7f] %v6229
        %6246 = vst [vmem:[#allocation2 + $0x30] sm:$0xff] %v6230
        %6247 = vst [vmem:[#allocation2 + $0x38] sm:$0x7f] %v6231
        %6248 = vst [vmem:[#allocation2 + $0x40] sm:$0xff] %v6232
        %6249 = vst [vmem:[#allocation2 + $0x48] sm:$0x7f] %v6233
        %6250 = vst [vmem:[#allocation2 + $0x50] sm:$0xff] %v6234
        %6251 = vst [vmem:[#allocation2 + $0x58] sm:$0x7f] %v6235
        %6252 = vst [vmem:[#allocation2 + $0x60] sm:$0xff] %v6236
        %6253 = vst [vmem:[#allocation2 + $0x68] sm:$0x7f] %v6237
        %6254 = vst [vmem:[#allocation2 + $0x70] sm:$0xff] %v6238
        %6255 = vst [vmem:[#allocation2 + $0x78] sm:$0x7f] %v6239
        %v6256 = vld [vmem:[#allocation2] sm:$0xff]
        %v6257 = vld [vmem:[#allocation2 + $0x8] sm:$0xff]
        %v6258 = vld [vmem:[#allocation2 + $0x10] sm:$0xff]
        %v6259 = vld [vmem:[#allocation2 + $0x18] sm:$0xff]
        %v6260 = vld [vmem:[#allocation2 + $0x20] sm:$0xff]
        %v6261 = vld [vmem:[#allocation2 + $0x28] sm:$0xff]
        %v6262 = vld [vmem:[#allocation2 + $0x30] sm:$0xff]
        %v6263 = vld [vmem:[#allocation2 + $0x38] sm:$0xff]
        %v6264 = vld [vmem:[#allocation2 + $0x40] sm:$0xff]
        %v6265 = vld [vmem:[#allocation2 + $0x48] sm:$0xff]
        %v6266 = vld [vmem:[#allocation2 + $0x50] sm:$0xff]
        %v6267 = vld [vmem:[#allocation2 + $0x58] sm:$0xff]
        %v6268 = vld [vmem:[#allocation2 + $0x60] sm:$0xff]
        %v6269 = vld [vmem:[#allocation2 + $0x68] sm:$0xff]
        %v6270 = vld [vmem:[#allocation2 + $0x70] sm:$0xff]
        %v6271 = vld [vmem:[#allocation2 + $0x78] sm:$0xff]
        %6272 = vst [vmem:[%s204] sm:$0xff] %v6256
        %6273 = vst [vmem:[%s204 + $0x8] sm:$0xff] %v6257
        %6274 = vst [vmem:[%s204 + $0x10] sm:$0xff] %v6258
        %6275 = vst [vmem:[%s204 + $0x18] sm:$0xff] %v6259
        %6276 = vst [vmem:[%s204 + $0x20] sm:$0xff] %v6260
        %6277 = vst [vmem:[%s204 + $0x28] sm:$0xff] %v6261
        %6278 = vst [vmem:[%s204 + $0x30] sm:$0xff] %v6262
        %6279 = vst [vmem:[%s204 + $0x38] sm:$0xff] %v6263
        %6280 = vst [vmem:[%s204 + $0x40] sm:$0xff] %v6264
        %6281 = vst [vmem:[%s204 + $0x48] sm:$0xff] %v6265
        %6282 = vst [vmem:[%s204 + $0x50] sm:$0xff] %v6266
        %6283 = vst [vmem:[%s204 + $0x58] sm:$0xff] %v6267
        %6284 = vst [vmem:[%s204 + $0x60] sm:$0xff] %v6268
        %6285 = vst [vmem:[%s204 + $0x68] sm:$0xff] %v6269
        %6286 = vst [vmem:[%s204 + $0x70] sm:$0xff] %v6270
        %6287 = vst [vmem:[%s204 + $0x78] sm:$0xff] %v6271
        %s6288 = sand.u32 %s97, 1
        %s6289 = scalar_lea.sflag [#allocation5], %s6288
        %s6290 = sand.u32 %s97, 1
        %s6291 = smul.addr %s6290, 128
        %s6292 = scalar_lea.vmem [#allocation8], %s6291
        // Predicated region
        $region41: #{tpu_custom_call.1} parent=31 // pred_check
          %p6293 = pneg %p107
        $region42: #{tpu_custom_call.1} parent=31 // pred_check_branch
          %6295 = sbr.rel (%p6293) target = $region44
        $region43: #{tpu_custom_call.1} parent=31 // pred_region
          %s6296 = smul.u32 8, %s21
          %s6298 = ssub.s32 2048, 2048
          %6299 = vsyncadd %s6289, %s6298
          %s6300 = smul.addr %s6296, 2
          %s6301 = smul.addr %s6300, 128
          %s6302 = scalar_lea.hbm %s3, %s6301
          %s6303 = sshll.u32 %s6292, 4
          %s6304 = int_to_ptr.vmem [resolvable:$true] %s6303
          %6309 = dma.vmem_to_hbm [thread:$0]  %s6304, 2048, %s6302, %s6289, 128, 128, 8
        $region44: #{tpu_custom_call.1} parent=31 // pred_fallthru
          _
      $region32: #{tpu_custom_call.1} parent=5 // pred_fallthru
        _
      %p6310 = scmp.le.s32.totalorder 2, %s16
      // Predicated region
      $region45: #{tpu_custom_call.1} parent=5 // pred_check
        %p6311 = pneg %p6310
      $region46: #{tpu_custom_call.1} parent=5 // pred_check_branch
        %6313 = sbr.rel (%p6311) target = $region48
      $region47: #{tpu_custom_call.1} parent=5 // pred_region
        %s6314 = ssub.s32 %s16, 2
        // Predicated region
        $region49: #{tpu_custom_call.1} parent=47 // pred_check
          %p6315 = pneg %p113
        $region50: #{tpu_custom_call.1} parent=47 // pred_check_branch
          %6317 = sbr.rel (%p6315) target = $region52
        $region51: #{tpu_custom_call.1} parent=47 // pred_region
          %s6318 = sand.u32 %s98, 1
          %s6319 = scalar_lea.sflag [#allocation5], %s6318
          %s6320 = sand.u32 %s98, 1
          %s6321 = smul.addr %s6320, 128
          %s6322 = scalar_lea.vmem [#allocation8], %s6321
          %6323 = dma.done %s6319, 2048
        $region52: #{tpu_custom_call.1} parent=47 // pred_fallthru
          _
      $region48: #{tpu_custom_call.1} parent=5 // pred_fallthru
        _
    $region6: #{tpu_custom_call.1} parent=1 // loop_footer
      %s20 = sadd.s32 1, %s16
    $region7: #{tpu_custom_call.1} parent=1 // loop_footer_branch
      %15 = sbr.rel target = $region3
    $region8: #{tpu_custom_call.1} parent=1 // loop_exit
      _
    %6324 = vsyncpa [#allocation4], 1
    %s6325 = scalar_lea.sflag [#allocation4], 1
    %6326 = vsyncpa %s6325, 1
    %6327 = vsyncpa [#allocation7], 1
    %6328 = vsyncpa [#allocation5], 1
    %s6329 = scalar_lea.sflag [#allocation5], 1
    %6330 = vsyncpa %s6329, 1

</llo_original>
